<compile_context>
chip_gen: v7x
topology: tpu7x:2x2x1
jax: 0.10.0
libtpu: 0.0.40
codegen_flags: <defaults>
</compile_context>

<pallas_src>
import functools

import jax
import jax.numpy as jnp
from jax import lax
from jax.experimental import pallas as pl
from jax.experimental.pallas import tpu as pltpu


def _round_up(n: int, m: int) -> int:
    return ((n + m - 1) // m) * m


def _pick_batch_block(batch: int) -> int:
    """Pick B_blk: sublane-friendly, M=B_blk*S large, >=2 grid steps when possible."""
    if batch <= 16:
        # single grid step; block == full array so no tile-alignment concerns
        return _round_up(max(batch, 1), 8)
    # multiple of 16 keeps the bf16 patches block sublane-tile aligned (S=5 odd)
    return min(64, _round_up((batch + 1) // 2, 16))


# --------------------------- fused forward kernel ---------------------------

def _clip_forward_kernel(
    patches_ref,                   # (M, PDIM) bf16  B_blk images x S rows (cls rows zero)
    mask_ref,                      # (B_blk, M) f32  block-diag softmax bias (0 / -1e30)
    tok_bias_ref,                  # (M, W) f32      class+pos embedding, tiled per image
    w_patch_ref,                   # (PDIM, W) bf16
    ln_pre_g_ref, ln_pre_b_ref,    # (1, W) f32
    ln1_g_ref, ln1_b_ref,          # (1, W) f32
    w_q_ref, b_q_ref,              # (W, W)  bf16, (1, W)  f32
    w_kv_ref, b_kv_ref,            # (W, 2W) bf16, (1, 2W) f32
    w_out_ref, b_out_ref,          # (W, W)  bf16, (1, W)  f32
    ln2_g_ref, ln2_b_ref,          # (1, W) f32
    w_fc1_ref, b_fc1_ref,          # (W, 4W) bf16, (1, 4W) f32
    w_fc2_ref, b_fc2_ref,          # (4W, W) bf16, (1, W)  f32
    ln_post_g_ref, ln_post_b_ref,  # (1, W) f32
    w_proj_ref,                    # (W, E) bf16
    txt_ref,                       # (T_pad, E) bf16  pre-normalized * logit_scale
    out_ref,                       # (B_blk, T_pad) f32
    *, heads: int,
):
    f32, bf16 = jnp.float32, jnp.bfloat16
    W = w_out_ref.shape[0]
    hd = W // heads
    b_blk = out_ref.shape[0]

    def mm(a_f32, w_ref, b_ref=None):
        # bf16 MXU matmul, f32 accumulation
        y = jnp.dot(a_f32.astype(bf16), w_ref[...], preferred_element_type=f32)
        if b_ref is not None:
            y = y + b_ref[...]
        return y

    def layernorm(x, g_ref, b_ref):
        mu = jnp.mean(x, axis=-1, keepdims=True)
        var = jnp.mean((x - mu) ** 2, axis=-1, keepdims=True)
        return (x - mu) * lax.rsqrt(var + 1e-5) * g_ref[...] + b_ref[...]

    # ---- all tokens: patch embed -> ln_pre -> LN1 -> K,V projection ----
    x = jnp.dot(patches_ref[...], w_patch_ref[...], preferred_element_type=f32)
    x = x + tok_bias_ref[...]                                     # (M, W)
    x = layernorm(x, ln_pre_g_ref, ln_pre_b_ref)
    y = layernorm(x, ln1_g_ref, ln1_b_ref)
    kv = mm(y, w_kv_ref, b_kv_ref)                                # (M, 2W)
    k, v = kv[:, :W], kv[:, W:]                                   # vreg-aligned slices

    # ---- cls token: its patch row is zero, so it is identical for every image ----
    cls_tok = tok_bias_ref[0:1, :]                                # (1, W)
    x_cls0 = layernorm(cls_tok, ln_pre_g_ref, ln_pre_b_ref)       # residual input
    y_cls = layernorm(x_cls0, ln1_g_ref, ln1_b_ref)
    q_cls = mm(y_cls, w_q_ref, b_q_ref) * (hd ** -0.5)            # (1, W), pre-scaled

    # ---- attention: cls query only; block-diagonal mask keeps images separate ----
    mask = mask_ref[...]                                          # (B_blk, M), hoisted
    acc = jnp.zeros((b_blk, W), f32)
    for h in range(heads):  # static unroll
        sl = slice(h * hd, (h + 1) * hd)
        s = lax.dot_general(q_cls[:, sl].astype(bf16), k[:, sl].astype(bf16),
                            (((1,), (1,)), ((), ())),
                            preferred_element_type=f32)           # (1, M)
        sb = s + mask                                             # (B_blk, M)
        sb = sb - jnp.max(sb, axis=-1, keepdims=True)
        p = jnp.exp(sb)
        p = p * pl.reciprocal(jnp.sum(p, axis=-1, keepdims=True), approx=True)
        head_out = jnp.dot(p.astype(bf16), v[:, sl].astype(bf16),
                           preferred_element_type=f32)            # (B_blk, hd)
        # fold the output projection per head (no concat of head outputs)
        acc = acc + jnp.dot(head_out.astype(bf16), w_out_ref[sl, :],
                            preferred_element_type=f32)           # (B_blk, W)
    x_c = x_cls0 + acc + b_out_ref[...]                           # fused residual

    # ---- MLP on the cls rows only (exact: only row 0 feeds the tail) ----
    y2 = layernorm(x_c, ln2_g_ref, ln2_b_ref)
    h1 = mm(y2, w_fc1_ref, b_fc1_ref)                             # (B_blk, 4W)
    h1 = h1 * jax.nn.sigmoid(1.702 * h1)                          # QuickGELU (f32)
    x_c = x_c + mm(h1, w_fc2_ref, b_fc2_ref)                      # fused residual

    # ---- ln_post -> projection -> L2 normalize -> logits ----
    cls = layernorm(x_c, ln_post_g_ref, ln_post_b_ref)            # (B_blk, W)
    img = mm(cls, w_proj_ref)                                     # (B_blk, E)
    img = img * lax.rsqrt(jnp.sum(img * img, axis=-1, keepdims=True) + 1e-12)

    # logits = img @ (logit_scale * txt_norm).T  (contract last dims, no transpose)
    out_ref[...] = lax.dot_general(img.astype(bf16), txt_ref[...],
                                   (((1,), (1,)), ((), ())),
                                   preferred_element_type=f32)    # (B_blk, T_pad)


# ------------------------------- mini CLIP ----------------------------------

class ClipBasePallas:
    """ClipBase.forward semantics with a synthetic mini CLIP image encoder."""

    def __init__(self, key, *, in_chans=3, image_size=32, patch=16,
                 width=128, heads=4, embed_dim=128, batch_block=None):
        self.patch = patch
        self.width = width
        self.heads = heads
        self.embed_dim = embed_dim
        self.batch_block = batch_block
        num_patches = (image_size // patch) ** 2
        self.seq = num_patches + 1

        ks = jax.random.split(key, 10)
        s = 0.02
        bf16, f32 = jnp.bfloat16, jnp.float32
        pdim = in_chans * patch * patch
        self.pdim = pdim

        # MXU weights stored in bf16 (halves weight DMA, native MXU dtype).
        self.w_patch = (s * jax.random.normal(ks[0], (pdim, width), f32)).astype(bf16)
        class_emb = s * jax.random.normal(ks[1], (width,), f32)
        pos_emb = s * jax.random.normal(ks[2], (self.seq, width), f32)
        # fused class-token + positional-embedding bias (row 0 gets class emb)
        self.tok_bias = pos_emb.at[0].add(class_emb)                     # (S, W) f32

        ones = jnp.ones((1, width), f32)
        zeros = jnp.zeros((1, width), f32)
        self.ln_pre_g, self.ln_pre_b = ones, zeros
        self.ln1_g, self.ln1_b = ones, zeros
        w_qkv = s * jax.random.normal(ks[3], (width, 3 * width), f32)
        self.w_q = w_qkv[:, :width].astype(bf16)          # Q split from KV:
        self.w_kv = w_qkv[:, width:].astype(bf16)         # KV matmul has N=2W=256
        self.b_q = jnp.zeros((1, width), f32)
        self.b_kv = jnp.zeros((1, 2 * width), f32)
        self.w_out = (s * jax.random.normal(ks[4], (width, width), f32)).astype(bf16)
        self.b_out = zeros
        self.ln2_g, self.ln2_b = ones, zeros
        self.w_fc1 = (s * jax.random.normal(ks[5], (width, 4 * width), f32)).astype(bf16)
        self.b_fc1 = jnp.zeros((1, 4 * width), f32)
        self.w_fc2 = (s * jax.random.normal(ks[6], (4 * width, width), f32)).astype(bf16)
        self.b_fc2 = zeros
        self.ln_post_g, self.ln_post_b = ones, zeros
        self.w_proj = (s * jax.random.normal(ks[7], (width, embed_dim), f32)).astype(bf16)

        # CLIP init: logit_scale = exp(log(1/0.07)).detach() — folded into text features.
        self.logit_scale = jnp.exp(jnp.array(jnp.log(1.0 / 0.07), f32))
        self._precomputed_prompt_features = None
        self._txt_padded = None
        self._num_prompts = 0

    def precompute_prompt_features(self, prompt_features):
        # TODO(synk): clip.tokenize + the pretrained text transformer operate on
        # Python strings and a learned vocab; only the precomputed-prompt-features
        # path is implemented.  Features are L2-normalized, scaled by logit_scale
        # and cast to bf16 here (hoisted out of the kernel).
        T, E = prompt_features.shape
        assert E == self.embed_dim
        t_pad = max(128, _round_up(T, 128))          # lane-dense logits block
        feats = prompt_features.astype(jnp.float32)
        norm = jnp.maximum(jnp.linalg.norm(feats, axis=-1, keepdims=True), 1e-12)
        feats = (feats / norm) * self.logit_scale
        self._num_prompts = T
        self._txt_padded = jnp.pad(feats, ((0, t_pad - T), (0, 0))).astype(jnp.bfloat16)
        self._precomputed_prompt_features = prompt_features

    def forward(self, images, prompts=None):
        # TODO(synk): `prompts` (string) path requires the CLIP tokenizer/text
        # transformer; not representable as a Pallas kernel.
        if self._precomputed_prompt_features is None:
            raise ValueError(
                "At least one prompts or pre-computed promt features has to be present."
            )

        B, C, H, Wim = images.shape
        P = self.patch
        gh, gw = H // P, Wim // P
        S, Wd, E = self.seq, self.width, self.embed_dim
        pdim = self.pdim
        txt = self._txt_padded
        t_pad = txt.shape[0]

        b_blk = self.batch_block or _pick_batch_block(B)
        b_pad = _round_up(B, b_blk)
        n_steps = b_pad // b_blk
        M = b_blk * S                                    # flattened rows per grid step

        # im2col for the patch conv (kernel=stride=patch, no bias), in bf16, plus a
        # zero row per image in position 0 -> the class-token slot; flatten batch.
        x = images.astype(jnp.bfloat16)
        x = x.reshape(B, C, gh, P, gw, P).transpose(0, 2, 4, 1, 3, 5)
        x = x.reshape(B, gh * gw, pdim)
        patches = jnp.pad(x, ((0, b_pad - B), (1, 0), (0, 0)))   # (b_pad, S, pdim)
        patches = patches.reshape(b_pad * S, pdim)               # (b_pad*S, pdim) bf16

        # per-image class+pos bias tiled to the flattened block layout
        tok_bias_tiled = jnp.tile(self.tok_bias, (b_blk, 1))     # (M, W) f32

        # block-diagonal softmax bias: image b's cls query attends only to its own S keys
        rows = jnp.arange(b_blk, dtype=jnp.int32)[:, None]
        cols = jnp.arange(M, dtype=jnp.int32)[None, :]
        mask_bias = jnp.where(cols // S == rows, 0.0, -1e30).astype(jnp.float32)

        def const(shape):
            nd = len(shape)
            return pl.BlockSpec(shape, lambda i, _nd=nd: (0,) * _nd)

        in_specs = [
            pl.BlockSpec((M, pdim), lambda i: (i, 0)),           # patches (streamed)
            const((b_blk, M)),                                   # softmax mask bias
            const((M, Wd)),                                      # tok_bias tiled
            const((pdim, Wd)),                                   # w_patch
            const((1, Wd)), const((1, Wd)),                      # ln_pre
            const((1, Wd)), const((1, Wd)),                      # ln1
            const((Wd, Wd)), const((1, Wd)),                     # w_q, b_q
            const((Wd, 2 * Wd)), const((1, 2 * Wd)),             # w_kv, b_kv
            const((Wd, Wd)), const((1, Wd)),                     # out proj
            const((1, Wd)), const((1, Wd)),                      # ln2
            const((Wd, 4 * Wd)), const((1, 4 * Wd)),             # fc1
            const((4 * Wd, Wd)), const((1, Wd)),                 # fc2
            const((1, Wd)), const((1, Wd)),                      # ln_post
            const((Wd, E)),                                      # w_proj
            const((t_pad, E)),                                   # text features (bf16)
        ]
        out_spec = pl.BlockSpec((b_blk, t_pad), lambda i: (i, 0))

        kernel = functools.partial(_clip_forward_kernel, heads=self.heads)
        out = pl.pallas_call(
            kernel,
            grid=(n_steps,),
            in_specs=in_specs,
            out_specs=out_spec,
            out_shape=jax.ShapeDtypeStruct((b_pad, t_pad), jnp.float32),
            compiler_params=pltpu.CompilerParams(
                dimension_semantics=("parallel",)),   # v7x: shard grid over 2 TCs
        )(patches, mask_bias, tok_bias_tiled, self.w_patch,
          self.ln_pre_g, self.ln_pre_b,
          self.ln1_g, self.ln1_b,
          self.w_q, self.b_q, self.w_kv, self.b_kv,
          self.w_out, self.b_out,
          self.ln2_g, self.ln2_b,
          self.w_fc1, self.b_fc1, self.w_fc2, self.b_fc2,
          self.ln_post_g, self.ln_post_b,
          self.w_proj, txt)

        return out[:B, :self._num_prompts]           # (B, T) logits_per_image


if __name__ == "__main__":
    key = jax.random.PRNGKey(0)
    k_model, k_img, k_txt = jax.random.split(key, 3)

    model = ClipBasePallas(k_model, in_chans=3, image_size=32, patch=16,
                           width=128, heads=4, embed_dim=128)

    images = jax.random.normal(k_img, (2, 3, 32, 32), jnp.float32)   # NCHW
    txt_feats = jax.random.normal(k_txt, (8, 128), jnp.float32)      # 8 prompts
    model.precompute_prompt_features(txt_feats)

    logits = model.forward(images)
    jax.block_until_ready(logits)
    assert logits.shape == (2, 8) and logits.dtype == jnp.float32
    assert bool(jnp.all(jnp.isfinite(logits)))
    print("KERNEL_OK")
</pallas_src>

<mosaic_0001>
module attributes {stable_mosaic.version = 11 : i64} {
  func.func @_clip_forward_kernel(%arg0: i32, %arg1: memref<40x768xbf16, #tpu.memory_space<vmem>>, %arg2: memref<8x40xf32, #tpu.memory_space<vmem>>, %arg3: memref<40x128xf32, #tpu.memory_space<vmem>>, %arg4: memref<768x128xbf16, #tpu.memory_space<vmem>>, %arg5: memref<1x128xf32, #tpu.memory_space<vmem>>, %arg6: memref<1x128xf32, #tpu.memory_space<vmem>>, %arg7: memref<1x128xf32, #tpu.memory_space<vmem>>, %arg8: memref<1x128xf32, #tpu.memory_space<vmem>>, %arg9: memref<128x128xbf16, #tpu.memory_space<vmem>>, %arg10: memref<1x128xf32, #tpu.memory_space<vmem>>, %arg11: memref<128x256xbf16, #tpu.memory_space<vmem>>, %arg12: memref<1x256xf32, #tpu.memory_space<vmem>>, %arg13: memref<128x128xbf16, #tpu.memory_space<vmem>>, %arg14: memref<1x128xf32, #tpu.memory_space<vmem>>, %arg15: memref<1x128xf32, #tpu.memory_space<vmem>>, %arg16: memref<1x128xf32, #tpu.memory_space<vmem>>, %arg17: memref<128x512xbf16, #tpu.memory_space<vmem>>, %arg18: memref<1x512xf32, #tpu.memory_space<vmem>>, %arg19: memref<512x128xbf16, #tpu.memory_space<vmem>>, %arg20: memref<1x128xf32, #tpu.memory_space<vmem>>, %arg21: memref<1x128xf32, #tpu.memory_space<vmem>>, %arg22: memref<1x128xf32, #tpu.memory_space<vmem>>, %arg23: memref<128x128xbf16, #tpu.memory_space<vmem>>, %arg24: memref<128x128xbf16, #tpu.memory_space<vmem>>, %arg25: memref<8x128xf32, #tpu.memory_space<vmem>>) attributes {dimension_semantics = [#tpu.dimension_semantics<parallel>], iteration_bounds = array<i64: 1>, scalar_prefetch = 0 : i64, scratch_operands = 0 : i64, tpu.core_type = #tpu.core_type<tc>, window_params = [{transform_indices = @transform_0, window_bounds = array<i64: 40, 768>}, {pipeline_mode = #tpu.pipeline_mode<synchronous>, transform_indices = @transform_1, window_bounds = array<i64: 8, 40>}, {pipeline_mode = #tpu.pipeline_mode<synchronous>, transform_indices = @transform_2, window_bounds = array<i64: 40, 128>}, {pipeline_mode = #tpu.pipeline_mode<synchronous>, transform_indices = @transform_3, window_bounds = array<i64: 768, 128>}, {pipeline_mode = #tpu.pipeline_mode<synchronous>, transform_indices = @transform_4, window_bounds = array<i64: 1, 128>}, {pipeline_mode = #tpu.pipeline_mode<synchronous>, transform_indices = @transform_5, window_bounds = array<i64: 1, 128>}, {pipeline_mode = #tpu.pipeline_mode<synchronous>, transform_indices = @transform_6, window_bounds = array<i64: 1, 128>}, {pipeline_mode = #tpu.pipeline_mode<synchronous>, transform_indices = @transform_7, window_bounds = array<i64: 1, 128>}, {pipeline_mode = #tpu.pipeline_mode<synchronous>, transform_indices = @transform_8, window_bounds = array<i64: 128, 128>}, {pipeline_mode = #tpu.pipeline_mode<synchronous>, transform_indices = @transform_9, window_bounds = array<i64: 1, 128>}, {pipeline_mode = #tpu.pipeline_mode<synchronous>, transform_indices = @transform_10, window_bounds = array<i64: 128, 256>}, {pipeline_mode = #tpu.pipeline_mode<synchronous>, transform_indices = @transform_11, window_bounds = array<i64: 1, 256>}, {pipeline_mode = #tpu.pipeline_mode<synchronous>, transform_indices = @transform_12, window_bounds = array<i64: 128, 128>}, {pipeline_mode = #tpu.pipeline_mode<synchronous>, transform_indices = @transform_13, window_bounds = array<i64: 1, 128>}, {pipeline_mode = #tpu.pipeline_mode<synchronous>, transform_indices = @transform_14, window_bounds = array<i64: 1, 128>}, {pipeline_mode = #tpu.pipeline_mode<synchronous>, transform_indices = @transform_15, window_bounds = array<i64: 1, 128>}, {pipeline_mode = #tpu.pipeline_mode<synchronous>, transform_indices = @transform_16, window_bounds = array<i64: 128, 512>}, {pipeline_mode = #tpu.pipeline_mode<synchronous>, transform_indices = @transform_17, window_bounds = array<i64: 1, 512>}, {pipeline_mode = #tpu.pipeline_mode<synchronous>, transform_indices = @transform_18, window_bounds = array<i64: 512, 128>}, {pipeline_mode = #tpu.pipeline_mode<synchronous>, transform_indices = @transform_19, window_bounds = array<i64: 1, 128>}, {pipeline_mode = #tpu.pipeline_mode<synchronous>, transform_indices = @transform_20, window_bounds = array<i64: 1, 128>}, {pipeline_mode = #tpu.pipeline_mode<synchronous>, transform_indices = @transform_21, window_bounds = array<i64: 1, 128>}, {pipeline_mode = #tpu.pipeline_mode<synchronous>, transform_indices = @transform_22, window_bounds = array<i64: 128, 128>}, {pipeline_mode = #tpu.pipeline_mode<synchronous>, transform_indices = @transform_23, window_bounds = array<i64: 128, 128>}, {transform_indices = @transform_24, window_bounds = array<i64: 8, 128>}]} {
    %c0 = arith.constant 0 : index
    %c0_0 = arith.constant 0 : index
    %0 = vector.load %arg1[%c0, %c0_0] : memref<40x768xbf16, #tpu.memory_space<vmem>>, vector<40x768xbf16>
    %c0_1 = arith.constant 0 : index
    %c0_2 = arith.constant 0 : index
    %1 = vector.load %arg4[%c0_1, %c0_2] : memref<768x128xbf16, #tpu.memory_space<vmem>>, vector<768x128xbf16>
    %cst = arith.constant dense<0.000000e+00> : vector<40x128xf32>
    %2 = tpu.matmul %0, %1, %cst {dimension_numbers = #tpu.dot_dimension_numbers<[1], [0], [0], [1], [0, 0, 1, 1], [], []>} : vector<40x768xbf16>, vector<768x128xbf16>, vector<40x128xf32> -> vector<40x128xf32>
    %c0_3 = arith.constant 0 : index
    %c0_4 = arith.constant 0 : index
    %3 = vector.load %arg3[%c0_3, %c0_4] : memref<40x128xf32, #tpu.memory_space<vmem>>, vector<40x128xf32>
    %4 = arith.addf %2, %3 : vector<40x128xf32>
    %cst_5 = arith.constant dense<0.000000e+00> : vector<40xf32>
    %5 = vector.multi_reduction <add>, %4, %cst_5 [1] : vector<40x128xf32> to vector<40xf32>
    %6 = vector.shape_cast %5 : vector<40xf32> to vector<40x1xf32>
    %cst_6 = arith.constant 1.280000e+02 : f32
    %7 = vector.broadcast %cst_6 : f32 to vector<40x1xf32>
    %8 = arith.divf %6, %7 : vector<40x1xf32>
    %9 = vector.broadcast %8 : vector<40x1xf32> to vector<40x128xf32>
    %10 = arith.subf %4, %9 : vector<40x128xf32>
    %11 = arith.mulf %10, %10 : vector<40x128xf32>
    %cst_7 = arith.constant dense<0.000000e+00> : vector<40xf32>
    %12 = vector.multi_reduction <add>, %11, %cst_7 [1] : vector<40x128xf32> to vector<40xf32>
    %13 = vector.shape_cast %12 : vector<40xf32> to vector<40x1xf32>
    %cst_8 = arith.constant 1.280000e+02 : f32
    %14 = vector.broadcast %cst_8 : f32 to vector<40x1xf32>
    %15 = arith.divf %13, %14 : vector<40x1xf32>
    %16 = vector.broadcast %8 : vector<40x1xf32> to vector<40x128xf32>
    %17 = arith.subf %4, %16 : vector<40x128xf32>
    %cst_9 = arith.constant 9.99999974E-6 : f32
    %18 = vector.broadcast %cst_9 : f32 to vector<40x1xf32>
    %19 = arith.addf %15, %18 : vector<40x1xf32>
    %20 = math.rsqrt %19 : vector<40x1xf32>
    %21 = vector.broadcast %20 : vector<40x1xf32> to vector<40x128xf32>
    %22 = arith.mulf %17, %21 : vector<40x128xf32>
    %c0_10 = arith.constant 0 : index
    %c0_11 = arith.constant 0 : index
    %23 = vector.load %arg5[%c0_10, %c0_11] : memref<1x128xf32, #tpu.memory_space<vmem>>, vector<1x128xf32>
    %24 = vector.broadcast %23 : vector<1x128xf32> to vector<40x128xf32>
    %25 = arith.mulf %22, %24 : vector<40x128xf32>
    %c0_12 = arith.constant 0 : index
    %c0_13 = arith.constant 0 : index
    %26 = vector.load %arg6[%c0_12, %c0_13] : memref<1x128xf32, #tpu.memory_space<vmem>>, vector<1x128xf32>
    %27 = vector.broadcast %26 : vector<1x128xf32> to vector<40x128xf32>
    %28 = arith.addf %25, %27 : vector<40x128xf32>
    %cst_14 = arith.constant dense<0.000000e+00> : vector<40xf32>
    %29 = vector.multi_reduction <add>, %28, %cst_14 [1] : vector<40x128xf32> to vector<40xf32>
    %30 = vector.shape_cast %29 : vector<40xf32> to vector<40x1xf32>
    %cst_15 = arith.constant 1.280000e+02 : f32
    %31 = vector.broadcast %cst_15 : f32 to vector<40x1xf32>
    %32 = arith.divf %30, %31 : vector<40x1xf32>
    %33 = vector.broadcast %32 : vector<40x1xf32> to vector<40x128xf32>
    %34 = arith.subf %28, %33 : vector<40x128xf32>
    %35 = arith.mulf %34, %34 : vector<40x128xf32>
    %cst_16 = arith.constant dense<0.000000e+00> : vector<40xf32>
    %36 = vector.multi_reduction <add>, %35, %cst_16 [1] : vector<40x128xf32> to vector<40xf32>
    %37 = vector.shape_cast %36 : vector<40xf32> to vector<40x1xf32>
    %cst_17 = arith.constant 1.280000e+02 : f32
    %38 = vector.broadcast %cst_17 : f32 to vector<40x1xf32>
    %39 = arith.divf %37, %38 : vector<40x1xf32>
    %40 = vector.broadcast %32 : vector<40x1xf32> to vector<40x128xf32>
    %41 = arith.subf %28, %40 : vector<40x128xf32>
    %cst_18 = arith.constant 9.99999974E-6 : f32
    %42 = vector.broadcast %cst_18 : f32 to vector<40x1xf32>
    %43 = arith.addf %39, %42 : vector<40x1xf32>
    %44 = math.rsqrt %43 : vector<40x1xf32>
    %45 = vector.broadcast %44 : vector<40x1xf32> to vector<40x128xf32>
    %46 = arith.mulf %41, %45 : vector<40x128xf32>
    %c0_19 = arith.constant 0 : index
    %c0_20 = arith.constant 0 : index
    %47 = vector.load %arg7[%c0_19, %c0_20] : memref<1x128xf32, #tpu.memory_space<vmem>>, vector<1x128xf32>
    %48 = vector.broadcast %47 : vector<1x128xf32> to vector<40x128xf32>
    %49 = arith.mulf %46, %48 : vector<40x128xf32>
    %c0_21 = arith.constant 0 : index
    %c0_22 = arith.constant 0 : index
    %50 = vector.load %arg8[%c0_21, %c0_22] : memref<1x128xf32, #tpu.memory_space<vmem>>, vector<1x128xf32>
    %51 = vector.broadcast %50 : vector<1x128xf32> to vector<40x128xf32>
    %52 = arith.addf %49, %51 : vector<40x128xf32>
    %53 = arith.truncf %52 : vector<40x128xf32> to vector<40x128xbf16>
    %c0_23 = arith.constant 0 : index
    %c0_24 = arith.constant 0 : index
    %54 = vector.load %arg11[%c0_23, %c0_24] : memref<128x256xbf16, #tpu.memory_space<vmem>>, vector<128x256xbf16>
    %cst_25 = arith.constant dense<0.000000e+00> : vector<40x256xf32>
    %55 = tpu.matmul %53, %54, %cst_25 {dimension_numbers = #tpu.dot_dimension_numbers<[1], [0], [0], [1], [0, 0, 1, 1], [], []>} : vector<40x128xbf16>, vector<128x256xbf16>, vector<40x256xf32> -> vector<40x256xf32>
    %c0_26 = arith.constant 0 : index
    %c0_27 = arith.constant 0 : index
    %56 = vector.load %arg12[%c0_26, %c0_27] : memref<1x256xf32, #tpu.memory_space<vmem>>, vector<1x256xf32>
    %57 = vector.broadcast %56 : vector<1x256xf32> to vector<40x256xf32>
    %58 = arith.addf %55, %57 : vector<40x256xf32>
    %59 = vector.extract_strided_slice %58 {offsets = [0, 0], sizes = [40, 128], strides = [1, 1]} : vector<40x256xf32> to vector<40x128xf32>
    %60 = vector.extract_strided_slice %58 {offsets = [0, 128], sizes = [40, 128], strides = [1, 1]} : vector<40x256xf32> to vector<40x128xf32>
    %c0_28 = arith.constant 0 : index
    %c0_29 = arith.constant 0 : index
    %61 = vector.load %arg3[%c0_28, %c0_29] : memref<40x128xf32, #tpu.memory_space<vmem>>, vector<1x128xf32>
    %cst_30 = arith.constant dense<0.000000e+00> : vector<1xf32>
    %62 = vector.multi_reduction <add>, %61, %cst_30 [1] : vector<1x128xf32> to vector<1xf32>
    %63 = vector.shape_cast %62 : vector<1xf32> to vector<1x1xf32>
    %cst_31 = arith.constant 1.280000e+02 : f32
    %64 = vector.broadcast %cst_31 : f32 to vector<1x1xf32>
    %65 = arith.divf %63, %64 : vector<1x1xf32>
    %66 = vector.broadcast %65 : vector<1x1xf32> to vector<1x128xf32>
    %67 = arith.subf %61, %66 : vector<1x128xf32>
    %68 = arith.mulf %67, %67 : vector<1x128xf32>
    %cst_32 = arith.constant dense<0.000000e+00> : vector<1xf32>
    %69 = vector.multi_reduction <add>, %68, %cst_32 [1] : vector<1x128xf32> to vector<1xf32>
    %70 = vector.shape_cast %69 : vector<1xf32> to vector<1x1xf32>
    %cst_33 = arith.constant 1.280000e+02 : f32
    %71 = vector.broadcast %cst_33 : f32 to vector<1x1xf32>
    %72 = arith.divf %70, %71 : vector<1x1xf32>
    %73 = vector.broadcast %65 : vector<1x1xf32> to vector<1x128xf32>
    %74 = arith.subf %61, %73 : vector<1x128xf32>
    %cst_34 = arith.constant 9.99999974E-6 : f32
    %75 = vector.broadcast %cst_34 : f32 to vector<1x1xf32>
    %76 = arith.addf %72, %75 : vector<1x1xf32>
    %77 = math.rsqrt %76 : vector<1x1xf32>
    %78 = vector.broadcast %77 : vector<1x1xf32> to vector<1x128xf32>
    %79 = arith.mulf %74, %78 : vector<1x128xf32>
    %c0_35 = arith.constant 0 : index
    %c0_36 = arith.constant 0 : index
    %80 = vector.load %arg5[%c0_35, %c0_36] : memref<1x128xf32, #tpu.memory_space<vmem>>, vector<1x128xf32>
    %81 = arith.mulf %79, %80 : vector<1x128xf32>
    %c0_37 = arith.constant 0 : index
    %c0_38 = arith.constant 0 : index
    %82 = vector.load %arg6[%c0_37, %c0_38] : memref<1x128xf32, #tpu.memory_space<vmem>>, vector<1x128xf32>
    %83 = arith.addf %81, %82 : vector<1x128xf32>
    %cst_39 = arith.constant dense<0.000000e+00> : vector<1xf32>
    %84 = vector.multi_reduction <add>, %83, %cst_39 [1] : vector<1x128xf32> to vector<1xf32>
    %85 = vector.shape_cast %84 : vector<1xf32> to vector<1x1xf32>
    %cst_40 = arith.constant 1.280000e+02 : f32
    %86 = vector.broadcast %cst_40 : f32 to vector<1x1xf32>
    %87 = arith.divf %85, %86 : vector<1x1xf32>
    %88 = vector.broadcast %87 : vector<1x1xf32> to vector<1x128xf32>
    %89 = arith.subf %83, %88 : vector<1x128xf32>
    %90 = arith.mulf %89, %89 : vector<1x128xf32>
    %cst_41 = arith.constant dense<0.000000e+00> : vector<1xf32>
    %91 = vector.multi_reduction <add>, %90, %cst_41 [1] : vector<1x128xf32> to vector<1xf32>
    %92 = vector.shape_cast %91 : vector<1xf32> to vector<1x1xf32>
    %cst_42 = arith.constant 1.280000e+02 : f32
    %93 = vector.broadcast %cst_42 : f32 to vector<1x1xf32>
    %94 = arith.divf %92, %93 : vector<1x1xf32>
    %95 = vector.broadcast %87 : vector<1x1xf32> to vector<1x128xf32>
    %96 = arith.subf %83, %95 : vector<1x128xf32>
    %cst_43 = arith.constant 9.99999974E-6 : f32
    %97 = vector.broadcast %cst_43 : f32 to vector<1x1xf32>
    %98 = arith.addf %94, %97 : vector<1x1xf32>
    %99 = math.rsqrt %98 : vector<1x1xf32>
    %100 = vector.broadcast %99 : vector<1x1xf32> to vector<1x128xf32>
    %101 = arith.mulf %96, %100 : vector<1x128xf32>
    %c0_44 = arith.constant 0 : index
    %c0_45 = arith.constant 0 : index
    %102 = vector.load %arg7[%c0_44, %c0_45] : memref<1x128xf32, #tpu.memory_space<vmem>>, vector<1x128xf32>
    %103 = arith.mulf %101, %102 : vector<1x128xf32>
    %c0_46 = arith.constant 0 : index
    %c0_47 = arith.constant 0 : index
    %104 = vector.load %arg8[%c0_46, %c0_47] : memref<1x128xf32, #tpu.memory_space<vmem>>, vector<1x128xf32>
    %105 = arith.addf %103, %104 : vector<1x128xf32>
    %106 = arith.truncf %105 : vector<1x128xf32> to vector<1x128xbf16>
    %c0_48 = arith.constant 0 : index
    %c0_49 = arith.constant 0 : index
    %107 = vector.load %arg9[%c0_48, %c0_49] : memref<128x128xbf16, #tpu.memory_space<vmem>>, vector<128x128xbf16>
    %cst_50 = arith.constant dense<0.000000e+00> : vector<1x128xf32>
    %108 = tpu.matmul %106, %107, %cst_50 {dimension_numbers = #tpu.dot_dimension_numbers<[1], [0], [0], [1], [0, 0, 1, 1], [], []>} : vector<1x128xbf16>, vector<128x128xbf16>, vector<1x128xf32> -> vector<1x128xf32>
    %c0_51 = arith.constant 0 : index
    %c0_52 = arith.constant 0 : index
    %109 = vector.load %arg10[%c0_51, %c0_52] : memref<1x128xf32, #tpu.memory_space<vmem>>, vector<1x128xf32>
    %110 = arith.addf %108, %109 : vector<1x128xf32>
    %cst_53 = arith.constant 0.176776692 : f32
    %111 = vector.broadcast %cst_53 : f32 to vector<1x128xf32>
    %112 = arith.mulf %110, %111 : vector<1x128xf32>
    %c0_54 = arith.constant 0 : index
    %c0_55 = arith.constant 0 : index
    %113 = vector.load %arg2[%c0_54, %c0_55] : memref<8x40xf32, #tpu.memory_space<vmem>>, vector<8x40xf32>
    %cst_56 = arith.constant 0.000000e+00 : f32
    %114 = vector.broadcast %cst_56 : f32 to vector<8x128xf32>
    %115 = vector.extract_strided_slice %112 {offsets = [0, 0], sizes = [1, 32], strides = [1, 1]} : vector<1x128xf32> to vector<1x32xf32>
    %116 = arith.truncf %115 : vector<1x32xf32> to vector<1x32xbf16>
    %117 = vector.extract_strided_slice %59 {offsets = [0, 0], sizes = [40, 32], strides = [1, 1]} : vector<40x128xf32> to vector<40x32xf32>
    %118 = arith.truncf %117 : vector<40x32xf32> to vector<40x32xbf16>
    %cst_57 = arith.constant dense<0.000000e+00> : vector<1x40xf32>
    %119 = tpu.matmul %116, %118, %cst_57 {dimension_numbers = #tpu.dot_dimension_numbers<[1], [1], [0], [0], [0, 0, 1, 0], [], []>} : vector<1x32xbf16>, vector<40x32xbf16>, vector<1x40xf32> -> vector<1x40xf32>
    %120 = vector.broadcast %119 : vector<1x40xf32> to vector<8x40xf32>
    %121 = arith.addf %120, %113 : vector<8x40xf32>
    %cst_58 = arith.constant dense<0xFF800000> : vector<8xf32>
    %122 = vector.multi_reduction <maximumf>, %121, %cst_58 [1] : vector<8x40xf32> to vector<8xf32>
    %123 = vector.shape_cast %122 : vector<8xf32> to vector<8x1xf32>
    %124 = vector.broadcast %123 : vector<8x1xf32> to vector<8x40xf32>
    %125 = arith.subf %121, %124 : vector<8x40xf32>
    %126 = math.exp %125 : vector<8x40xf32>
    %cst_59 = arith.constant dense<0.000000e+00> : vector<8xf32>
    %127 = vector.multi_reduction <add>, %126, %cst_59 [1] : vector<8x40xf32> to vector<8xf32>
    %128 = vector.shape_cast %127 : vector<8xf32> to vector<8x1xf32>
    %129 = tpu.reciprocal %128 {approx = true} : vector<8x1xf32> -> vector<8x1xf32>
    %130 = vector.broadcast %129 : vector<8x1xf32> to vector<8x40xf32>
    %131 = arith.mulf %126, %130 : vector<8x40xf32>
    %132 = arith.truncf %131 : vector<8x40xf32> to vector<8x40xbf16>
    %133 = vector.extract_strided_slice %60 {offsets = [0, 0], sizes = [40, 32], strides = [1, 1]} : vector<40x128xf32> to vector<40x32xf32>
    %134 = arith.truncf %133 : vector<40x32xf32> to vector<40x32xbf16>
    %cst_60 = arith.constant dense<0.000000e+00> : vector<8x32xf32>
    %135 = tpu.matmul %132, %134, %cst_60 {dimension_numbers = #tpu.dot_dimension_numbers<[1], [0], [0], [1], [0, 0, 1, 1], [], []>} : vector<8x40xbf16>, vector<40x32xbf16>, vector<8x32xf32> -> vector<8x32xf32>
    %136 = arith.truncf %135 : vector<8x32xf32> to vector<8x32xbf16>
    %c0_61 = arith.constant 0 : index
    %c0_62 = arith.constant 0 : index
    %137 = vector.load %arg13[%c0_61, %c0_62] : memref<128x128xbf16, #tpu.memory_space<vmem>>, vector<32x128xbf16>
    %cst_63 = arith.constant dense<0.000000e+00> : vector<8x128xf32>
    %138 = tpu.matmul %136, %137, %cst_63 {dimension_numbers = #tpu.dot_dimension_numbers<[1], [0], [0], [1], [0, 0, 1, 1], [], []>} : vector<8x32xbf16>, vector<32x128xbf16>, vector<8x128xf32> -> vector<8x128xf32>
    %139 = arith.addf %114, %138 : vector<8x128xf32>
    %140 = vector.extract_strided_slice %112 {offsets = [0, 32], sizes = [1, 32], strides = [1, 1]} : vector<1x128xf32> to vector<1x32xf32>
    %141 = arith.truncf %140 : vector<1x32xf32> to vector<1x32xbf16>
    %142 = vector.extract_strided_slice %59 {offsets = [0, 32], sizes = [40, 32], strides = [1, 1]} : vector<40x128xf32> to vector<40x32xf32>
    %143 = arith.truncf %142 : vector<40x32xf32> to vector<40x32xbf16>
    %cst_64 = arith.constant dense<0.000000e+00> : vector<1x40xf32>
    %144 = tpu.matmul %141, %143, %cst_64 {dimension_numbers = #tpu.dot_dimension_numbers<[1], [1], [0], [0], [0, 0, 1, 0], [], []>} : vector<1x32xbf16>, vector<40x32xbf16>, vector<1x40xf32> -> vector<1x40xf32>
    %145 = vector.broadcast %144 : vector<1x40xf32> to vector<8x40xf32>
    %146 = arith.addf %145, %113 : vector<8x40xf32>
    %cst_65 = arith.constant dense<0xFF800000> : vector<8xf32>
    %147 = vector.multi_reduction <maximumf>, %146, %cst_65 [1] : vector<8x40xf32> to vector<8xf32>
    %148 = vector.shape_cast %147 : vector<8xf32> to vector<8x1xf32>
    %149 = vector.broadcast %148 : vector<8x1xf32> to vector<8x40xf32>
    %150 = arith.subf %146, %149 : vector<8x40xf32>
    %151 = math.exp %150 : vector<8x40xf32>
    %cst_66 = arith.constant dense<0.000000e+00> : vector<8xf32>
    %152 = vector.multi_reduction <add>, %151, %cst_66 [1] : vector<8x40xf32> to vector<8xf32>
    %153 = vector.shape_cast %152 : vector<8xf32> to vector<8x1xf32>
    %154 = tpu.reciprocal %153 {approx = true} : vector<8x1xf32> -> vector<8x1xf32>
    %155 = vector.broadcast %154 : vector<8x1xf32> to vector<8x40xf32>
    %156 = arith.mulf %151, %155 : vector<8x40xf32>
    %157 = arith.truncf %156 : vector<8x40xf32> to vector<8x40xbf16>
    %158 = vector.extract_strided_slice %60 {offsets = [0, 32], sizes = [40, 32], strides = [1, 1]} : vector<40x128xf32> to vector<40x32xf32>
    %159 = arith.truncf %158 : vector<40x32xf32> to vector<40x32xbf16>
    %cst_67 = arith.constant dense<0.000000e+00> : vector<8x32xf32>
    %160 = tpu.matmul %157, %159, %cst_67 {dimension_numbers = #tpu.dot_dimension_numbers<[1], [0], [0], [1], [0, 0, 1, 1], [], []>} : vector<8x40xbf16>, vector<40x32xbf16>, vector<8x32xf32> -> vector<8x32xf32>
    %161 = arith.truncf %160 : vector<8x32xf32> to vector<8x32xbf16>
    %c32 = arith.constant 32 : index
    %c0_68 = arith.constant 0 : index
    %162 = vector.load %arg13[%c32, %c0_68] : memref<128x128xbf16, #tpu.memory_space<vmem>>, vector<32x128xbf16>
    %cst_69 = arith.constant dense<0.000000e+00> : vector<8x128xf32>
    %163 = tpu.matmul %161, %162, %cst_69 {dimension_numbers = #tpu.dot_dimension_numbers<[1], [0], [0], [1], [0, 0, 1, 1], [], []>} : vector<8x32xbf16>, vector<32x128xbf16>, vector<8x128xf32> -> vector<8x128xf32>
    %164 = arith.addf %139, %163 : vector<8x128xf32>
    %165 = vector.extract_strided_slice %112 {offsets = [0, 64], sizes = [1, 32], strides = [1, 1]} : vector<1x128xf32> to vector<1x32xf32>
    %166 = arith.truncf %165 : vector<1x32xf32> to vector<1x32xbf16>
    %167 = vector.extract_strided_slice %59 {offsets = [0, 64], sizes = [40, 32], strides = [1, 1]} : vector<40x128xf32> to vector<40x32xf32>
    %168 = arith.truncf %167 : vector<40x32xf32> to vector<40x32xbf16>
    %cst_70 = arith.constant dense<0.000000e+00> : vector<1x40xf32>
    %169 = tpu.matmul %166, %168, %cst_70 {dimension_numbers = #tpu.dot_dimension_numbers<[1], [1], [0], [0], [0, 0, 1, 0], [], []>} : vector<1x32xbf16>, vector<40x32xbf16>, vector<1x40xf32> -> vector<1x40xf32>
    %170 = vector.broadcast %169 : vector<1x40xf32> to vector<8x40xf32>
    %171 = arith.addf %170, %113 : vector<8x40xf32>
    %cst_71 = arith.constant dense<0xFF800000> : vector<8xf32>
    %172 = vector.multi_reduction <maximumf>, %171, %cst_71 [1] : vector<8x40xf32> to vector<8xf32>
    %173 = vector.shape_cast %172 : vector<8xf32> to vector<8x1xf32>
    %174 = vector.broadcast %173 : vector<8x1xf32> to vector<8x40xf32>
    %175 = arith.subf %171, %174 : vector<8x40xf32>
    %176 = math.exp %175 : vector<8x40xf32>
    %cst_72 = arith.constant dense<0.000000e+00> : vector<8xf32>
    %177 = vector.multi_reduction <add>, %176, %cst_72 [1] : vector<8x40xf32> to vector<8xf32>
    %178 = vector.shape_cast %177 : vector<8xf32> to vector<8x1xf32>
    %179 = tpu.reciprocal %178 {approx = true} : vector<8x1xf32> -> vector<8x1xf32>
    %180 = vector.broadcast %179 : vector<8x1xf32> to vector<8x40xf32>
    %181 = arith.mulf %176, %180 : vector<8x40xf32>
    %182 = arith.truncf %181 : vector<8x40xf32> to vector<8x40xbf16>
    %183 = vector.extract_strided_slice %60 {offsets = [0, 64], sizes = [40, 32], strides = [1, 1]} : vector<40x128xf32> to vector<40x32xf32>
    %184 = arith.truncf %183 : vector<40x32xf32> to vector<40x32xbf16>
    %cst_73 = arith.constant dense<0.000000e+00> : vector<8x32xf32>
    %185 = tpu.matmul %182, %184, %cst_73 {dimension_numbers = #tpu.dot_dimension_numbers<[1], [0], [0], [1], [0, 0, 1, 1], [], []>} : vector<8x40xbf16>, vector<40x32xbf16>, vector<8x32xf32> -> vector<8x32xf32>
    %186 = arith.truncf %185 : vector<8x32xf32> to vector<8x32xbf16>
    %c64 = arith.constant 64 : index
    %c0_74 = arith.constant 0 : index
    %187 = vector.load %arg13[%c64, %c0_74] : memref<128x128xbf16, #tpu.memory_space<vmem>>, vector<32x128xbf16>
    %cst_75 = arith.constant dense<0.000000e+00> : vector<8x128xf32>
    %188 = tpu.matmul %186, %187, %cst_75 {dimension_numbers = #tpu.dot_dimension_numbers<[1], [0], [0], [1], [0, 0, 1, 1], [], []>} : vector<8x32xbf16>, vector<32x128xbf16>, vector<8x128xf32> -> vector<8x128xf32>
    %189 = arith.addf %164, %188 : vector<8x128xf32>
    %190 = vector.extract_strided_slice %112 {offsets = [0, 96], sizes = [1, 32], strides = [1, 1]} : vector<1x128xf32> to vector<1x32xf32>
    %191 = arith.truncf %190 : vector<1x32xf32> to vector<1x32xbf16>
    %192 = vector.extract_strided_slice %59 {offsets = [0, 96], sizes = [40, 32], strides = [1, 1]} : vector<40x128xf32> to vector<40x32xf32>
    %193 = arith.truncf %192 : vector<40x32xf32> to vector<40x32xbf16>
    %cst_76 = arith.constant dense<0.000000e+00> : vector<1x40xf32>
    %194 = tpu.matmul %191, %193, %cst_76 {dimension_numbers = #tpu.dot_dimension_numbers<[1], [1], [0], [0], [0, 0, 1, 0], [], []>} : vector<1x32xbf16>, vector<40x32xbf16>, vector<1x40xf32> -> vector<1x40xf32>
    %195 = vector.broadcast %194 : vector<1x40xf32> to vector<8x40xf32>
    %196 = arith.addf %195, %113 : vector<8x40xf32>
    %cst_77 = arith.constant dense<0xFF800000> : vector<8xf32>
    %197 = vector.multi_reduction <maximumf>, %196, %cst_77 [1] : vector<8x40xf32> to vector<8xf32>
    %198 = vector.shape_cast %197 : vector<8xf32> to vector<8x1xf32>
    %199 = vector.broadcast %198 : vector<8x1xf32> to vector<8x40xf32>
    %200 = arith.subf %196, %199 : vector<8x40xf32>
    %201 = math.exp %200 : vector<8x40xf32>
    %cst_78 = arith.constant dense<0.000000e+00> : vector<8xf32>
    %202 = vector.multi_reduction <add>, %201, %cst_78 [1] : vector<8x40xf32> to vector<8xf32>
    %203 = vector.shape_cast %202 : vector<8xf32> to vector<8x1xf32>
    %204 = tpu.reciprocal %203 {approx = true} : vector<8x1xf32> -> vector<8x1xf32>
    %205 = vector.broadcast %204 : vector<8x1xf32> to vector<8x40xf32>
    %206 = arith.mulf %201, %205 : vector<8x40xf32>
    %207 = arith.truncf %206 : vector<8x40xf32> to vector<8x40xbf16>
    %208 = vector.extract_strided_slice %60 {offsets = [0, 96], sizes = [40, 32], strides = [1, 1]} : vector<40x128xf32> to vector<40x32xf32>
    %209 = arith.truncf %208 : vector<40x32xf32> to vector<40x32xbf16>
    %cst_79 = arith.constant dense<0.000000e+00> : vector<8x32xf32>
    %210 = tpu.matmul %207, %209, %cst_79 {dimension_numbers = #tpu.dot_dimension_numbers<[1], [0], [0], [1], [0, 0, 1, 1], [], []>} : vector<8x40xbf16>, vector<40x32xbf16>, vector<8x32xf32> -> vector<8x32xf32>
    %211 = arith.truncf %210 : vector<8x32xf32> to vector<8x32xbf16>
    %c96 = arith.constant 96 : index
    %c0_80 = arith.constant 0 : index
    %212 = vector.load %arg13[%c96, %c0_80] : memref<128x128xbf16, #tpu.memory_space<vmem>>, vector<32x128xbf16>
    %cst_81 = arith.constant dense<0.000000e+00> : vector<8x128xf32>
    %213 = tpu.matmul %211, %212, %cst_81 {dimension_numbers = #tpu.dot_dimension_numbers<[1], [0], [0], [1], [0, 0, 1, 1], [], []>} : vector<8x32xbf16>, vector<32x128xbf16>, vector<8x128xf32> -> vector<8x128xf32>
    %214 = arith.addf %189, %213 : vector<8x128xf32>
    %215 = vector.broadcast %83 : vector<1x128xf32> to vector<8x128xf32>
    %216 = arith.addf %215, %214 : vector<8x128xf32>
    %c0_82 = arith.constant 0 : index
    %c0_83 = arith.constant 0 : index
    %217 = vector.load %arg14[%c0_82, %c0_83] : memref<1x128xf32, #tpu.memory_space<vmem>>, vector<1x128xf32>
    %218 = vector.broadcast %217 : vector<1x128xf32> to vector<8x128xf32>
    %219 = arith.addf %216, %218 : vector<8x128xf32>
    %cst_84 = arith.constant dense<0.000000e+00> : vector<8xf32>
    %220 = vector.multi_reduction <add>, %219, %cst_84 [1] : vector<8x128xf32> to vector<8xf32>
    %221 = vector.shape_cast %220 : vector<8xf32> to vector<8x1xf32>
    %cst_85 = arith.constant 1.280000e+02 : f32
    %222 = vector.broadcast %cst_85 : f32 to vector<8x1xf32>
    %223 = arith.divf %221, %222 : vector<8x1xf32>
    %224 = vector.broadcast %223 : vector<8x1xf32> to vector<8x128xf32>
    %225 = arith.subf %219, %224 : vector<8x128xf32>
    %226 = arith.mulf %225, %225 : vector<8x128xf32>
    %cst_86 = arith.constant dense<0.000000e+00> : vector<8xf32>
    %227 = vector.multi_reduction <add>, %226, %cst_86 [1] : vector<8x128xf32> to vector<8xf32>
    %228 = vector.shape_cast %227 : vector<8xf32> to vector<8x1xf32>
    %cst_87 = arith.constant 1.280000e+02 : f32
    %229 = vector.broadcast %cst_87 : f32 to vector<8x1xf32>
    %230 = arith.divf %228, %229 : vector<8x1xf32>
    %231 = vector.broadcast %223 : vector<8x1xf32> to vector<8x128xf32>
    %232 = arith.subf %219, %231 : vector<8x128xf32>
    %cst_88 = arith.constant 9.99999974E-6 : f32
    %233 = vector.broadcast %cst_88 : f32 to vector<8x1xf32>
    %234 = arith.addf %230, %233 : vector<8x1xf32>
    %235 = math.rsqrt %234 : vector<8x1xf32>
    %236 = vector.broadcast %235 : vector<8x1xf32> to vector<8x128xf32>
    %237 = arith.mulf %232, %236 : vector<8x128xf32>
    %c0_89 = arith.constant 0 : index
    %c0_90 = arith.constant 0 : index
    %238 = vector.load %arg15[%c0_89, %c0_90] : memref<1x128xf32, #tpu.memory_space<vmem>>, vector<1x128xf32>
    %239 = vector.broadcast %238 : vector<1x128xf32> to vector<8x128xf32>
    %240 = arith.mulf %237, %239 : vector<8x128xf32>
    %c0_91 = arith.constant 0 : index
    %c0_92 = arith.constant 0 : index
    %241 = vector.load %arg16[%c0_91, %c0_92] : memref<1x128xf32, #tpu.memory_space<vmem>>, vector<1x128xf32>
    %242 = vector.broadcast %241 : vector<1x128xf32> to vector<8x128xf32>
    %243 = arith.addf %240, %242 : vector<8x128xf32>
    %244 = arith.truncf %243 : vector<8x128xf32> to vector<8x128xbf16>
    %c0_93 = arith.constant 0 : index
    %c0_94 = arith.constant 0 : index
    %245 = vector.load %arg17[%c0_93, %c0_94] : memref<128x512xbf16, #tpu.memory_space<vmem>>, vector<128x512xbf16>
    %cst_95 = arith.constant dense<0.000000e+00> : vector<8x512xf32>
    %246 = tpu.matmul %244, %245, %cst_95 {dimension_numbers = #tpu.dot_dimension_numbers<[1], [0], [0], [1], [0, 0, 1, 1], [], []>} : vector<8x128xbf16>, vector<128x512xbf16>, vector<8x512xf32> -> vector<8x512xf32>
    %c0_96 = arith.constant 0 : index
    %c0_97 = arith.constant 0 : index
    %247 = vector.load %arg18[%c0_96, %c0_97] : memref<1x512xf32, #tpu.memory_space<vmem>>, vector<1x512xf32>
    %248 = vector.broadcast %247 : vector<1x512xf32> to vector<8x512xf32>
    %249 = arith.addf %246, %248 : vector<8x512xf32>
    %cst_98 = arith.constant 1.702000e+00 : f32
    %250 = vector.broadcast %cst_98 : f32 to vector<8x512xf32>
    %251 = arith.mulf %250, %249 : vector<8x512xf32>
    %252 = arith.negf %251 : vector<8x512xf32>
    %253 = math.exp %252 : vector<8x512xf32>
    %cst_99 = arith.constant 1.000000e+00 : f32
    %254 = vector.broadcast %cst_99 : f32 to vector<8x512xf32>
    %255 = arith.addf %254, %253 : vector<8x512xf32>
    %256 = arith.divf %254, %255 : vector<8x512xf32>
    %257 = arith.mulf %249, %256 : vector<8x512xf32>
    %258 = arith.truncf %257 : vector<8x512xf32> to vector<8x512xbf16>
    %c0_100 = arith.constant 0 : index
    %c0_101 = arith.constant 0 : index
    %259 = vector.load %arg19[%c0_100, %c0_101] : memref<512x128xbf16, #tpu.memory_space<vmem>>, vector<512x128xbf16>
    %cst_102 = arith.constant dense<0.000000e+00> : vector<8x128xf32>
    %260 = tpu.matmul %258, %259, %cst_102 {dimension_numbers = #tpu.dot_dimension_numbers<[1], [0], [0], [1], [0, 0, 1, 1], [], []>} : vector<8x512xbf16>, vector<512x128xbf16>, vector<8x128xf32> -> vector<8x128xf32>
    %c0_103 = arith.constant 0 : index
    %c0_104 = arith.constant 0 : index
    %261 = vector.load %arg20[%c0_103, %c0_104] : memref<1x128xf32, #tpu.memory_space<vmem>>, vector<1x128xf32>
    %262 = vector.broadcast %261 : vector<1x128xf32> to vector<8x128xf32>
    %263 = arith.addf %260, %262 : vector<8x128xf32>
    %264 = arith.addf %219, %263 : vector<8x128xf32>
    %cst_105 = arith.constant dense<0.000000e+00> : vector<8xf32>
    %265 = vector.multi_reduction <add>, %264, %cst_105 [1] : vector<8x128xf32> to vector<8xf32>
    %266 = vector.shape_cast %265 : vector<8xf32> to vector<8x1xf32>
    %cst_106 = arith.constant 1.280000e+02 : f32
    %267 = vector.broadcast %cst_106 : f32 to vector<8x1xf32>
    %268 = arith.divf %266, %267 : vector<8x1xf32>
    %269 = vector.broadcast %268 : vector<8x1xf32> to vector<8x128xf32>
    %270 = arith.subf %264, %269 : vector<8x128xf32>
    %271 = arith.mulf %270, %270 : vector<8x128xf32>
    %cst_107 = arith.constant dense<0.000000e+00> : vector<8xf32>
    %272 = vector.multi_reduction <add>, %271, %cst_107 [1] : vector<8x128xf32> to vector<8xf32>
    %273 = vector.shape_cast %272 : vector<8xf32> to vector<8x1xf32>
    %cst_108 = arith.constant 1.280000e+02 : f32
    %274 = vector.broadcast %cst_108 : f32 to vector<8x1xf32>
    %275 = arith.divf %273, %274 : vector<8x1xf32>
    %276 = vector.broadcast %268 : vector<8x1xf32> to vector<8x128xf32>
    %277 = arith.subf %264, %276 : vector<8x128xf32>
    %cst_109 = arith.constant 9.99999974E-6 : f32
    %278 = vector.broadcast %cst_109 : f32 to vector<8x1xf32>
    %279 = arith.addf %275, %278 : vector<8x1xf32>
    %280 = math.rsqrt %279 : vector<8x1xf32>
    %281 = vector.broadcast %280 : vector<8x1xf32> to vector<8x128xf32>
    %282 = arith.mulf %277, %281 : vector<8x128xf32>
    %c0_110 = arith.constant 0 : index
    %c0_111 = arith.constant 0 : index
    %283 = vector.load %arg21[%c0_110, %c0_111] : memref<1x128xf32, #tpu.memory_space<vmem>>, vector<1x128xf32>
    %284 = vector.broadcast %283 : vector<1x128xf32> to vector<8x128xf32>
    %285 = arith.mulf %282, %284 : vector<8x128xf32>
    %c0_112 = arith.constant 0 : index
    %c0_113 = arith.constant 0 : index
    %286 = vector.load %arg22[%c0_112, %c0_113] : memref<1x128xf32, #tpu.memory_space<vmem>>, vector<1x128xf32>
    %287 = vector.broadcast %286 : vector<1x128xf32> to vector<8x128xf32>
    %288 = arith.addf %285, %287 : vector<8x128xf32>
    %289 = arith.truncf %288 : vector<8x128xf32> to vector<8x128xbf16>
    %c0_114 = arith.constant 0 : index
    %c0_115 = arith.constant 0 : index
    %290 = vector.load %arg23[%c0_114, %c0_115] : memref<128x128xbf16, #tpu.memory_space<vmem>>, vector<128x128xbf16>
    %cst_116 = arith.constant dense<0.000000e+00> : vector<8x128xf32>
    %291 = tpu.matmul %289, %290, %cst_116 {dimension_numbers = #tpu.dot_dimension_numbers<[1], [0], [0], [1], [0, 0, 1, 1], [], []>} : vector<8x128xbf16>, vector<128x128xbf16>, vector<8x128xf32> -> vector<8x128xf32>
    %292 = arith.mulf %291, %291 : vector<8x128xf32>
    %cst_117 = arith.constant dense<0.000000e+00> : vector<8xf32>
    %293 = vector.multi_reduction <add>, %292, %cst_117 [1] : vector<8x128xf32> to vector<8xf32>
    %294 = vector.shape_cast %293 : vector<8xf32> to vector<8x1xf32>
    %cst_118 = arith.constant 9.99999996E-13 : f32
    %295 = vector.broadcast %cst_118 : f32 to vector<8x1xf32>
    %296 = arith.addf %294, %295 : vector<8x1xf32>
    %297 = math.rsqrt %296 : vector<8x1xf32>
    %298 = vector.broadcast %297 : vector<8x1xf32> to vector<8x128xf32>
    %299 = arith.mulf %291, %298 : vector<8x128xf32>
    %300 = arith.truncf %299 : vector<8x128xf32> to vector<8x128xbf16>
    %c0_119 = arith.constant 0 : index
    %c0_120 = arith.constant 0 : index
    %301 = vector.load %arg24[%c0_119, %c0_120] : memref<128x128xbf16, #tpu.memory_space<vmem>>, vector<128x128xbf16>
    %cst_121 = arith.constant dense<0.000000e+00> : vector<8x128xf32>
    %302 = tpu.matmul %300, %301, %cst_121 {dimension_numbers = #tpu.dot_dimension_numbers<[1], [1], [0], [0], [0, 0, 1, 0], [], []>} : vector<8x128xbf16>, vector<128x128xbf16>, vector<8x128xf32> -> vector<8x128xf32>
    %c0_122 = arith.constant 0 : index
    %c0_123 = arith.constant 0 : index
    %303 = vector.load %arg25[%c0_122, %c0_123] : memref<8x128xf32, #tpu.memory_space<vmem>>, vector<8x128xf32>
    tpu.vector_store %arg25[%c0_122, %c0_123], %302 {strides = array<i32>} : memref<8x128xf32, #tpu.memory_space<vmem>>, vector<8x128xf32>,
    return
  }
  func.func @transform_0(%arg0: i32) -> (i32, i32) {
    %c0_i32 = arith.constant 0 : i32
    %c0_i32_0 = arith.constant 0 : i32
    return %arg0, %c0_i32 : i32, i32
  }
  func.func @transform_1(%arg0: i32) -> (i32, i32) {
    %c0_i32 = arith.constant 0 : i32
    %c0_i32_0 = arith.constant 0 : i32
    %c0_i32_1 = arith.constant 0 : i32
    return %c0_i32, %c0_i32_0 : i32, i32
  }
  func.func @transform_2(%arg0: i32) -> (i32, i32) {
    %c0_i32 = arith.constant 0 : i32
    %c0_i32_0 = arith.constant 0 : i32
    %c0_i32_1 = arith.constant 0 : i32
    return %c0_i32, %c0_i32_0 : i32, i32
  }
  func.func @transform_3(%arg0: i32) -> (i32, i32) {
    %c0_i32 = arith.constant 0 : i32
    %c0_i32_0 = arith.constant 0 : i32
    %c0_i32_1 = arith.constant 0 : i32
    return %c0_i32, %c0_i32_0 : i32, i32
  }
  func.func @transform_4(%arg0: i32) -> (i32, i32) {
    %c0_i32 = arith.constant 0 : i32
    %c0_i32_0 = arith.constant 0 : i32
    %c0_i32_1 = arith.constant 0 : i32
    return %c0_i32, %c0_i32_0 : i32, i32
  }
  func.func @transform_5(%arg0: i32) -> (i32, i32) {
    %c0_i32 = arith.constant 0 : i32
    %c0_i32_0 = arith.constant 0 : i32
    %c0_i32_1 = arith.constant 0 : i32
    return %c0_i32, %c0_i32_0 : i32, i32
  }
  func.func @transform_6(%arg0: i32) -> (i32, i32) {
    %c0_i32 = arith.constant 0 : i32
    %c0_i32_0 = arith.constant 0 : i32
    %c0_i32_1 = arith.constant 0 : i32
    return %c0_i32, %c0_i32_0 : i32, i32
  }
  func.func @transform_7(%arg0: i32) -> (i32, i32) {
    %c0_i32 = arith.constant 0 : i32
    %c0_i32_0 = arith.constant 0 : i32
    %c0_i32_1 = arith.constant 0 : i32
    return %c0_i32, %c0_i32_0 : i32, i32
  }
  func.func @transform_8(%arg0: i32) -> (i32, i32) {
    %c0_i32 = arith.constant 0 : i32
    %c0_i32_0 = arith.constant 0 : i32
    %c0_i32_1 = arith.constant 0 : i32
    return %c0_i32, %c0_i32_0 : i32, i32
  }
  func.func @transform_9(%arg0: i32) -> (i32, i32) {
    %c0_i32 = arith.constant 0 : i32
    %c0_i32_0 = arith.constant 0 : i32
    %c0_i32_1 = arith.constant 0 : i32
    return %c0_i32, %c0_i32_0 : i32, i32
  }
  func.func @transform_10(%arg0: i32) -> (i32, i32) {
    %c0_i32 = arith.constant 0 : i32
    %c0_i32_0 = arith.constant 0 : i32
    %c0_i32_1 = arith.constant 0 : i32
    return %c0_i32, %c0_i32_0 : i32, i32
  }
  func.func @transform_11(%arg0: i32) -> (i32, i32) {
    %c0_i32 = arith.constant 0 : i32
    %c0_i32_0 = arith.constant 0 : i32
    %c0_i32_1 = arith.constant 0 : i32
    return %c0_i32, %c0_i32_0 : i32, i32
  }
  func.func @transform_12(%arg0: i32) -> (i32, i32) {
    %c0_i32 = arith.constant 0 : i32
    %c0_i32_0 = arith.constant 0 : i32
    %c0_i32_1 = arith.constant 0 : i32
    return %c0_i32, %c0_i32_0 : i32, i32
  }
  func.func @transform_13(%arg0: i32) -> (i32, i32) {
    %c0_i32 = arith.constant 0 : i32
    %c0_i32_0 = arith.constant 0 : i32
    %c0_i32_1 = arith.constant 0 : i32
    return %c0_i32, %c0_i32_0 : i32, i32
  }
  func.func @transform_14(%arg0: i32) -> (i32, i32) {
    %c0_i32 = arith.constant 0 : i32
    %c0_i32_0 = arith.constant 0 : i32
    %c0_i32_1 = arith.constant 0 : i32
    return %c0_i32, %c0_i32_0 : i32, i32
  }
  func.func @transform_15(%arg0: i32) -> (i32, i32) {
    %c0_i32 = arith.constant 0 : i32
    %c0_i32_0 = arith.constant 0 : i32
    %c0_i32_1 = arith.constant 0 : i32
    return %c0_i32, %c0_i32_0 : i32, i32
  }
  func.func @transform_16(%arg0: i32) -> (i32, i32) {
    %c0_i32 = arith.constant 0 : i32
    %c0_i32_0 = arith.constant 0 : i32
    %c0_i32_1 = arith.constant 0 : i32
    return %c0_i32, %c0_i32_0 : i32, i32
  }
  func.func @transform_17(%arg0: i32) -> (i32, i32) {
    %c0_i32 = arith.constant 0 : i32
    %c0_i32_0 = arith.constant 0 : i32
    %c0_i32_1 = arith.constant 0 : i32
    return %c0_i32, %c0_i32_0 : i32, i32
  }
  func.func @transform_18(%arg0: i32) -> (i32, i32) {
    %c0_i32 = arith.constant 0 : i32
    %c0_i32_0 = arith.constant 0 : i32
    %c0_i32_1 = arith.constant 0 : i32
    return %c0_i32, %c0_i32_0 : i32, i32
  }
  func.func @transform_19(%arg0: i32) -> (i32, i32) {
    %c0_i32 = arith.constant 0 : i32
    %c0_i32_0 = arith.constant 0 : i32
    %c0_i32_1 = arith.constant 0 : i32
    return %c0_i32, %c0_i32_0 : i32, i32
  }
  func.func @transform_20(%arg0: i32) -> (i32, i32) {
    %c0_i32 = arith.constant 0 : i32
    %c0_i32_0 = arith.constant 0 : i32
    %c0_i32_1 = arith.constant 0 : i32
    return %c0_i32, %c0_i32_0 : i32, i32
  }
  func.func @transform_21(%arg0: i32) -> (i32, i32) {
    %c0_i32 = arith.constant 0 : i32
    %c0_i32_0 = arith.constant 0 : i32
    %c0_i32_1 = arith.constant 0 : i32
    return %c0_i32, %c0_i32_0 : i32, i32
  }
  func.func @transform_22(%arg0: i32) -> (i32, i32) {
    %c0_i32 = arith.constant 0 : i32
    %c0_i32_0 = arith.constant 0 : i32
    %c0_i32_1 = arith.constant 0 : i32
    return %c0_i32, %c0_i32_0 : i32, i32
  }
  func.func @transform_23(%arg0: i32) -> (i32, i32) {
    %c0_i32 = arith.constant 0 : i32
    %c0_i32_0 = arith.constant 0 : i32
    %c0_i32_1 = arith.constant 0 : i32
    return %c0_i32, %c0_i32_0 : i32, i32
  }
  func.func @transform_24(%arg0: i32) -> (i32, i32) {
    %c0_i32 = arith.constant 0 : i32
    %c0_i32_0 = arith.constant 0 : i32
    return %arg0, %c0_i32 : i32, i32
  }
}

</mosaic_0001>

<llo_original>
// kernel: tpu_custom_call.1
$region0: #{tpu_custom_call.1}
  #allocation0 [shape = 'u32[]', space=smem, size = 0x4, offset = 0x4, fixed_abs, tag = 'smem constant byte address 0x4 - core index']
  #allocation1 [shape = 'u32[144,128]{1,0:T(1,128)}', space=vmem, size = 0x12000, scoped, tag = 'internal scratch']
  %s0 = inlined_call_operand.hbm [shape: bf16[40,768], index: 0, kind: input, shape index: {}]
  %s1 = inlined_call_operand.hbm [shape: f32[8,40], index: 1, kind: input, shape index: {}]
  %s2 = inlined_call_operand.hbm [shape: f32[40,128], index: 2, kind: input, shape index: {}]
  %s3 = inlined_call_operand.hbm [shape: bf16[768,128], index: 3, kind: input, shape index: {}]
  %s4 = inlined_call_operand.vmem [shape: f32[1,128], index: 4, kind: input, shape index: {}]
  %s5 = inlined_call_operand.vmem [shape: f32[1,128], index: 5, kind: input, shape index: {}]
  %s6 = inlined_call_operand.vmem [shape: f32[1,128], index: 6, kind: input, shape index: {}]
  %s7 = inlined_call_operand.vmem [shape: f32[1,128], index: 7, kind: input, shape index: {}]
  %s8 = inlined_call_operand.hbm [shape: bf16[128,128], index: 8, kind: input, shape index: {}]
  %s9 = inlined_call_operand.vmem [shape: f32[1,128], index: 9, kind: input, shape index: {}]
  %s10 = inlined_call_operand.hbm [shape: bf16[128,256], index: 10, kind: input, shape index: {}]
  %s11 = inlined_call_operand.vmem [shape: f32[1,256], index: 11, kind: input, shape index: {}]
  %s12 = inlined_call_operand.hbm [shape: bf16[128,128], index: 12, kind: input, shape index: {}]
  %s13 = inlined_call_operand.vmem [shape: f32[1,128], index: 13, kind: input, shape index: {}]
  %s14 = inlined_call_operand.vmem [shape: f32[1,128], index: 14, kind: input, shape index: {}]
  %s15 = inlined_call_operand.vmem [shape: f32[1,128], index: 15, kind: input, shape index: {}]
  %s16 = inlined_call_operand.hbm [shape: bf16[128,512], index: 16, kind: input, shape index: {}]
  %s17 = inlined_call_operand.vmem [shape: f32[1,512], index: 17, kind: input, shape index: {}]
  %s18 = inlined_call_operand.hbm [shape: bf16[512,128], index: 18, kind: input, shape index: {}]
  %s19 = inlined_call_operand.vmem [shape: f32[1,128], index: 19, kind: input, shape index: {}]
  %s20 = inlined_call_operand.vmem [shape: f32[1,128], index: 20, kind: input, shape index: {}]
  %s21 = inlined_call_operand.vmem [shape: f32[1,128], index: 21, kind: input, shape index: {}]
  %s22 = inlined_call_operand.vmem [shape: bf16[128,128], index: 22, kind: input, shape index: {}]
  %s23 = inlined_call_operand.hbm [shape: bf16[128,128], index: 23, kind: input, shape index: {}]
  %s24 = inlined_call_operand.hbm [shape: f32[8,128], index: 24, kind: output, shape index: {}]
  %s25 = sld [smem:[#allocation0]]
  $region146: #{tpu_custom_call.1} parent=0
    _
  %s27 = ssub.s32 1, %s25
  %s28 = scalar_select 0, %s27, %s25
  $region1: #{tpu_custom_call.1} parent=0
    #allocation2 [shape = 'u8[61440]{0}', space=vmem, size = 0xf000, scoped, tag = 'input window, operand 0, single buffered']
    #allocation3 [shape = 's32[1]{0}', space=sflag, size = 0x4, scoped, tag = 'scoped memory for tpu_custom_call.1']
    #allocation4 [shape = 's32[1]{0}', space=sflag, size = 0x4, scoped, tag = 'scoped memory for tpu_custom_call.1']
    #allocation5 [shape = 'u8[4096]{0}', space=vmem, size = 0x1000, scoped, tag = 'input window, operand 1, single buffered']
    #allocation6 [shape = 's32[1]{0}', space=sflag, size = 0x4, scoped, tag = 'scoped memory for tpu_custom_call.1']
    #allocation7 [shape = 'u8[20480]{0}', space=vmem, size = 0x5000, scoped, tag = 'input window, operand 2, single buffered']
    #allocation8 [shape = 'u8[196608]{0}', space=vmem, size = 0x30000, scoped, tag = 'input window, operand 3, single buffered']
    #allocation9 [shape = 's32[1]{0}', space=sflag, size = 0x4, scoped, tag = 'scoped memory for tpu_custom_call.1']
    #allocation10 [shape = 'u8[32768]{0}', space=vmem, size = 0x8000, scoped, tag = 'input window, operand 8, single buffered']
    #allocation11 [shape = 'u8[65536]{0}', space=vmem, size = 0x10000, scoped, tag = 'input window, operand 10, single buffered']
    #allocation12 [shape = 's32[1]{0}', space=sflag, size = 0x4, scoped, tag = 'scoped memory for tpu_custom_call.1']
    #allocation13 [shape = 'u8[32768]{0}', space=vmem, size = 0x8000, scoped, tag = 'input window, operand 12, single buffered']
    #allocation14 [shape = 'u8[131072]{0}', space=vmem, size = 0x20000, scoped, tag = 'input window, operand 16, single buffered']
    #allocation15 [shape = 's32[1]{0}', space=sflag, size = 0x4, scoped, tag = 'scoped memory for tpu_custom_call.1']
    #allocation16 [shape = 'u8[131072]{0}', space=vmem, size = 0x20000, scoped, tag = 'input window, operand 18, single buffered']
    #allocation17 [shape = 'u8[32768]{0}', space=vmem, size = 0x8000, scoped, tag = 'input window, operand 23, single buffered']
    #allocation18 [shape = 's32[1]{0}', space=sflag, size = 0x4, scoped, tag = 'scoped memory for tpu_custom_call.1']
    #allocation19 [shape = 'u8[4096]{0}', space=vmem, size = 0x1000, scoped, tag = 'output window, operand 0, single buffered']
    %29 = vsyncpa [#allocation3], 0
    %30 = vsyncpa [#allocation6], 0
    %31 = vsyncpa [#allocation9], 0
    %32 = vsyncpa [#allocation12], 0
    %33 = vsyncpa [#allocation15], 0
    %34 = vsyncpa [#allocation18], 0
    %35 = vsyncpa [#allocation4], 0
    // Predicated region
    $region2: #{tpu_custom_call.1} parent=1 // pred_check
      _
    $region3: #{tpu_custom_call.1} parent=1 // pred_check_branch
      %37 = sbr.rel (0) target = $region5
    $region4: #{tpu_custom_call.1} parent=1 // pred_region
      %s39 = ssub.s32 1920, 1920
      %40 = vsyncadd [#allocation3], %s39
      %s41 = sshll.u32 [#allocation2], 4
      %s42 = int_to_ptr.vmem [resolvable:$true] %s41
      %47 = dma.hbm_to_vmem [thread:$0]  %s0, 1920, %s42, [#allocation3], 384, 384, 24
    $region5: #{tpu_custom_call.1} parent=1 // pred_fallthru
      _
    // Predicated region
    $region6: #{tpu_custom_call.1} parent=1 // pred_check
      _
    $region7: #{tpu_custom_call.1} parent=1 // pred_check_branch
      %49 = sbr.rel (0) target = $region9
    $region8: #{tpu_custom_call.1} parent=1 // pred_region
      %s51 = ssub.s32 128, 128
      %52 = vsyncadd [#allocation6], %s51
      %s54 = sshll.u32 [#allocation5], 4
      %s55 = int_to_ptr.vmem [resolvable:$true] %s54
      %57 = dma.hbm_to_vmem [thread:$0]  %s1, 128, %s55, [#allocation6]
    $region9: #{tpu_custom_call.1} parent=1 // pred_fallthru
      _
    // Predicated region
    $region10: #{tpu_custom_call.1} parent=1 // pred_check
      _
    $region11: #{tpu_custom_call.1} parent=1 // pred_check_branch
      %59 = sbr.rel (0) target = $region13
    $region12: #{tpu_custom_call.1} parent=1 // pred_region
      %s61 = ssub.s32 640, 640
      %62 = vsyncadd [#allocation6], %s61
      %s63 = sshll.u32 [#allocation7], 4
      %s64 = int_to_ptr.vmem [resolvable:$true] %s63
      %69 = dma.hbm_to_vmem [thread:$0]  %s2, 640, %s64, [#allocation6], 128, 128, 8
    $region13: #{tpu_custom_call.1} parent=1 // pred_fallthru
      _
    // Predicated region
    $region14: #{tpu_custom_call.1} parent=1 // pred_check
      _
    $region15: #{tpu_custom_call.1} parent=1 // pred_check_branch
      %71 = sbr.rel (0) target = $region17
    $region16: #{tpu_custom_call.1} parent=1 // pred_region
      %s73 = ssub.s32 6144, 6144
      %74 = vsyncadd [#allocation9], %s73
      %s75 = sshll.u32 [#allocation8], 4
      %s76 = int_to_ptr.vmem [resolvable:$true] %s75
      %81 = dma.hbm_to_vmem [thread:$0]  %s3, 6144, %s76, [#allocation9], 64, 64, 4
    $region17: #{tpu_custom_call.1} parent=1 // pred_fallthru
      _
    // Predicated region
    $region18: #{tpu_custom_call.1} parent=1 // pred_check
      _
    $region19: #{tpu_custom_call.1} parent=1 // pred_check_branch
      %83 = sbr.rel (0) target = $region21
    $region20: #{tpu_custom_call.1} parent=1 // pred_region
      _
    $region21: #{tpu_custom_call.1} parent=1 // pred_fallthru
      _
    // Predicated region
    $region22: #{tpu_custom_call.1} parent=1 // pred_check
      _
    $region23: #{tpu_custom_call.1} parent=1 // pred_check_branch
      %85 = sbr.rel (0) target = $region25
    $region24: #{tpu_custom_call.1} parent=1 // pred_region
      _
    $region25: #{tpu_custom_call.1} parent=1 // pred_fallthru
      _
    // Predicated region
    $region26: #{tpu_custom_call.1} parent=1 // pred_check
      _
    $region27: #{tpu_custom_call.1} parent=1 // pred_check_branch
      %87 = sbr.rel (0) target = $region29
    $region28: #{tpu_custom_call.1} parent=1 // pred_region
      _
    $region29: #{tpu_custom_call.1} parent=1 // pred_fallthru
      _
    // Predicated region
    $region30: #{tpu_custom_call.1} parent=1 // pred_check
      _
    $region31: #{tpu_custom_call.1} parent=1 // pred_check_branch
      %89 = sbr.rel (0) target = $region33
    $region32: #{tpu_custom_call.1} parent=1 // pred_region
      _
    $region33: #{tpu_custom_call.1} parent=1 // pred_fallthru
      _
    // Predicated region
    $region34: #{tpu_custom_call.1} parent=1 // pred_check
      _
    $region35: #{tpu_custom_call.1} parent=1 // pred_check_branch
      %91 = sbr.rel (0) target = $region37
    $region36: #{tpu_custom_call.1} parent=1 // pred_region
      %s93 = ssub.s32 1024, 1024
      %94 = vsyncadd [#allocation9], %s93
      %s95 = sshll.u32 [#allocation10], 4
      %s96 = int_to_ptr.vmem [resolvable:$true] %s95
      %101 = dma.hbm_to_vmem [thread:$0]  %s8, 1024, %s96, [#allocation9], 64, 64, 4
    $region37: #{tpu_custom_call.1} parent=1 // pred_fallthru
      _
    // Predicated region
    $region38: #{tpu_custom_call.1} parent=1 // pred_check
      _
    $region39: #{tpu_custom_call.1} parent=1 // pred_check_branch
      %103 = sbr.rel (0) target = $region41
    $region40: #{tpu_custom_call.1} parent=1 // pred_region
      _
    $region41: #{tpu_custom_call.1} parent=1 // pred_fallthru
      _
    // Predicated region
    $region42: #{tpu_custom_call.1} parent=1 // pred_check
      _
    $region43: #{tpu_custom_call.1} parent=1 // pred_check_branch
      %105 = sbr.rel (0) target = $region45
    $region44: #{tpu_custom_call.1} parent=1 // pred_region
      %s107 = ssub.s32 2048, 2048
      %108 = vsyncadd [#allocation12], %s107
      %s109 = sshll.u32 [#allocation11], 4
      %s110 = int_to_ptr.vmem [resolvable:$true] %s109
      %115 = dma.hbm_to_vmem [thread:$0]  %s10, 2048, %s110, [#allocation12], 128, 128, 8
    $region45: #{tpu_custom_call.1} parent=1 // pred_fallthru
      _
    // Predicated region
    $region46: #{tpu_custom_call.1} parent=1 // pred_check
      _
    $region47: #{tpu_custom_call.1} parent=1 // pred_check_branch
      %117 = sbr.rel (0) target = $region49
    $region48: #{tpu_custom_call.1} parent=1 // pred_region
      _
    $region49: #{tpu_custom_call.1} parent=1 // pred_fallthru
      _
    // Predicated region
    $region50: #{tpu_custom_call.1} parent=1 // pred_check
      _
    $region51: #{tpu_custom_call.1} parent=1 // pred_check_branch
      %119 = sbr.rel (0) target = $region53
    $region52: #{tpu_custom_call.1} parent=1 // pred_region
      %s121 = ssub.s32 1024, 1024
      %122 = vsyncadd [#allocation12], %s121
      %s123 = sshll.u32 [#allocation13], 4
      %s124 = int_to_ptr.vmem [resolvable:$true] %s123
      %129 = dma.hbm_to_vmem [thread:$0]  %s12, 1024, %s124, [#allocation12], 64, 64, 4
    $region53: #{tpu_custom_call.1} parent=1 // pred_fallthru
      _
    // Predicated region
    $region54: #{tpu_custom_call.1} parent=1 // pred_check
      _
    $region55: #{tpu_custom_call.1} parent=1 // pred_check_branch
      %131 = sbr.rel (0) target = $region57
    $region56: #{tpu_custom_call.1} parent=1 // pred_region
      _
    $region57: #{tpu_custom_call.1} parent=1 // pred_fallthru
      _
    // Predicated region
    $region58: #{tpu_custom_call.1} parent=1 // pred_check
      _
    $region59: #{tpu_custom_call.1} parent=1 // pred_check_branch
      %133 = sbr.rel (0) target = $region61
    $region60: #{tpu_custom_call.1} parent=1 // pred_region
      _
    $region61: #{tpu_custom_call.1} parent=1 // pred_fallthru
      _
    // Predicated region
    $region62: #{tpu_custom_call.1} parent=1 // pred_check
      _
    $region63: #{tpu_custom_call.1} parent=1 // pred_check_branch
      %135 = sbr.rel (0) target = $region65
    $region64: #{tpu_custom_call.1} parent=1 // pred_region
      _
    $region65: #{tpu_custom_call.1} parent=1 // pred_fallthru
      _
    // Predicated region
    $region66: #{tpu_custom_call.1} parent=1 // pred_check
      _
    $region67: #{tpu_custom_call.1} parent=1 // pred_check_branch
      %137 = sbr.rel (0) target = $region69
    $region68: #{tpu_custom_call.1} parent=1 // pred_region
      %s139 = ssub.s32 4096, 4096
      %140 = vsyncadd [#allocation15], %s139
      %s141 = sshll.u32 [#allocation14], 4
      %s142 = int_to_ptr.vmem [resolvable:$true] %s141
      %147 = dma.hbm_to_vmem [thread:$0]  %s16, 4096, %s142, [#allocation15], 256, 256, 16
    $region69: #{tpu_custom_call.1} parent=1 // pred_fallthru
      _
    // Predicated region
    $region70: #{tpu_custom_call.1} parent=1 // pred_check
      _
    $region71: #{tpu_custom_call.1} parent=1 // pred_check_branch
      %149 = sbr.rel (0) target = $region73
    $region72: #{tpu_custom_call.1} parent=1 // pred_region
      _
    $region73: #{tpu_custom_call.1} parent=1 // pred_fallthru
      _
    // Predicated region
    $region74: #{tpu_custom_call.1} parent=1 // pred_check
      _
    $region75: #{tpu_custom_call.1} parent=1 // pred_check_branch
      %151 = sbr.rel (0) target = $region77
    $region76: #{tpu_custom_call.1} parent=1 // pred_region
      %s153 = ssub.s32 4096, 4096
      %154 = vsyncadd [#allocation15], %s153
      %s155 = sshll.u32 [#allocation16], 4
      %s156 = int_to_ptr.vmem [resolvable:$true] %s155
      %161 = dma.hbm_to_vmem [thread:$0]  %s18, 4096, %s156, [#allocation15], 64, 64, 4
    $region77: #{tpu_custom_call.1} parent=1 // pred_fallthru
      _
    // Predicated region
    $region78: #{tpu_custom_call.1} parent=1 // pred_check
      _
    $region79: #{tpu_custom_call.1} parent=1 // pred_check_branch
      %163 = sbr.rel (0) target = $region81
    $region80: #{tpu_custom_call.1} parent=1 // pred_region
      _
    $region81: #{tpu_custom_call.1} parent=1 // pred_fallthru
      _
    // Predicated region
    $region82: #{tpu_custom_call.1} parent=1 // pred_check
      _
    $region83: #{tpu_custom_call.1} parent=1 // pred_check_branch
      %165 = sbr.rel (0) target = $region85
    $region84: #{tpu_custom_call.1} parent=1 // pred_region
      _
    $region85: #{tpu_custom_call.1} parent=1 // pred_fallthru
      _
    // Predicated region
    $region86: #{tpu_custom_call.1} parent=1 // pred_check
      _
    $region87: #{tpu_custom_call.1} parent=1 // pred_check_branch
      %167 = sbr.rel (0) target = $region89
    $region88: #{tpu_custom_call.1} parent=1 // pred_region
      _
    $region89: #{tpu_custom_call.1} parent=1 // pred_fallthru
      _
    // Predicated region
    $region90: #{tpu_custom_call.1} parent=1 // pred_check
      _
    $region91: #{tpu_custom_call.1} parent=1 // pred_check_branch
      %169 = sbr.rel (0) target = $region93
    $region92: #{tpu_custom_call.1} parent=1 // pred_region
      _
    $region93: #{tpu_custom_call.1} parent=1 // pred_fallthru
      _
    // Predicated region
    $region94: #{tpu_custom_call.1} parent=1 // pred_check
      _
    $region95: #{tpu_custom_call.1} parent=1 // pred_check_branch
      %171 = sbr.rel (0) target = $region97
    $region96: #{tpu_custom_call.1} parent=1 // pred_region
      %s173 = ssub.s32 1024, 1024
      %174 = vsyncadd [#allocation18], %s173
      %s175 = sshll.u32 [#allocation17], 4
      %s176 = int_to_ptr.vmem [resolvable:$true] %s175
      %181 = dma.hbm_to_vmem [thread:$0]  %s23, 1024, %s176, [#allocation18], 64, 64, 4
    $region97: #{tpu_custom_call.1} parent=1 // pred_fallthru
      _
    // Predicated region
    $region98: #{tpu_custom_call.1} parent=1 // pred_check
      _
    $region99: #{tpu_custom_call.1} parent=1 // pred_check_branch
      %183 = sbr.rel (0) target = $region101
    $region100: #{tpu_custom_call.1} parent=1 // pred_region
      %184 = dma.done [#allocation3], 1920
    $region101: #{tpu_custom_call.1} parent=1 // pred_fallthru
      _
    // Predicated region
    $region102: #{tpu_custom_call.1} parent=1 // pred_check
      _
    $region103: #{tpu_custom_call.1} parent=1 // pred_check_branch
      %186 = sbr.rel (0) target = $region105
    $region104: #{tpu_custom_call.1} parent=1 // pred_region
      %187 = dma.done [#allocation6], 128
    $region105: #{tpu_custom_call.1} parent=1 // pred_fallthru
      _
    // Predicated region
    $region106: #{tpu_custom_call.1} parent=1 // pred_check
      _
    $region107: #{tpu_custom_call.1} parent=1 // pred_check_branch
      %189 = sbr.rel (0) target = $region109
    $region108: #{tpu_custom_call.1} parent=1 // pred_region
      %190 = dma.done [#allocation6], 640
    $region109: #{tpu_custom_call.1} parent=1 // pred_fallthru
      _
    // Predicated region
    $region110: #{tpu_custom_call.1} parent=1 // pred_check
      _
    $region111: #{tpu_custom_call.1} parent=1 // pred_check_branch
      %192 = sbr.rel (0) target = $region113
    $region112: #{tpu_custom_call.1} parent=1 // pred_region
      %193 = dma.done [#allocation9], 6144
    $region113: #{tpu_custom_call.1} parent=1 // pred_fallthru
      _
    // Predicated region
    $region114: #{tpu_custom_call.1} parent=1 // pred_check
      _
    $region115: #{tpu_custom_call.1} parent=1 // pred_check_branch
      %195 = sbr.rel (0) target = $region117
    $region116: #{tpu_custom_call.1} parent=1 // pred_region
      %196 = dma.done [#allocation9], 1024
    $region117: #{tpu_custom_call.1} parent=1 // pred_fallthru
      _
    // Predicated region
    $region118: #{tpu_custom_call.1} parent=1 // pred_check
      _
    $region119: #{tpu_custom_call.1} parent=1 // pred_check_branch
      %198 = sbr.rel (0) target = $region121
    $region120: #{tpu_custom_call.1} parent=1 // pred_region
      %199 = dma.done [#allocation12], 2048
    $region121: #{tpu_custom_call.1} parent=1 // pred_fallthru
      _
    // Predicated region
    $region122: #{tpu_custom_call.1} parent=1 // pred_check
      _
    $region123: #{tpu_custom_call.1} parent=1 // pred_check_branch
      %201 = sbr.rel (0) target = $region125
    $region124: #{tpu_custom_call.1} parent=1 // pred_region
      %202 = dma.done [#allocation12], 1024
    $region125: #{tpu_custom_call.1} parent=1 // pred_fallthru
      _
    // Predicated region
    $region126: #{tpu_custom_call.1} parent=1 // pred_check
      _
    $region127: #{tpu_custom_call.1} parent=1 // pred_check_branch
      %204 = sbr.rel (0) target = $region129
    $region128: #{tpu_custom_call.1} parent=1 // pred_region
      %205 = dma.done [#allocation15], 4096
    $region129: #{tpu_custom_call.1} parent=1 // pred_fallthru
      _
    // Predicated region
    $region130: #{tpu_custom_call.1} parent=1 // pred_check
      _
    $region131: #{tpu_custom_call.1} parent=1 // pred_check_branch
      %207 = sbr.rel (0) target = $region133
    $region132: #{tpu_custom_call.1} parent=1 // pred_region
      %208 = dma.done [#allocation15], 4096
    $region133: #{tpu_custom_call.1} parent=1 // pred_fallthru
      _
    // Predicated region
    $region134: #{tpu_custom_call.1} parent=1 // pred_check
      _
    $region135: #{tpu_custom_call.1} parent=1 // pred_check_branch
      %210 = sbr.rel (0) target = $region137
    $region136: #{tpu_custom_call.1} parent=1 // pred_region
      %211 = dma.done [#allocation18], 1024
    $region137: #{tpu_custom_call.1} parent=1 // pred_fallthru
      _
    %v213 = vld [vmem:[#allocation2] sm:$0xff]
    %v214 = vld [vmem:[#allocation2 + $0x8] sm:$0xff]
    %v215 = vld [vmem:[#allocation2 + $0x10] sm:$0xff]
    %v216 = vld [vmem:[#allocation2 + $0x18] sm:$0xff]
    %v217 = vld [vmem:[#allocation2 + $0x20] sm:$0xff]
    %v218 = vld [vmem:[#allocation2 + $0x28] sm:$0xff]
    %v219 = vld [vmem:[#allocation2 + $0x30] sm:$0xff]
    %v220 = vld [vmem:[#allocation2 + $0x38] sm:$0xff]
    %v221 = vld [vmem:[#allocation2 + $0x40] sm:$0xff]
    %v222 = vld [vmem:[#allocation2 + $0x48] sm:$0xff]
    %v223 = vld [vmem:[#allocation2 + $0x50] sm:$0xff]
    %v224 = vld [vmem:[#allocation2 + $0x58] sm:$0xff]
    %v225 = vld [vmem:[#allocation2 + $0x60] sm:$0xff]
    %v226 = vld [vmem:[#allocation2 + $0x68] sm:$0xff]
    %v227 = vld [vmem:[#allocation2 + $0x70] sm:$0xff]
    %v228 = vld [vmem:[#allocation8] sm:$0xf]
    %v229 = vld [vmem:[#allocation8 + $0x4] sm:$0xf]
    %v230 = vld [vmem:[#allocation8 + $0x8] sm:$0xf]
    %v231 = vld [vmem:[#allocation8 + $0xc] sm:$0xf]
    %v232 = vld [vmem:[#allocation8 + $0x10] sm:$0xf]
    %v233 = vld [vmem:[#allocation8 + $0x14] sm:$0xf]
    %v234 = vld [vmem:[#allocation8 + $0x18] sm:$0xf]
    %v235 = vld [vmem:[#allocation8 + $0x1c] sm:$0xf]
    %v236 = vld [vmem:[#allocation8 + $0x20] sm:$0xf]
    %v237 = vld [vmem:[#allocation8 + $0x24] sm:$0xf]
    %v238 = vld [vmem:[#allocation8 + $0x28] sm:$0xf]
    %v239 = vld [vmem:[#allocation8 + $0x2c] sm:$0xf]
    %v240 = vld [vmem:[#allocation8 + $0x30] sm:$0xf]
    %v241 = vld [vmem:[#allocation8 + $0x34] sm:$0xf]
    %v242 = vld [vmem:[#allocation8 + $0x38] sm:$0xf]
    %v243 = vld [vmem:[#allocation8 + $0x3c] sm:$0xf]
    %v244 = vld [vmem:[#allocation8 + $0x40] sm:$0xf]
    %v245 = vld [vmem:[#allocation8 + $0x44] sm:$0xf]
    %v246 = vld [vmem:[#allocation8 + $0x48] sm:$0xf]
    %v247 = vld [vmem:[#allocation8 + $0x4c] sm:$0xf]
    %v248 = vld [vmem:[#allocation8 + $0x50] sm:$0xf]
    %v249 = vld [vmem:[#allocation8 + $0x54] sm:$0xf]
    %v250 = vld [vmem:[#allocation8 + $0x58] sm:$0xf]
    %v251 = vld [vmem:[#allocation8 + $0x5c] sm:$0xf]
    %v252 = vld [vmem:[#allocation8 + $0x60] sm:$0xf]
    %v253 = vld [vmem:[#allocation8 + $0x64] sm:$0xf]
    %v254 = vld [vmem:[#allocation8 + $0x68] sm:$0xf]
    %v255 = vld [vmem:[#allocation8 + $0x6c] sm:$0xf]
    %v256 = vld [vmem:[#allocation8 + $0x70] sm:$0xf]
    %v257 = vld [vmem:[#allocation8 + $0x74] sm:$0xf]
    %v258 = vld [vmem:[#allocation8 + $0x78] sm:$0xf]
    %v259 = vld [vmem:[#allocation8 + $0x7c] sm:$0xf]
    %v260 = vld [vmem:[#allocation8 + $0x80] sm:$0xf]
    %v261 = vld [vmem:[#allocation8 + $0x84] sm:$0xf]
    %v262 = vld [vmem:[#allocation8 + $0x88] sm:$0xf]
    %v263 = vld [vmem:[#allocation8 + $0x8c] sm:$0xf]
    %v264 = vld [vmem:[#allocation8 + $0x90] sm:$0xf]
    %v265 = vld [vmem:[#allocation8 + $0x94] sm:$0xf]
    %v266 = vld [vmem:[#allocation8 + $0x98] sm:$0xf]
    %v267 = vld [vmem:[#allocation8 + $0x9c] sm:$0xf]
    %v268 = vld [vmem:[#allocation8 + $0xa0] sm:$0xf]
    %v269 = vld [vmem:[#allocation8 + $0xa4] sm:$0xf]
    %v270 = vld [vmem:[#allocation8 + $0xa8] sm:$0xf]
    %v271 = vld [vmem:[#allocation8 + $0xac] sm:$0xf]
    %v272 = vld [vmem:[#allocation8 + $0xb0] sm:$0xf]
    %v273 = vld [vmem:[#allocation8 + $0xb4] sm:$0xf]
    %v274 = vld [vmem:[#allocation8 + $0xb8] sm:$0xf]
    %v275 = vld [vmem:[#allocation8 + $0xbc] sm:$0xf]
    %v276 = vld [vmem:[#allocation8 + $0xc0] sm:$0xf]
    %v277 = vld [vmem:[#allocation8 + $0xc4] sm:$0xf]
    %v278 = vld [vmem:[#allocation8 + $0xc8] sm:$0xf]
    %v279 = vld [vmem:[#allocation8 + $0xcc] sm:$0xf]
    %v280 = vld [vmem:[#allocation8 + $0xd0] sm:$0xf]
    %v281 = vld [vmem:[#allocation8 + $0xd4] sm:$0xf]
    %v282 = vld [vmem:[#allocation8 + $0xd8] sm:$0xf]
    %v283 = vld [vmem:[#allocation8 + $0xdc] sm:$0xf]
    %v284 = vld [vmem:[#allocation8 + $0xe0] sm:$0xf]
    %v285 = vld [vmem:[#allocation8 + $0xe4] sm:$0xf]
    %v286 = vld [vmem:[#allocation8 + $0xe8] sm:$0xf]
    %v287 = vld [vmem:[#allocation8 + $0xec] sm:$0xf]
    %v288 = vld [vmem:[#allocation8 + $0xf0] sm:$0xf]
    %v289 = vld [vmem:[#allocation8 + $0xf4] sm:$0xf]
    %v290 = vld [vmem:[#allocation8 + $0xf8] sm:$0xf]
    %v291 = vld [vmem:[#allocation8 + $0xfc] sm:$0xf]
    %v292 = vld [vmem:[#allocation8 + $0x100] sm:$0xf]
    %v293 = vld [vmem:[#allocation8 + $0x104] sm:$0xf]
    %v294 = vld [vmem:[#allocation8 + $0x108] sm:$0xf]
    %v295 = vld [vmem:[#allocation8 + $0x10c] sm:$0xf]
    %v296 = vld [vmem:[#allocation8 + $0x110] sm:$0xf]
    %v297 = vld [vmem:[#allocation8 + $0x114] sm:$0xf]
    %v298 = vld [vmem:[#allocation8 + $0x118] sm:$0xf]
    %v299 = vld [vmem:[#allocation8 + $0x11c] sm:$0xf]
    %v300 = vld [vmem:[#allocation8 + $0x120] sm:$0xf]
    %v301 = vld [vmem:[#allocation8 + $0x124] sm:$0xf]
    %v302 = vld [vmem:[#allocation8 + $0x128] sm:$0xf]
    %v303 = vld [vmem:[#allocation8 + $0x12c] sm:$0xf]
    %v304 = vld [vmem:[#allocation8 + $0x130] sm:$0xf]
    %v305 = vld [vmem:[#allocation8 + $0x134] sm:$0xf]
    %v306 = vld [vmem:[#allocation8 + $0x138] sm:$0xf]
    %v307 = vld [vmem:[#allocation8 + $0x13c] sm:$0xf]
    %v308 = vld [vmem:[#allocation8 + $0x140] sm:$0xf]
    %v309 = vld [vmem:[#allocation8 + $0x144] sm:$0xf]
    %v310 = vld [vmem:[#allocation8 + $0x148] sm:$0xf]
    %v311 = vld [vmem:[#allocation8 + $0x14c] sm:$0xf]
    %v312 = vld [vmem:[#allocation8 + $0x150] sm:$0xf]
    %v313 = vld [vmem:[#allocation8 + $0x154] sm:$0xf]
    %v314 = vld [vmem:[#allocation8 + $0x158] sm:$0xf]
    %v315 = vld [vmem:[#allocation8 + $0x15c] sm:$0xf]
    %v316 = vld [vmem:[#allocation8 + $0x160] sm:$0xf]
    %v317 = vld [vmem:[#allocation8 + $0x164] sm:$0xf]
    %v318 = vld [vmem:[#allocation8 + $0x168] sm:$0xf]
    %v319 = vld [vmem:[#allocation8 + $0x16c] sm:$0xf]
    %v320 = vld [vmem:[#allocation8 + $0x170] sm:$0xf]
    %v321 = vld [vmem:[#allocation8 + $0x174] sm:$0xf]
    %v322 = vld [vmem:[#allocation8 + $0x178] sm:$0xf]
    %v323 = vld [vmem:[#allocation8 + $0x17c] sm:$0xf]
    %v324 = vld [vmem:[#allocation7] sm:$0xff]
    %v325 = vld [vmem:[#allocation7 + $0x8] sm:$0xff]
    %v326 = vld [vmem:[#allocation7 + $0x10] sm:$0xff]
    %v327 = vld [vmem:[#allocation7 + $0x18] sm:$0xff]
    %v328 = vld [vmem:[#allocation7 + $0x20] sm:$0xff]
    %v344 = vunpack.c.l.b16 %v213
    %v345 = vunpack.c.h.b16 %v213
    %v346 = vunpack.c.l.b16 %v214
    %v347 = vunpack.c.h.b16 %v214
    %v348 = vunpack.c.l.b16 %v215
    %v349 = vunpack.c.h.b16 %v215
    %v350 = vunpack.c.l.b16 %v216
    %v351 = vunpack.c.h.b16 %v216
    %v352 = vunpack.c.l.b16 %v217
    %v353 = vunpack.c.h.b16 %v217
    %v354 = vunpack.c.l.b16 %v218
    %v355 = vunpack.c.h.b16 %v218
    %v356 = vunpack.c.l.b16 %v219
    %v357 = vunpack.c.h.b16 %v219
    %v358 = vunpack.c.l.b16 %v220
    %v359 = vunpack.c.h.b16 %v220
    %v360 = vunpack.c.l.b16 %v221
    %v361 = vunpack.c.h.b16 %v221
    %v362 = vunpack.c.l.b16 %v222
    %v363 = vunpack.c.h.b16 %v222
    %v364 = vunpack.c.l.b16 %v223
    %v365 = vunpack.c.h.b16 %v223
    %v366 = vunpack.c.l.b16 %v224
    %v367 = vunpack.c.h.b16 %v224
    %v368 = vunpack.c.l.b16 %v225
    %v369 = vunpack.c.h.b16 %v225
    %v370 = vunpack.c.l.b16 %v226
    %v371 = vunpack.c.h.b16 %v226
    %v372 = vunpack.c.l.b16 %v227
    %v373 = vunpack.c.h.b16 %v227
    %v374 = vpack.c.b16 %v350, %v344
    %v375 = vpack.c.b16 %v351, %v345
    %v376 = vpack.c.b16 %v352, %v346
    %v377 = vpack.c.b16 %v353, %v347
    %v378 = vpack.c.b16 %v354, %v348
    %v379 = vpack.c.b16 %v355, %v349
    %v380 = vpack.c.b16 %v362, %v356
    %v381 = vpack.c.b16 %v363, %v357
    %v382 = vpack.c.b16 %v364, %v358
    %v383 = vpack.c.b16 %v365, %v359
    %v384 = vpack.c.b16 %v366, %v360
    %v385 = vpack.c.b16 %v367, %v361
    %v386 = vpack.c.b16 %v368, %v368
    %v387 = vpack.c.b16 %v369, %v369
    %v388 = vpack.c.b16 %v370, %v370
    %v389 = vpack.c.b16 %v371, %v371
    %v390 = vpack.c.b16 %v372, %v372
    %v391 = vpack.c.b16 %v373, %v373
    %v506 = vunpack.c.l.b16 %v228
    %v507 = vunpack.c.l.b16 %v229
    %v508 = vunpack.c.l.b16 %v230
    %v509 = vunpack.c.l.b16 %v231
    %v510 = vunpack.c.l.b16 %v232
    %v511 = vunpack.c.l.b16 %v233
    %v512 = vunpack.c.l.b16 %v234
    %v513 = vunpack.c.l.b16 %v235
    %v514 = vunpack.c.l.b16 %v236
    %v515 = vunpack.c.l.b16 %v237
    %v516 = vunpack.c.l.b16 %v238
    %v517 = vunpack.c.l.b16 %v239
    %v518 = vunpack.c.l.b16 %v240
    %v519 = vunpack.c.l.b16 %v241
    %v520 = vunpack.c.l.b16 %v242
    %v521 = vunpack.c.l.b16 %v243
    %v522 = vunpack.c.l.b16 %v244
    %v523 = vunpack.c.l.b16 %v245
    %v524 = vunpack.c.l.b16 %v246
    %v525 = vunpack.c.l.b16 %v247
    %v526 = vunpack.c.l.b16 %v248
    %v527 = vunpack.c.l.b16 %v249
    %v528 = vunpack.c.l.b16 %v250
    %v529 = vunpack.c.l.b16 %v251
    %v530 = vunpack.c.l.b16 %v252
    %v531 = vunpack.c.l.b16 %v253
    %v532 = vunpack.c.l.b16 %v254
    %v533 = vunpack.c.l.b16 %v255
    %v534 = vunpack.c.l.b16 %v256
    %v535 = vunpack.c.l.b16 %v257
    %v536 = vunpack.c.l.b16 %v258
    %v537 = vunpack.c.l.b16 %v259
    %v538 = vunpack.c.l.b16 %v260
    %v539 = vunpack.c.l.b16 %v261
    %v540 = vunpack.c.l.b16 %v262
    %v541 = vunpack.c.l.b16 %v263
    %v542 = vunpack.c.l.b16 %v264
    %v543 = vunpack.c.l.b16 %v265
    %v544 = vunpack.c.l.b16 %v266
    %v545 = vunpack.c.l.b16 %v267
    %v546 = vunpack.c.l.b16 %v268
    %v547 = vunpack.c.l.b16 %v269
    %v548 = vunpack.c.l.b16 %v270
    %v549 = vunpack.c.l.b16 %v271
    %v550 = vunpack.c.l.b16 %v272
    %v551 = vunpack.c.l.b16 %v273
    %v552 = vunpack.c.l.b16 %v274
    %v553 = vunpack.c.l.b16 %v275
    %v554 = vunpack.c.l.b16 %v276
    %v555 = vunpack.c.l.b16 %v277
    %v556 = vunpack.c.l.b16 %v278
    %v557 = vunpack.c.l.b16 %v279
    %v558 = vunpack.c.l.b16 %v280
    %v559 = vunpack.c.l.b16 %v281
    %v560 = vunpack.c.l.b16 %v282
    %v561 = vunpack.c.l.b16 %v283
    %v562 = vunpack.c.l.b16 %v284
    %v563 = vunpack.c.l.b16 %v285
    %v564 = vunpack.c.l.b16 %v286
    %v565 = vunpack.c.l.b16 %v287
    %v566 = vunpack.c.l.b16 %v288
    %v567 = vunpack.c.l.b16 %v289
    %v568 = vunpack.c.l.b16 %v290
    %v569 = vunpack.c.l.b16 %v291
    %v570 = vunpack.c.l.b16 %v292
    %v571 = vunpack.c.l.b16 %v293
    %v572 = vunpack.c.l.b16 %v294
    %v573 = vunpack.c.l.b16 %v295
    %v574 = vunpack.c.l.b16 %v296
    %v575 = vunpack.c.l.b16 %v297
    %v576 = vunpack.c.l.b16 %v298
    %v577 = vunpack.c.l.b16 %v299
    %v578 = vunpack.c.l.b16 %v300
    %v579 = vunpack.c.l.b16 %v301
    %v580 = vunpack.c.l.b16 %v302
    %v581 = vunpack.c.l.b16 %v303
    %v582 = vunpack.c.l.b16 %v304
    %v583 = vunpack.c.l.b16 %v305
    %v584 = vunpack.c.l.b16 %v306
    %v585 = vunpack.c.l.b16 %v307
    %v586 = vunpack.c.l.b16 %v308
    %v587 = vunpack.c.l.b16 %v309
    %v588 = vunpack.c.l.b16 %v310
    %v589 = vunpack.c.l.b16 %v311
    %v590 = vunpack.c.l.b16 %v312
    %v591 = vunpack.c.l.b16 %v313
    %v592 = vunpack.c.l.b16 %v314
    %v593 = vunpack.c.l.b16 %v315
    %v594 = vunpack.c.l.b16 %v316
    %v595 = vunpack.c.l.b16 %v317
    %v596 = vunpack.c.l.b16 %v318
    %v597 = vunpack.c.l.b16 %v319
    %v598 = vunpack.c.l.b16 %v320
    %v599 = vunpack.c.l.b16 %v321
    %v600 = vunpack.c.l.b16 %v322
    %v601 = vunpack.c.l.b16 %v323
    %v602 = vpack.c.b16 %v507, %v506
    %v603 = vpack.c.b16 %v509, %v508
    %v604 = vpack.c.b16 %v511, %v510
    %v605 = vpack.c.b16 %v513, %v512
    %v606 = vpack.c.b16 %v515, %v514
    %v607 = vpack.c.b16 %v517, %v516
    %v608 = vpack.c.b16 %v519, %v518
    %v609 = vpack.c.b16 %v521, %v520
    %v610 = vpack.c.b16 %v523, %v522
    %v611 = vpack.c.b16 %v525, %v524
    %v612 = vpack.c.b16 %v527, %v526
    %v613 = vpack.c.b16 %v529, %v528
    %v614 = vpack.c.b16 %v531, %v530
    %v615 = vpack.c.b16 %v533, %v532
    %v616 = vpack.c.b16 %v535, %v534
    %v617 = vpack.c.b16 %v537, %v536
    %v618 = vpack.c.b16 %v539, %v538
    %v619 = vpack.c.b16 %v541, %v540
    %v620 = vpack.c.b16 %v543, %v542
    %v621 = vpack.c.b16 %v545, %v544
    %v622 = vpack.c.b16 %v547, %v546
    %v623 = vpack.c.b16 %v549, %v548
    %v624 = vpack.c.b16 %v551, %v550
    %v625 = vpack.c.b16 %v553, %v552
    %v626 = vpack.c.b16 %v555, %v554
    %v627 = vpack.c.b16 %v557, %v556
    %v628 = vpack.c.b16 %v559, %v558
    %v629 = vpack.c.b16 %v561, %v560
    %v630 = vpack.c.b16 %v563, %v562
    %v631 = vpack.c.b16 %v565, %v564
    %v632 = vpack.c.b16 %v567, %v566
    %v633 = vpack.c.b16 %v569, %v568
    %v634 = vpack.c.b16 %v571, %v570
    %v635 = vpack.c.b16 %v573, %v572
    %v636 = vpack.c.b16 %v575, %v574
    %v637 = vpack.c.b16 %v577, %v576
    %v638 = vpack.c.b16 %v579, %v578
    %v639 = vpack.c.b16 %v581, %v580
    %v640 = vpack.c.b16 %v583, %v582
    %v641 = vpack.c.b16 %v585, %v584
    %v642 = vpack.c.b16 %v587, %v586
    %v643 = vpack.c.b16 %v589, %v588
    %v644 = vpack.c.b16 %v591, %v590
    %v645 = vpack.c.b16 %v593, %v592
    %v646 = vpack.c.b16 %v595, %v594
    %v647 = vpack.c.b16 %v597, %v596
    %v648 = vpack.c.b16 %v599, %v598
    %v649 = vpack.c.b16 %v601, %v600
    %698 = vmatprep.subr.bf16.mxu0 0
    %699 = vmatpush1.bf16.msra.mxu0 %v602
    %700 = vmatprep.subr.bf16.mxu0 0
    %701 = vmatpush1.bf16.msra.mxu0 %v603
    %702 = vmatprep.subr.bf16.mxu0 0
    %703 = vmatpush1.bf16.msra.mxu0 %v604
    %704 = vmatprep.subr.bf16.mxu0 0
    %705 = vmatpush1.bf16.msra.mxu0 %v605
    %706 = vmatprep.subr.bf16.mxu0 0
    %707 = vmatpush1.bf16.msra.mxu0 %v606
    %708 = vmatprep.subr.bf16.mxu0 0
    %709 = vmatpush1.bf16.msra.mxu0 %v607
    %710 = vmatprep.subr.bf16.mxu0 0
    %711 = vmatpush1.bf16.msra.mxu0 %v608
    %712 = vmatprep.subr.bf16.mxu0 0
    %713 = vmatpush1.bf16.msra.mxu0 %v609
    %714 = vmatprep.subr.bf16.mxu0 0
    %715 = vmatpush1.bf16.msra.mxu0 %v610
    %716 = vmatprep.subr.bf16.mxu0 0
    %717 = vmatpush1.bf16.msra.mxu0 %v611
    %718 = vmatprep.subr.bf16.mxu0 0
    %719 = vmatpush1.bf16.msra.mxu0 %v612
    %720 = vmatprep.subr.bf16.mxu0 0
    %721 = vmatpush1.bf16.msra.mxu0 %v613
    %722 = vmatprep.subr.bf16.mxu0 0
    %723 = vmatpush1.bf16.msra.mxu0 %v614
    %724 = vmatprep.subr.bf16.mxu0 0
    %725 = vmatpush1.bf16.msra.mxu0 %v615
    %726 = vmatprep.subr.bf16.mxu0 0
    %727 = vmatpush1.bf16.msra.mxu0 %v616
    %728 = vmatprep.subr.bf16.mxu0 0
    %729 = vmatpush1.bf16.msra.mxu0 %v617
    %730 = vmatprep.mubr.bf16.mxu0 %v375
    %731 = vmatmul.mubr.bf16.gmra.mrb[0].mxu0 %v374
    %v732 = vpop.f32.mrb[0].mxu0
    %v733 = vadd.f32 %v324, %v732
    %v734 = vpop.f32.mrb[0].mxu0
    %v735 = vpop.f32.mrb[0].mxu0
    %v736 = vadd.f32 %v325, %v735
    %v737 = vpop.f32.mrb[0].mxu0
    %738 = vmatprep.mubr.bf16.mxu0 %v381
    %739 = vmatmul.mubr.bf16.gmra.mrb[0].mxu0 %v380
    %v740 = vpop.f32.mrb[0].mxu0
    %v741 = vadd.f32 %v326, %v740
    %v742 = vpop.f32.mrb[0].mxu0
    %v743 = vpop.f32.mrb[0].mxu0
    %v744 = vadd.f32 %v327, %v743
    %v745 = vpop.f32.mrb[0].mxu0
    %746 = vmatprep.mubr.bf16.mxu0 %v387
    %747 = vmatmul.mubr.bf16.gmra.mrb[0].mxu0 %v386
    %v748 = vpop.f32.mrb[0].mxu0
    %v749 = vadd.f32 %v328, %v748
    %v750 = vpop.f32.mrb[0].mxu0
    %v751 = vpop.f32.mrb[0].mxu0
    %v752 = vpop.f32.mrb[0].mxu0
    %753 = vdwg.mxu0
    %754 = vmatprep.subr.bf16.mxu0 0
    %755 = vmatpush1.bf16.msra.mxu0 %v618
    %756 = vmatprep.subr.bf16.mxu0 0
    %757 = vmatpush1.bf16.msra.mxu0 %v619
    %758 = vmatprep.subr.bf16.mxu0 0
    %759 = vmatpush1.bf16.msra.mxu0 %v620
    %760 = vmatprep.subr.bf16.mxu0 0
    %761 = vmatpush1.bf16.msra.mxu0 %v621
    %762 = vmatprep.subr.bf16.mxu0 0
    %763 = vmatpush1.bf16.msra.mxu0 %v622
    %764 = vmatprep.subr.bf16.mxu0 0
    %765 = vmatpush1.bf16.msra.mxu0 %v623
    %766 = vmatprep.subr.bf16.mxu0 0
    %767 = vmatpush1.bf16.msra.mxu0 %v624
    %768 = vmatprep.subr.bf16.mxu0 0
    %769 = vmatpush1.bf16.msra.mxu0 %v625
    %770 = vmatprep.subr.bf16.mxu0 0
    %771 = vmatpush1.bf16.msra.mxu0 %v626
    %772 = vmatprep.subr.bf16.mxu0 0
    %773 = vmatpush1.bf16.msra.mxu0 %v627
    %774 = vmatprep.subr.bf16.mxu0 0
    %775 = vmatpush1.bf16.msra.mxu0 %v628
    %776 = vmatprep.subr.bf16.mxu0 0
    %777 = vmatpush1.bf16.msra.mxu0 %v629
    %778 = vmatprep.subr.bf16.mxu0 0
    %779 = vmatpush1.bf16.msra.mxu0 %v630
    %780 = vmatprep.subr.bf16.mxu0 0
    %781 = vmatpush1.bf16.msra.mxu0 %v631
    %782 = vmatprep.subr.bf16.mxu0 0
    %783 = vmatpush1.bf16.msra.mxu0 %v632
    %784 = vmatprep.subr.bf16.mxu0 0
    %785 = vmatpush1.bf16.msra.mxu0 %v633
    %786 = vmatprep.mubr.bf16.mxu0 %v377
    %787 = vmatmul.mubr.bf16.gmra.mrb[0].mxu0 %v376
    %v788 = vpop.f32.mrb[0].mxu0
    %v789 = vadd.f32 %v733, %v788
    %v790 = vpop.f32.mrb[0].mxu0
    %v791 = vpop.f32.mrb[0].mxu0
    %v792 = vadd.f32 %v736, %v791
    %v793 = vpop.f32.mrb[0].mxu0
    %794 = vmatprep.mubr.bf16.mxu0 %v383
    %795 = vmatmul.mubr.bf16.gmra.mrb[0].mxu0 %v382
    %v796 = vpop.f32.mrb[0].mxu0
    %v797 = vadd.f32 %v741, %v796
    %v798 = vpop.f32.mrb[0].mxu0
    %v799 = vpop.f32.mrb[0].mxu0
    %v800 = vadd.f32 %v744, %v799
    %v801 = vpop.f32.mrb[0].mxu0
    %802 = vmatprep.mubr.bf16.mxu0 %v389
    %803 = vmatmul.mubr.bf16.gmra.mrb[0].mxu0 %v388
    %v804 = vpop.f32.mrb[0].mxu0
    %v805 = vadd.f32 %v749, %v804
    %v806 = vpop.f32.mrb[0].mxu0
    %v807 = vpop.f32.mrb[0].mxu0
    %v808 = vpop.f32.mrb[0].mxu0
    %809 = vdwg.mxu0
    %810 = vmatprep.subr.bf16.mxu0 0
    %811 = vmatpush1.bf16.msra.mxu0 %v634
    %812 = vmatprep.subr.bf16.mxu0 0
    %813 = vmatpush1.bf16.msra.mxu0 %v635
    %814 = vmatprep.subr.bf16.mxu0 0
    %815 = vmatpush1.bf16.msra.mxu0 %v636
    %816 = vmatprep.subr.bf16.mxu0 0
    %817 = vmatpush1.bf16.msra.mxu0 %v637
    %818 = vmatprep.subr.bf16.mxu0 0
    %819 = vmatpush1.bf16.msra.mxu0 %v638
    %820 = vmatprep.subr.bf16.mxu0 0
    %821 = vmatpush1.bf16.msra.mxu0 %v639
    %822 = vmatprep.subr.bf16.mxu0 0
    %823 = vmatpush1.bf16.msra.mxu0 %v640
    %824 = vmatprep.subr.bf16.mxu0 0
    %825 = vmatpush1.bf16.msra.mxu0 %v641
    %826 = vmatprep.subr.bf16.mxu0 0
    %827 = vmatpush1.bf16.msra.mxu0 %v642
    %828 = vmatprep.subr.bf16.mxu0 0
    %829 = vmatpush1.bf16.msra.mxu0 %v643
    %830 = vmatprep.subr.bf16.mxu0 0
    %831 = vmatpush1.bf16.msra.mxu0 %v644
    %832 = vmatprep.subr.bf16.mxu0 0
    %833 = vmatpush1.bf16.msra.mxu0 %v645
    %834 = vmatprep.subr.bf16.mxu0 0
    %835 = vmatpush1.bf16.msra.mxu0 %v646
    %836 = vmatprep.subr.bf16.mxu0 0
    %837 = vmatpush1.bf16.msra.mxu0 %v647
    %838 = vmatprep.subr.bf16.mxu0 0
    %839 = vmatpush1.bf16.msra.mxu0 %v648
    %840 = vmatprep.subr.bf16.mxu0 0
    %841 = vmatpush1.bf16.msra.mxu0 %v649
    %842 = vmatprep.mubr.bf16.mxu0 %v379
    %843 = vmatmul.mubr.bf16.gmra.mrb[0].mxu0 %v378
    %v844 = vpop.f32.mrb[0].mxu0
    %v845 = vadd.f32 %v789, %v844
    %v846 = vpop.f32.mrb[0].mxu0
    %v847 = vpop.f32.mrb[0].mxu0
    %v848 = vadd.f32 %v792, %v847
    %v849 = vpop.f32.mrb[0].mxu0
    %850 = vmatprep.mubr.bf16.mxu0 %v385
    %851 = vmatmul.mubr.bf16.gmra.mrb[0].mxu0 %v384
    %v852 = vpop.f32.mrb[0].mxu0
    %v853 = vadd.f32 %v797, %v852
    %v854 = vpop.f32.mrb[0].mxu0
    %v855 = vpop.f32.mrb[0].mxu0
    %v856 = vadd.f32 %v800, %v855
    %v857 = vpop.f32.mrb[0].mxu0
    %858 = vmatprep.mubr.bf16.mxu0 %v391
    %859 = vmatmul.mubr.bf16.gmra.mrb[0].mxu0 %v390
    %v860 = vpop.f32.mrb[0].mxu0
    %v861 = vadd.f32 %v805, %v860
    %v862 = vpop.f32.mrb[0].mxu0
    %v863 = vpop.f32.mrb[0].mxu0
    %v864 = vpop.f32.mrb[0].mxu0
    %865 = vdwg.mxu0
    %866 = vadd.xlane.f32.xlu0 %v845
    %v867 = vpop.xlane.xlu0 %866
    %868 = vadd.xlane.f32.xlu0 %v848
    %v869 = vpop.xlane.xlu0 %868
    %870 = vadd.xlane.f32.xlu0 %v853
    %v871 = vpop.xlane.xlu0 %870
    %872 = vadd.xlane.f32.xlu0 %v856
    %v873 = vpop.xlane.xlu0 %872
    %874 = vadd.xlane.f32.xlu0 %v861
    %v875 = vpop.xlane.xlu0 %874
    %v876 = vrcp.pop 128.0
    %v877 = vmul.f32 %v867, %v876
    %v878 = vmul.f32 %v869, %v876
    %v879 = vmul.f32 %v871, %v876
    %v880 = vmul.f32 %v873, %v876
    %v881 = vmul.f32 %v875, %v876
    %v882 = vsub.f32 %v845, %v877
    %v883 = vsub.f32 %v848, %v878
    %v884 = vsub.f32 %v853, %v879
    %v885 = vsub.f32 %v856, %v880
    %v886 = vsub.f32 %v861, %v881
    %v887 = vmul.f32 %v882, %v882
    %v888 = vmul.f32 %v883, %v883
    %v889 = vmul.f32 %v884, %v884
    %v890 = vmul.f32 %v885, %v885
    %v891 = vmul.f32 %v886, %v886
    %892 = vadd.xlane.f32.xlu0 %v887
    %v893 = vpop.xlane.xlu0 %892
    %894 = vadd.xlane.f32.xlu0 %v888
    %v895 = vpop.xlane.xlu0 %894
    %896 = vadd.xlane.f32.xlu0 %v889
    %v897 = vpop.xlane.xlu0 %896
    %898 = vadd.xlane.f32.xlu0 %v890
    %v899 = vpop.xlane.xlu0 %898
    %900 = vadd.xlane.f32.xlu0 %v891
    %v901 = vpop.xlane.xlu0 %900
    %v902 = vmul.f32 %v893, %v876
    %v903 = vmul.f32 %v895, %v876
    %v904 = vmul.f32 %v897, %v876
    %v905 = vmul.f32 %v899, %v876
    %v906 = vmul.f32 %v901, %v876
    %v907 = vadd.f32 %v902, 1e-05
    %v908 = vadd.f32 %v903, 1e-05
    %v909 = vadd.f32 %v904, 1e-05
    %v910 = vadd.f32 %v905, 1e-05
    %v911 = vadd.f32 %v906, 1e-05
    %v912 = vrsqrt.pop %v907
    %v913 = vrsqrt.pop %v908
    %v914 = vrsqrt.pop %v909
    %v915 = vrsqrt.pop %v910
    %v916 = vrsqrt.pop %v911
    %v917 = vmul.f32 %v882, %v912
    %v918 = vmul.f32 %v883, %v913
    %v919 = vmul.f32 %v884, %v914
    %v920 = vmul.f32 %v885, %v915
    %v921 = vmul.f32 %v886, %v916
    %v922 = vld [vmem:[%s4] sm:$0x1]
    %v924 = vlaneseq
    %v925 = vshrl.u32 %v924, 7
    %v926 = vsub.s32 0, %v925
    %v927 = vrot.slane %v922, %v926
    %v929 = vmul.f32 %v917, %v927
    %v930 = vmul.f32 %v918, %v927
    %v931 = vmul.f32 %v919, %v927
    %v932 = vmul.f32 %v920, %v927
    %v933 = vmul.f32 %v921, %v927
    %v934 = vld [vmem:[%s5] sm:$0x1]
    %v936 = vlaneseq
    %v937 = vshrl.u32 %v936, 7
    %v938 = vsub.s32 0, %v937
    %v939 = vrot.slane %v934, %v938
    %v941 = vadd.f32 %v929, %v939
    %v942 = vadd.f32 %v930, %v939
    %v943 = vadd.f32 %v931, %v939
    %v944 = vadd.f32 %v932, %v939
    %v945 = vadd.f32 %v933, %v939
    %946 = vadd.xlane.f32.xlu0 %v941
    %v947 = vpop.xlane.xlu0 %946
    %948 = vadd.xlane.f32.xlu0 %v942
    %v949 = vpop.xlane.xlu0 %948
    %950 = vadd.xlane.f32.xlu0 %v943
    %v951 = vpop.xlane.xlu0 %950
    %952 = vadd.xlane.f32.xlu0 %v944
    %v953 = vpop.xlane.xlu0 %952
    %954 = vadd.xlane.f32.xlu0 %v945
    %v955 = vpop.xlane.xlu0 %954
    %v956 = vmul.f32 %v947, %v876
    %v957 = vmul.f32 %v949, %v876
    %v958 = vmul.f32 %v951, %v876
    %v959 = vmul.f32 %v953, %v876
    %v960 = vmul.f32 %v955, %v876
    %v961 = vsub.f32 %v941, %v956
    %v962 = vsub.f32 %v942, %v957
    %v963 = vsub.f32 %v943, %v958
    %v964 = vsub.f32 %v944, %v959
    %v965 = vsub.f32 %v945, %v960
    %v966 = vmul.f32 %v961, %v961
    %v967 = vmul.f32 %v962, %v962
    %v968 = vmul.f32 %v963, %v963
    %v969 = vmul.f32 %v964, %v964
    %v970 = vmul.f32 %v965, %v965
    %971 = vadd.xlane.f32.xlu0 %v966
    %v972 = vpop.xlane.xlu0 %971
    %973 = vadd.xlane.f32.xlu0 %v967
    %v974 = vpop.xlane.xlu0 %973
    %975 = vadd.xlane.f32.xlu0 %v968
    %v976 = vpop.xlane.xlu0 %975
    %977 = vadd.xlane.f32.xlu0 %v969
    %v978 = vpop.xlane.xlu0 %977
    %979 = vadd.xlane.f32.xlu0 %v970
    %v980 = vpop.xlane.xlu0 %979
    %v981 = vmul.f32 %v972, %v876
    %v982 = vmul.f32 %v974, %v876
    %v983 = vmul.f32 %v976, %v876
    %v984 = vmul.f32 %v978, %v876
    %v985 = vmul.f32 %v980, %v876
    %v986 = vadd.f32 %v981, 1e-05
    %v987 = vadd.f32 %v982, 1e-05
    %v988 = vadd.f32 %v983, 1e-05
    %v989 = vadd.f32 %v984, 1e-05
    %v990 = vadd.f32 %v985, 1e-05
    %v991 = vrsqrt.pop %v986
    %v992 = vrsqrt.pop %v987
    %v993 = vrsqrt.pop %v988
    %v994 = vrsqrt.pop %v989
    %v995 = vrsqrt.pop %v990
    %v996 = vmul.f32 %v961, %v991
    %v997 = vmul.f32 %v962, %v992
    %v998 = vmul.f32 %v963, %v993
    %v999 = vmul.f32 %v964, %v994
    %v1000 = vmul.f32 %v965, %v995
    %v1001 = vld [vmem:[%s6] sm:$0x1]
    %v1003 = vlaneseq
    %v1004 = vshrl.u32 %v1003, 7
    %v1005 = vsub.s32 0, %v1004
    %v1006 = vrot.slane %v1001, %v1005
    %v1008 = vmul.f32 %v996, %v1006
    %v1009 = vmul.f32 %v997, %v1006
    %v1010 = vmul.f32 %v998, %v1006
    %v1011 = vmul.f32 %v999, %v1006
    %v1012 = vmul.f32 %v1000, %v1006
    %v1013 = vld [vmem:[%s7] sm:$0x1]
    %v1015 = vlaneseq
    %v1016 = vshrl.u32 %v1015, 7
    %v1017 = vsub.s32 0, %v1016
    %v1018 = vrot.slane %v1013, %v1017
    %v1020 = vadd.f32 %v1008, %v1018
    %v1021 = vadd.f32 %v1009, %v1018
    %v1022 = vadd.f32 %v1010, %v1018
    %v1023 = vadd.f32 %v1011, %v1018
    %v1024 = vadd.f32 %v1012, %v1018
    %v1025 = vpack.c.bf16 %v1021, %v1020
    %v1026 = vpack.c.bf16 %v1023, %v1022
    %v1027 = vpack.c.bf16 %v1024, %v1024
    %v1028 = vld [vmem:[#allocation11] sm:$0xff]
    %v1029 = vld [vmem:[#allocation11 + $0x8] sm:$0xff]
    %v1030 = vld [vmem:[#allocation11 + $0x10] sm:$0xff]
    %v1031 = vld [vmem:[#allocation11 + $0x18] sm:$0xff]
    %v1032 = vld [vmem:[#allocation11 + $0x20] sm:$0xff]
    %v1033 = vld [vmem:[#allocation11 + $0x28] sm:$0xff]
    %v1034 = vld [vmem:[#allocation11 + $0x30] sm:$0xff]
    %v1035 = vld [vmem:[#allocation11 + $0x38] sm:$0xff]
    %v1036 = vld [vmem:[#allocation11 + $0x40] sm:$0xff]
    %v1037 = vld [vmem:[#allocation11 + $0x48] sm:$0xff]
    %v1038 = vld [vmem:[#allocation11 + $0x50] sm:$0xff]
    %v1039 = vld [vmem:[#allocation11 + $0x58] sm:$0xff]
    %v1040 = vld [vmem:[#allocation11 + $0x60] sm:$0xff]
    %v1041 = vld [vmem:[#allocation11 + $0x68] sm:$0xff]
    %v1042 = vld [vmem:[#allocation11 + $0x70] sm:$0xff]
    %v1043 = vld [vmem:[#allocation11 + $0x78] sm:$0xff]
    %v1044 = vld [vmem:[%s11] sm:$0x3]
    %v1046 = vlaneseq
    %v1047 = vshrl.u32 %v1046, 7
    %v1048 = vsub.s32 0, %v1047
    %v1049 = vrot.slane %v1044, %v1048
    %v1050 = vlaneseq
    %v1051 = vshrl.u32 %v1050, 7
    %v1052 = vsub.s32 1, %v1051
    %v1053 = vrot.slane %v1044, %v1052
    %v1072 = vunpack.c.l.b16 %v1028
    %v1073 = vunpack.c.h.b16 %v1028
    %v1074 = vunpack.c.l.b16 %v1029
    %v1075 = vunpack.c.h.b16 %v1029
    %v1076 = vunpack.c.l.b16 %v1030
    %v1077 = vunpack.c.h.b16 %v1030
    %v1078 = vunpack.c.l.b16 %v1031
    %v1079 = vunpack.c.h.b16 %v1031
    %v1080 = vunpack.c.l.b16 %v1032
    %v1081 = vunpack.c.h.b16 %v1032
    %v1082 = vunpack.c.l.b16 %v1033
    %v1083 = vunpack.c.h.b16 %v1033
    %v1084 = vunpack.c.l.b16 %v1034
    %v1085 = vunpack.c.h.b16 %v1034
    %v1086 = vunpack.c.l.b16 %v1035
    %v1087 = vunpack.c.h.b16 %v1035
    %v1088 = vunpack.c.l.b16 %v1036
    %v1089 = vunpack.c.h.b16 %v1036
    %v1090 = vunpack.c.l.b16 %v1037
    %v1091 = vunpack.c.h.b16 %v1037
    %v1092 = vunpack.c.l.b16 %v1038
    %v1093 = vunpack.c.h.b16 %v1038
    %v1094 = vunpack.c.l.b16 %v1039
    %v1095 = vunpack.c.h.b16 %v1039
    %v1096 = vunpack.c.l.b16 %v1040
    %v1097 = vunpack.c.h.b16 %v1040
    %v1098 = vunpack.c.l.b16 %v1041
    %v1099 = vunpack.c.h.b16 %v1041
    %v1100 = vunpack.c.l.b16 %v1042
    %v1101 = vunpack.c.h.b16 %v1042
    %v1102 = vunpack.c.l.b16 %v1043
    %v1103 = vunpack.c.h.b16 %v1043
    %v1104 = vpack.c.b16 %v1074, %v1072
    %v1105 = vpack.c.b16 %v1075, %v1073
    %v1106 = vpack.c.b16 %v1078, %v1076
    %v1107 = vpack.c.b16 %v1079, %v1077
    %v1108 = vpack.c.b16 %v1082, %v1080
    %v1109 = vpack.c.b16 %v1083, %v1081
    %v1110 = vpack.c.b16 %v1086, %v1084
    %v1111 = vpack.c.b16 %v1087, %v1085
    %v1112 = vpack.c.b16 %v1090, %v1088
    %v1113 = vpack.c.b16 %v1091, %v1089
    %v1114 = vpack.c.b16 %v1094, %v1092
    %v1115 = vpack.c.b16 %v1095, %v1093
    %v1116 = vpack.c.b16 %v1098, %v1096
    %v1117 = vpack.c.b16 %v1099, %v1097
    %v1118 = vpack.c.b16 %v1102, %v1100
    %v1119 = vpack.c.b16 %v1103, %v1101
    %1136 = vmatprep.subr.bf16.mxu0 %v1105
    %1137 = vmatpush1.bf16.msra.mxu0 %v1104
    %1138 = vmatprep.subr.bf16.mxu0 %v1107
    %1139 = vmatpush1.bf16.msra.mxu0 %v1106
    %1140 = vmatprep.subr.bf16.mxu0 %v1109
    %1141 = vmatpush1.bf16.msra.mxu0 %v1108
    %1142 = vmatprep.subr.bf16.mxu0 %v1111
    %1143 = vmatpush1.bf16.msra.mxu0 %v1110
    %1144 = vmatprep.subr.bf16.mxu0 %v1113
    %1145 = vmatpush1.bf16.msra.mxu0 %v1112
    %1146 = vmatprep.subr.bf16.mxu0 %v1115
    %1147 = vmatpush1.bf16.msra.mxu0 %v1114
    %1148 = vmatprep.subr.bf16.mxu0 %v1117
    %1149 = vmatpush1.bf16.msra.mxu0 %v1116
    %1150 = vmatprep.subr.bf16.mxu0 %v1119
    %1151 = vmatpush1.bf16.msra.mxu0 %v1118
    %1152 = vmatprep.subr.bf16.mxu0 0
    %1153 = vmatpush1.bf16.msra.mxu0 0
    %1154 = vmatprep.subr.bf16.mxu0 0
    %1155 = vmatpush1.bf16.msra.mxu0 0
    %1156 = vmatprep.subr.bf16.mxu0 0
    %1157 = vmatpush1.bf16.msra.mxu0 0
    %1158 = vmatprep.subr.bf16.mxu0 0
    %1159 = vmatpush1.bf16.msra.mxu0 0
    %1160 = vmatprep.subr.bf16.mxu0 0
    %1161 = vmatpush1.bf16.msra.mxu0 0
    %1162 = vmatprep.subr.bf16.mxu0 0
    %1163 = vmatpush1.bf16.msra.mxu0 0
    %1164 = vmatprep.subr.bf16.mxu0 0
    %1165 = vmatpush1.bf16.msra.mxu0 0
    %1166 = vmatprep.subr.bf16.mxu0 0
    %1167 = vmatpush1.bf16.msra.mxu0 0
    %1168 = vmatprep.mubr.bf16.mxu0 0
    %1169 = vmatmul.mubr.bf16.gmra.mrb[0].mxu0 %v1025
    %v1170 = vpop.f32.mrb[0].mxu0
    %v1171 = vadd.f32 %v1049, %v1170
    %v1172 = vpop.f32.mrb[0].mxu0
    %v1173 = vadd.f32 %v1053, %v1172
    %v1174 = vpop.f32.mrb[0].mxu0
    %v1175 = vadd.f32 %v1049, %v1174
    %v1176 = vpop.f32.mrb[0].mxu0
    %v1177 = vadd.f32 %v1053, %v1176
    %1178 = vmatprep.mubr.bf16.mxu0 0
    %1179 = vmatmul.mubr.bf16.gmra.mrb[0].mxu0 %v1026
    %v1180 = vpop.f32.mrb[0].mxu0
    %v1181 = vadd.f32 %v1049, %v1180
    %v1182 = vpop.f32.mrb[0].mxu0
    %v1183 = vadd.f32 %v1053, %v1182
    %v1184 = vpop.f32.mrb[0].mxu0
    %v1185 = vadd.f32 %v1049, %v1184
    %v1186 = vpop.f32.mrb[0].mxu0
    %v1187 = vadd.f32 %v1053, %v1186
    %1188 = vmatprep.mubr.bf16.mxu0 0
    %1189 = vmatmul.mubr.bf16.gmra.mrb[0].mxu0 %v1027
    %v1190 = vpop.f32.mrb[0].mxu0
    %v1191 = vadd.f32 %v1049, %v1190
    %v1192 = vpop.f32.mrb[0].mxu0
    %v1193 = vadd.f32 %v1053, %v1192
    %v1194 = vpop.f32.mrb[0].mxu0
    %v1195 = vpop.f32.mrb[0].mxu0
    %1196 = vdwg.mxu0
    %v1197 = vld [vmem:[#allocation7] sm:$0x1]
    %vm1198 = vcmask 1040384
    %v1199 = vsel %vm1198, %v1197, 0.0
    %1200 = vadd.xlane.f32.xlu0 %v1199
    %v1201 = vpop.xlane.xlu0 %1200
    %v1202 = vmul.f32 %v1201, %v876
    %v1203 = vsub.f32 %v1197, %v1202
    %v1204 = vmul.f32 %v1203, %v1203
    %v1205 = vsel %vm1198, %v1204, 0.0
    %1206 = vadd.xlane.f32.xlu0 %v1205
    %v1207 = vpop.xlane.xlu0 %1206
    %v1208 = vmul.f32 %v1207, %v876
    %v1209 = vadd.f32 %v1208, 1e-05
    %v1210 = vrsqrt.pop %v1209
    %v1211 = vmul.f32 %v1203, %v1210
    %v1212 = vmul.f32 %v1211, %v922
    %v1213 = vadd.f32 %v1212, %v934
    %v1214 = vsel %vm1198, %v1213, 0.0
    %1215 = vadd.xlane.f32.xlu0 %v1214
    %v1216 = vpop.xlane.xlu0 %1215
    %v1217 = vmul.f32 %v1216, %v876
    %v1218 = vsub.f32 %v1213, %v1217
    %v1219 = vmul.f32 %v1218, %v1218
    %v1220 = vsel %vm1198, %v1219, 0.0
    %1221 = vadd.xlane.f32.xlu0 %v1220
    %v1222 = vpop.xlane.xlu0 %1221
    %v1223 = vmul.f32 %v1222, %v876
    %v1224 = vadd.f32 %v1223, 1e-05
    %v1225 = vrsqrt.pop %v1224
    %v1226 = vmul.f32 %v1218, %v1225
    %v1227 = vmul.f32 %v1226, %v1001
    %v1228 = vadd.f32 %v1227, %v1013
    %v1229 = vpack.c.bf16 %v1228, %v1228
    %v1230 = vld [vmem:[#allocation10] sm:$0xf]
    %v1231 = vld [vmem:[#allocation10 + $0x4] sm:$0xf]
    %v1232 = vld [vmem:[#allocation10 + $0x8] sm:$0xf]
    %v1233 = vld [vmem:[#allocation10 + $0xc] sm:$0xf]
    %v1234 = vld [vmem:[#allocation10 + $0x10] sm:$0xf]
    %v1235 = vld [vmem:[#allocation10 + $0x14] sm:$0xf]
    %v1236 = vld [vmem:[#allocation10 + $0x18] sm:$0xf]
    %v1237 = vld [vmem:[#allocation10 + $0x1c] sm:$0xf]
    %v1238 = vld [vmem:[#allocation10 + $0x20] sm:$0xf]
    %v1239 = vld [vmem:[#allocation10 + $0x24] sm:$0xf]
    %v1240 = vld [vmem:[#allocation10 + $0x28] sm:$0xf]
    %v1241 = vld [vmem:[#allocation10 + $0x2c] sm:$0xf]
    %v1242 = vld [vmem:[#allocation10 + $0x30] sm:$0xf]
    %v1243 = vld [vmem:[#allocation10 + $0x34] sm:$0xf]
    %v1244 = vld [vmem:[#allocation10 + $0x38] sm:$0xf]
    %v1245 = vld [vmem:[#allocation10 + $0x3c] sm:$0xf]
    %v1246 = vld [vmem:[%s9] sm:$0x1]
    %v1263 = vunpack.c.l.b16 %v1230
    %v1264 = vunpack.c.l.b16 %v1231
    %v1265 = vunpack.c.l.b16 %v1232
    %v1266 = vunpack.c.l.b16 %v1233
    %v1267 = vunpack.c.l.b16 %v1234
    %v1268 = vunpack.c.l.b16 %v1235
    %v1269 = vunpack.c.l.b16 %v1236
    %v1270 = vunpack.c.l.b16 %v1237
    %v1271 = vunpack.c.l.b16 %v1238
    %v1272 = vunpack.c.l.b16 %v1239
    %v1273 = vunpack.c.l.b16 %v1240
    %v1274 = vunpack.c.l.b16 %v1241
    %v1275 = vunpack.c.l.b16 %v1242
    %v1276 = vunpack.c.l.b16 %v1243
    %v1277 = vunpack.c.l.b16 %v1244
    %v1278 = vunpack.c.l.b16 %v1245
    %v1279 = vpack.c.b16 %v1264, %v1263
    %v1280 = vpack.c.b16 %v1266, %v1265
    %v1281 = vpack.c.b16 %v1268, %v1267
    %v1282 = vpack.c.b16 %v1270, %v1269
    %v1283 = vpack.c.b16 %v1272, %v1271
    %v1284 = vpack.c.b16 %v1274, %v1273
    %v1285 = vpack.c.b16 %v1276, %v1275
    %v1286 = vpack.c.b16 %v1278, %v1277
    %1295 = vmatprep.subr.bf16.mxu0 0
    %1296 = vmatpush1.bf16.msra.mxu0 %v1279
    %1297 = vmatprep.subr.bf16.mxu0 0
    %1298 = vmatpush1.bf16.msra.mxu0 %v1280
    %1299 = vmatprep.subr.bf16.mxu0 0
    %1300 = vmatpush1.bf16.msra.mxu0 %v1281
    %1301 = vmatprep.subr.bf16.mxu0 0
    %1302 = vmatpush1.bf16.msra.mxu0 %v1282
    %1303 = vmatprep.subr.bf16.mxu0 0
    %1304 = vmatpush1.bf16.msra.mxu0 %v1283
    %1305 = vmatprep.subr.bf16.mxu0 0
    %1306 = vmatpush1.bf16.msra.mxu0 %v1284
    %1307 = vmatprep.subr.bf16.mxu0 0
    %1308 = vmatpush1.bf16.msra.mxu0 %v1285
    %1309 = vmatprep.subr.bf16.mxu0 0
    %1310 = vmatpush1.bf16.msra.mxu0 %v1286
    %1311 = vmatprep.subr.bf16.mxu0 0
    %1312 = vmatpush1.bf16.msra.mxu0 0
    %1313 = vmatprep.subr.bf16.mxu0 0
    %1314 = vmatpush1.bf16.msra.mxu0 0
    %1315 = vmatprep.subr.bf16.mxu0 0
    %1316 = vmatpush1.bf16.msra.mxu0 0
    %1317 = vmatprep.subr.bf16.mxu0 0
    %1318 = vmatpush1.bf16.msra.mxu0 0
    %1319 = vmatprep.subr.bf16.mxu0 0
    %1320 = vmatpush1.bf16.msra.mxu0 0
    %1321 = vmatprep.subr.bf16.mxu0 0
    %1322 = vmatpush1.bf16.msra.mxu0 0
    %1323 = vmatprep.subr.bf16.mxu0 0
    %1324 = vmatpush1.bf16.msra.mxu0 0
    %1325 = vmatprep.subr.bf16.mxu0 0
    %1326 = vmatpush1.bf16.msra.mxu0 0
    %1327 = vmatprep.mubr.bf16.mxu0 0
    %1328 = vmatmul.mubr.bf16.gmra.mrb[0].mxu0 %v1229
    %v1329 = vpop.f32.mrb[0].mxu0
    %v1330 = vadd.f32 %v1246, %v1329
    %v1331 = vpop.f32.mrb[0].mxu0
    %v1332 = vpop.f32.mrb[0].mxu0
    %v1333 = vpop.f32.mrb[0].mxu0
    %1334 = vdwg.mxu0
    %v1335 = vmul.f32 %v1330, 0.17677669
    %v1336 = vld [vmem:[#allocation5] sm:$0xff]
    %v1337 = vpack.c.bf16 %v1335, %v1335
    %v1338 = vpack.c.bf16 %v1175, %v1171
    %v1339 = vpack.c.bf16 %v1185, %v1181
    %v1340 = vpack.c.bf16 %v1191, %v1191
    %vm1341 = vcmask 261120
    %v1343 = vsel %vm1341, %v1337, 0
    %v1346 = vsel %vm1341, %v1338, 0
    %v1349 = vsel %vm1341, %v1339, 0
    %v1352 = vsel %vm1341, %v1340, 0
    %1354 = vmatprep.subr.bf16.mxu0 0
    %1355 = vmatpush1.bf16.xpose.msra.mxu0 %v1346
    %1356 = vmatprep.subr.bf16.mxu0 0
    %1357 = vmatpush1.bf16.xpose.msra.mxu0 %v1349
    %1358 = vmatprep.subr.bf16.mxu0 0
    %1359 = vmatpush1.bf16.xpose.msra.mxu0 %v1352
    %1360 = vmatprep.subr.bf16.mxu0 0
    %1361 = vmatpush1.bf16.xpose.msra.mxu0 0
    %1362 = vmatprep.subr.bf16.mxu0 0
    %1363 = vmatpush1.bf16.xpose.msra.mxu0 0
    %1364 = vmatprep.subr.bf16.mxu0 0
    %1365 = vmatpush1.bf16.xpose.msra.mxu0 0
    %1366 = vmatprep.subr.bf16.mxu0 0
    %1367 = vmatpush1.bf16.xpose.msra.mxu0 0
    %1368 = vmatprep.subr.bf16.mxu0 0
    %1369 = vmatpush1.bf16.xpose.msra.mxu0 0
    %1370 = vmatprep.subr.bf16.mxu0 0
    %1371 = vmatpush1.bf16.xpose.msra.mxu0 0
    %1372 = vmatprep.subr.bf16.mxu0 0
    %1373 = vmatpush1.bf16.xpose.msra.mxu0 0
    %1374 = vmatprep.subr.bf16.mxu0 0
    %1375 = vmatpush1.bf16.xpose.msra.mxu0 0
    %1376 = vmatprep.subr.bf16.mxu0 0
    %1377 = vmatpush1.bf16.xpose.msra.mxu0 0
    %1378 = vmatprep.subr.bf16.mxu0 0
    %1379 = vmatpush1.bf16.xpose.msra.mxu0 0
    %1380 = vmatprep.subr.bf16.mxu0 0
    %1381 = vmatpush1.bf16.xpose.msra.mxu0 0
    %1382 = vmatprep.subr.bf16.mxu0 0
    %1383 = vmatpush1.bf16.xpose.msra.mxu0 0
    %1384 = vmatprep.subr.bf16.mxu0 0
    %1385 = vmatpush1.bf16.xpose.msra.mxu0 0
    %1386 = vmatprep.mubr.bf16.mxu0 0
    %1387 = vmatmul.mubr.bf16.gmra.mrb[0].mxu0 %v1343
    %v1388 = vpop.f32.mrb[0].mxu0
    %v1389 = vadd.f32 0.0, %v1388
    %v1390 = vpop.f32.mrb[0].mxu0
    %v1391 = vpop.f32.mrb[0].mxu0
    %v1392 = vpop.f32.mrb[0].mxu0
    %1393 = vdwg.mxu0
    %v1394 = vlaneseq
    %v1395 = vshrl.u32 %v1394, 7
    %v1396 = vsub.s32 0, %v1395
    %v1397 = vrot.slane %v1389, %v1396
    %v1398 = vadd.f32 %v1397, %v1336
    %vm1399 = vcmask 326656
    %v1400 = vsel %vm1399, %v1398, -inf
    %1401 = vmax.xlane.f32.xlu0 %v1400
    %v1402 = vpop.xlane.xlu0 %1401
    %v1403 = vsub.f32 %v1398, %v1402
    %v1404 = vmul.f32 %v1403, 1.442695
    %v1405 = vpow.pop %v1404
    %v1406 = vsel %vm1399, %v1405, 0.0
    %1407 = vadd.xlane.f32.xlu0 %v1406
    %v1408 = vpop.xlane.xlu0 %1407
    %v1409 = vrcp.pop %v1408
    %v1410 = vmul.f32 %v1405, %v1409
    %v1411 = vpack.c.bf16 %v1410, %v1410
    %v1412 = vpack.c.bf16 %v1177, %v1173
    %v1413 = vpack.c.bf16 %v1187, %v1183
    %v1414 = vpack.c.bf16 %v1193, %v1193
    %v1416 = vsel %vm1399, %v1411, 0
    %vm1418 = vcmask 1043456
    %v1420 = vsel %vm1418, %v1414, 0
    %1422 = vmatprep.subr.bf16.mxu0 0
    %1423 = vmatpush1.bf16.msra.mxu0 %v1412
    %1424 = vmatprep.subr.bf16.mxu0 0
    %1425 = vmatpush1.bf16.msra.mxu0 %v1413
    %1426 = vmatprep.subr.bf16.mxu0 0
    %1427 = vmatpush1.bf16.msra.mxu0 %v1420
    %1428 = vmatprep.subr.bf16.mxu0 0
    %1429 = vmatpush1.bf16.msra.mxu0 0
    %1430 = vmatprep.subr.bf16.mxu0 0
    %1431 = vmatpush1.bf16.msra.mxu0 0
    %1432 = vmatprep.subr.bf16.mxu0 0
    %1433 = vmatpush1.bf16.msra.mxu0 0
    %1434 = vmatprep.subr.bf16.mxu0 0
    %1435 = vmatpush1.bf16.msra.mxu0 0
    %1436 = vmatprep.subr.bf16.mxu0 0
    %1437 = vmatpush1.bf16.msra.mxu0 0
    %1438 = vmatprep.subr.bf16.mxu0 0
    %1439 = vmatpush1.bf16.msra.mxu0 0
    %1440 = vmatprep.subr.bf16.mxu0 0
    %1441 = vmatpush1.bf16.msra.mxu0 0
    %1442 = vmatprep.subr.bf16.mxu0 0
    %1443 = vmatpush1.bf16.msra.mxu0 0
    %1444 = vmatprep.subr.bf16.mxu0 0
    %1445 = vmatpush1.bf16.msra.mxu0 0
    %1446 = vmatprep.subr.bf16.mxu0 0
    %1447 = vmatpush1.bf16.msra.mxu0 0
    %1448 = vmatprep.subr.bf16.mxu0 0
    %1449 = vmatpush1.bf16.msra.mxu0 0
    %1450 = vmatprep.subr.bf16.mxu0 0
    %1451 = vmatpush1.bf16.msra.mxu0 0
    %1452 = vmatprep.subr.bf16.mxu0 0
    %1453 = vmatpush1.bf16.msra.mxu0 0
    %1454 = vmatprep.mubr.bf16.mxu0 0
    %1455 = vmatmul.mubr.bf16.gmra.mrb[0].mxu0 %v1416
    %v1456 = vpop.f32.mrb[0].mxu0
    %v1457 = vadd.f32 0.0, %v1456
    %v1458 = vpop.f32.mrb[0].mxu0
    %v1459 = vpop.f32.mrb[0].mxu0
    %v1460 = vpop.f32.mrb[0].mxu0
    %1461 = vdwg.mxu0
    %v1462 = vpack.c.bf16 %v1457, %v1457
    %v1463 = vld [vmem:[#allocation13] sm:$0xf]
    %v1464 = vld [vmem:[#allocation13 + $0x4] sm:$0xf]
    %v1465 = vld [vmem:[#allocation13 + $0x8] sm:$0xf]
    %v1466 = vld [vmem:[#allocation13 + $0xc] sm:$0xf]
    %1468 = vrot.lane.b32.xlu0 %v1337, 96
    %v1469 = vpop.permute.xlu0 %1468
    %1473 = vrot.lane.b32.xlu0 %v1338, 96
    %v1474 = vpop.permute.xlu0 %1473
    %1475 = vrot.lane.b32.xlu0 %v1339, 96
    %v1476 = vpop.permute.xlu0 %1475
    %1477 = vrot.lane.b32.xlu0 %v1340, 96
    %v1478 = vpop.permute.xlu0 %1477
    %v1480 = vsel %vm1341, %v1469, 0
    %v1483 = vsel %vm1341, %v1474, 0
    %v1486 = vsel %vm1341, %v1476, 0
    %v1489 = vsel %vm1341, %v1478, 0
    %1491 = vmatprep.subr.bf16.mxu0 0
    %1492 = vmatpush1.bf16.xpose.msra.mxu0 %v1483
    %1493 = vmatprep.subr.bf16.mxu0 0
    %1494 = vmatpush1.bf16.xpose.msra.mxu0 %v1486
    %1495 = vmatprep.subr.bf16.mxu0 0
    %1496 = vmatpush1.bf16.xpose.msra.mxu0 %v1489
    %1497 = vmatprep.subr.bf16.mxu0 0
    %1498 = vmatpush1.bf16.xpose.msra.mxu0 0
    %1499 = vmatprep.subr.bf16.mxu0 0
    %1500 = vmatpush1.bf16.xpose.msra.mxu0 0
    %1501 = vmatprep.subr.bf16.mxu0 0
    %1502 = vmatpush1.bf16.xpose.msra.mxu0 0
    %1503 = vmatprep.subr.bf16.mxu0 0
    %1504 = vmatpush1.bf16.xpose.msra.mxu0 0
    %1505 = vmatprep.subr.bf16.mxu0 0
    %1506 = vmatpush1.bf16.xpose.msra.mxu0 0
    %1507 = vmatprep.subr.bf16.mxu0 0
    %1508 = vmatpush1.bf16.xpose.msra.mxu0 0
    %1509 = vmatprep.subr.bf16.mxu0 0
    %1510 = vmatpush1.bf16.xpose.msra.mxu0 0
    %1511 = vmatprep.subr.bf16.mxu0 0
    %1512 = vmatpush1.bf16.xpose.msra.mxu0 0
    %1513 = vmatprep.subr.bf16.mxu0 0
    %1514 = vmatpush1.bf16.xpose.msra.mxu0 0
    %1515 = vmatprep.subr.bf16.mxu0 0
    %1516 = vmatpush1.bf16.xpose.msra.mxu0 0
    %1517 = vmatprep.subr.bf16.mxu0 0
    %1518 = vmatpush1.bf16.xpose.msra.mxu0 0
    %1519 = vmatprep.subr.bf16.mxu0 0
    %1520 = vmatpush1.bf16.xpose.msra.mxu0 0
    %1521 = vmatprep.subr.bf16.mxu0 0
    %1522 = vmatpush1.bf16.xpose.msra.mxu0 0
    %1523 = vmatprep.mubr.bf16.mxu0 0
    %1524 = vmatmul.mubr.bf16.gmra.mrb[0].mxu0 %v1480
    %v1525 = vpop.f32.mrb[0].mxu0
    %v1526 = vadd.f32 0.0, %v1525
    %v1527 = vpop.f32.mrb[0].mxu0
    %v1528 = vpop.f32.mrb[0].mxu0
    %v1529 = vpop.f32.mrb[0].mxu0
    %1530 = vdwg.mxu0
    %v1531 = vlaneseq
    %v1532 = vshrl.u32 %v1531, 7
    %v1533 = vsub.s32 0, %v1532
    %v1534 = vrot.slane %v1526, %v1533
    %v1535 = vadd.f32 %v1534, %v1336
    %v1536 = vsel %vm1399, %v1535, -inf
    %1537 = vmax.xlane.f32.xlu0 %v1536
    %v1538 = vpop.xlane.xlu0 %1537
    %v1539 = vsub.f32 %v1535, %v1538
    %v1540 = vmul.f32 %v1539, 1.442695
    %v1541 = vpow.pop %v1540
    %v1542 = vsel %vm1399, %v1541, 0.0
    %1543 = vadd.xlane.f32.xlu0 %v1542
    %v1544 = vpop.xlane.xlu0 %1543
    %v1545 = vrcp.pop %v1544
    %v1546 = vmul.f32 %v1541, %v1545
    %v1547 = vpack.c.bf16 %v1546, %v1546
    %1551 = vrot.lane.b32.xlu0 %v1412, 96
    %v1552 = vpop.permute.xlu0 %1551
    %1553 = vrot.lane.b32.xlu0 %v1413, 96
    %v1554 = vpop.permute.xlu0 %1553
    %1555 = vrot.lane.b32.xlu0 %v1414, 96
    %v1556 = vpop.permute.xlu0 %1555
    %v1560 = vsel %vm1399, %v1547, 0
    %v1563 = vsel %vm1418, %v1556, 0
    %1565 = vmatprep.subr.bf16.mxu0 0
    %1566 = vmatpush1.bf16.msra.mxu0 %v1552
    %1567 = vmatprep.subr.bf16.mxu0 0
    %1568 = vmatpush1.bf16.msra.mxu0 %v1554
    %1569 = vmatprep.subr.bf16.mxu0 0
    %1570 = vmatpush1.bf16.msra.mxu0 %v1563
    %1571 = vmatprep.subr.bf16.mxu0 0
    %1572 = vmatpush1.bf16.msra.mxu0 0
    %1573 = vmatprep.subr.bf16.mxu0 0
    %1574 = vmatpush1.bf16.msra.mxu0 0
    %1575 = vmatprep.subr.bf16.mxu0 0
    %1576 = vmatpush1.bf16.msra.mxu0 0
    %1577 = vmatprep.subr.bf16.mxu0 0
    %1578 = vmatpush1.bf16.msra.mxu0 0
    %1579 = vmatprep.subr.bf16.mxu0 0
    %1580 = vmatpush1.bf16.msra.mxu0 0
    %1581 = vmatprep.subr.bf16.mxu0 0
    %1582 = vmatpush1.bf16.msra.mxu0 0
    %1583 = vmatprep.subr.bf16.mxu0 0
    %1584 = vmatpush1.bf16.msra.mxu0 0
    %1585 = vmatprep.subr.bf16.mxu0 0
    %1586 = vmatpush1.bf16.msra.mxu0 0
    %1587 = vmatprep.subr.bf16.mxu0 0
    %1588 = vmatpush1.bf16.msra.mxu0 0
    %1589 = vmatprep.subr.bf16.mxu0 0
    %1590 = vmatpush1.bf16.msra.mxu0 0
    %1591 = vmatprep.subr.bf16.mxu0 0
    %1592 = vmatpush1.bf16.msra.mxu0 0
    %1593 = vmatprep.subr.bf16.mxu0 0
    %1594 = vmatpush1.bf16.msra.mxu0 0
    %1595 = vmatprep.subr.bf16.mxu0 0
    %1596 = vmatpush1.bf16.msra.mxu0 0
    %1597 = vmatprep.mubr.bf16.mxu0 0
    %1598 = vmatmul.mubr.bf16.gmra.mrb[0].mxu0 %v1560
    %v1599 = vpop.f32.mrb[0].mxu0
    %v1600 = vadd.f32 0.0, %v1599
    %v1601 = vpop.f32.mrb[0].mxu0
    %v1602 = vpop.f32.mrb[0].mxu0
    %v1603 = vpop.f32.mrb[0].mxu0
    %1604 = vdwg.mxu0
    %v1605 = vpack.c.bf16 %v1600, %v1600
    %v1606 = vld [vmem:[#allocation13 + $0x10] sm:$0xf]
    %v1607 = vld [vmem:[#allocation13 + $0x14] sm:$0xf]
    %v1608 = vld [vmem:[#allocation13 + $0x18] sm:$0xf]
    %v1609 = vld [vmem:[#allocation13 + $0x1c] sm:$0xf]
    %v1614 = vunpack.c.l.b16 %v1606
    %v1615 = vunpack.c.l.b16 %v1607
    %v1616 = vunpack.c.l.b16 %v1608
    %v1617 = vunpack.c.l.b16 %v1609
    %v1618 = vpack.c.b16 %v1615, %v1614
    %v1619 = vpack.c.b16 %v1617, %v1616
    %v1623 = vsel %vm1341, %v1605, 0
    %1625 = vmatprep.subr.bf16.mxu0 0
    %1626 = vmatpush1.bf16.msra.mxu0 %v1618
    %1627 = vmatprep.subr.bf16.mxu0 0
    %1628 = vmatpush1.bf16.msra.mxu0 %v1619
    %1629 = vmatprep.subr.bf16.mxu0 0
    %1630 = vmatpush1.bf16.msra.mxu0 0
    %1631 = vmatprep.subr.bf16.mxu0 0
    %1632 = vmatpush1.bf16.msra.mxu0 0
    %1633 = vmatprep.subr.bf16.mxu0 0
    %1634 = vmatpush1.bf16.msra.mxu0 0
    %1635 = vmatprep.subr.bf16.mxu0 0
    %1636 = vmatpush1.bf16.msra.mxu0 0
    %1637 = vmatprep.subr.bf16.mxu0 0
    %1638 = vmatpush1.bf16.msra.mxu0 0
    %1639 = vmatprep.subr.bf16.mxu0 0
    %1640 = vmatpush1.bf16.msra.mxu0 0
    %1641 = vmatprep.subr.bf16.mxu0 0
    %1642 = vmatpush1.bf16.msra.mxu0 0
    %1643 = vmatprep.subr.bf16.mxu0 0
    %1644 = vmatpush1.bf16.msra.mxu0 0
    %1645 = vmatprep.subr.bf16.mxu0 0
    %1646 = vmatpush1.bf16.msra.mxu0 0
    %1647 = vmatprep.subr.bf16.mxu0 0
    %1648 = vmatpush1.bf16.msra.mxu0 0
    %1649 = vmatprep.subr.bf16.mxu0 0
    %1650 = vmatpush1.bf16.msra.mxu0 0
    %1651 = vmatprep.subr.bf16.mxu0 0
    %1652 = vmatpush1.bf16.msra.mxu0 0
    %1653 = vmatprep.subr.bf16.mxu0 0
    %1654 = vmatpush1.bf16.msra.mxu0 0
    %1655 = vmatprep.subr.bf16.mxu0 0
    %1656 = vmatpush1.bf16.msra.mxu0 0
    %1657 = vmatprep.mubr.bf16.mxu0 0
    %1658 = vmatmul.mubr.bf16.gmra.mrb[0].mxu0 %v1623
    %v1659 = vpop.f32.mrb[0].mxu0
    %v1660 = vadd.f32 0.0, %v1659
    %v1661 = vpop.f32.mrb[0].mxu0
    %v1662 = vpop.f32.mrb[0].mxu0
    %v1663 = vpop.f32.mrb[0].mxu0
    %1664 = vdwg.mxu0
    %v1669 = vunpack.c.l.b16 %v1463
    %v1670 = vunpack.c.l.b16 %v1464
    %v1671 = vunpack.c.l.b16 %v1465
    %v1672 = vunpack.c.l.b16 %v1466
    %v1673 = vpack.c.b16 %v1670, %v1669
    %v1674 = vpack.c.b16 %v1672, %v1671
    %v1678 = vsel %vm1341, %v1462, 0
    %1680 = vmatprep.subr.bf16.mxu0 0
    %1681 = vmatpush1.bf16.msra.mxu0 %v1673
    %1682 = vmatprep.subr.bf16.mxu0 0
    %1683 = vmatpush1.bf16.msra.mxu0 %v1674
    %1684 = vmatprep.subr.bf16.mxu0 0
    %1685 = vmatpush1.bf16.msra.mxu0 0
    %1686 = vmatprep.subr.bf16.mxu0 0
    %1687 = vmatpush1.bf16.msra.mxu0 0
    %1688 = vmatprep.subr.bf16.mxu0 0
    %1689 = vmatpush1.bf16.msra.mxu0 0
    %1690 = vmatprep.subr.bf16.mxu0 0
    %1691 = vmatpush1.bf16.msra.mxu0 0
    %1692 = vmatprep.subr.bf16.mxu0 0
    %1693 = vmatpush1.bf16.msra.mxu0 0
    %1694 = vmatprep.subr.bf16.mxu0 0
    %1695 = vmatpush1.bf16.msra.mxu0 0
    %1696 = vmatprep.subr.bf16.mxu0 0
    %1697 = vmatpush1.bf16.msra.mxu0 0
    %1698 = vmatprep.subr.bf16.mxu0 0
    %1699 = vmatpush1.bf16.msra.mxu0 0
    %1700 = vmatprep.subr.bf16.mxu0 0
    %1701 = vmatpush1.bf16.msra.mxu0 0
    %1702 = vmatprep.subr.bf16.mxu0 0
    %1703 = vmatpush1.bf16.msra.mxu0 0
    %1704 = vmatprep.subr.bf16.mxu0 0
    %1705 = vmatpush1.bf16.msra.mxu0 0
    %1706 = vmatprep.subr.bf16.mxu0 0
    %1707 = vmatpush1.bf16.msra.mxu0 0
    %1708 = vmatprep.subr.bf16.mxu0 0
    %1709 = vmatpush1.bf16.msra.mxu0 0
    %1710 = vmatprep.subr.bf16.mxu0 0
    %1711 = vmatpush1.bf16.msra.mxu0 0
    %1712 = vmatprep.mubr.bf16.mxu0 0
    %1713 = vmatmul.mubr.bf16.gmra.mrb[0].mxu0 %v1678
    %v1714 = vpop.f32.mrb[0].mxu0
    %v1715 = vadd.f32 %v1660, %v1714
    %v1716 = vpop.f32.mrb[0].mxu0
    %v1717 = vpop.f32.mrb[0].mxu0
    %v1718 = vpop.f32.mrb[0].mxu0
    %1719 = vdwg.mxu0
    %1720 = vrot.lane.b32.xlu0 %v1337, 64
    %v1721 = vpop.permute.xlu0 %1720
    %1722 = vrot.lane.b32.xlu0 %v1338, 64
    %v1723 = vpop.permute.xlu0 %1722
    %1724 = vrot.lane.b32.xlu0 %v1339, 64
    %v1725 = vpop.permute.xlu0 %1724
    %1726 = vrot.lane.b32.xlu0 %v1340, 64
    %v1727 = vpop.permute.xlu0 %1726
    %v1729 = vsel %vm1341, %v1721, 0
    %v1732 = vsel %vm1341, %v1723, 0
    %v1735 = vsel %vm1341, %v1725, 0
    %v1738 = vsel %vm1341, %v1727, 0
    %1740 = vmatprep.subr.bf16.mxu0 0
    %1741 = vmatpush1.bf16.xpose.msra.mxu0 %v1732
    %1742 = vmatprep.subr.bf16.mxu0 0
    %1743 = vmatpush1.bf16.xpose.msra.mxu0 %v1735
    %1744 = vmatprep.subr.bf16.mxu0 0
    %1745 = vmatpush1.bf16.xpose.msra.mxu0 %v1738
    %1746 = vmatprep.subr.bf16.mxu0 0
    %1747 = vmatpush1.bf16.xpose.msra.mxu0 0
    %1748 = vmatprep.subr.bf16.mxu0 0
    %1749 = vmatpush1.bf16.xpose.msra.mxu0 0
    %1750 = vmatprep.subr.bf16.mxu0 0
    %1751 = vmatpush1.bf16.xpose.msra.mxu0 0
    %1752 = vmatprep.subr.bf16.mxu0 0
    %1753 = vmatpush1.bf16.xpose.msra.mxu0 0
    %1754 = vmatprep.subr.bf16.mxu0 0
    %1755 = vmatpush1.bf16.xpose.msra.mxu0 0
    %1756 = vmatprep.subr.bf16.mxu0 0
    %1757 = vmatpush1.bf16.xpose.msra.mxu0 0
    %1758 = vmatprep.subr.bf16.mxu0 0
    %1759 = vmatpush1.bf16.xpose.msra.mxu0 0
    %1760 = vmatprep.subr.bf16.mxu0 0
    %1761 = vmatpush1.bf16.xpose.msra.mxu0 0
    %1762 = vmatprep.subr.bf16.mxu0 0
    %1763 = vmatpush1.bf16.xpose.msra.mxu0 0
    %1764 = vmatprep.subr.bf16.mxu0 0
    %1765 = vmatpush1.bf16.xpose.msra.mxu0 0
    %1766 = vmatprep.subr.bf16.mxu0 0
    %1767 = vmatpush1.bf16.xpose.msra.mxu0 0
    %1768 = vmatprep.subr.bf16.mxu0 0
    %1769 = vmatpush1.bf16.xpose.msra.mxu0 0
    %1770 = vmatprep.subr.bf16.mxu0 0
    %1771 = vmatpush1.bf16.xpose.msra.mxu0 0
    %1772 = vmatprep.mubr.bf16.mxu0 0
    %1773 = vmatmul.mubr.bf16.gmra.mrb[0].mxu0 %v1729
    %v1774 = vpop.f32.mrb[0].mxu0
    %v1775 = vadd.f32 0.0, %v1774
    %v1776 = vpop.f32.mrb[0].mxu0
    %v1777 = vpop.f32.mrb[0].mxu0
    %v1778 = vpop.f32.mrb[0].mxu0
    %1779 = vdwg.mxu0
    %v1780 = vlaneseq
    %v1781 = vshrl.u32 %v1780, 7
    %v1782 = vsub.s32 0, %v1781
    %v1783 = vrot.slane %v1775, %v1782
    %v1784 = vadd.f32 %v1783, %v1336
    %v1785 = vsel %vm1399, %v1784, -inf
    %1786 = vmax.xlane.f32.xlu0 %v1785
    %v1787 = vpop.xlane.xlu0 %1786
    %v1788 = vsub.f32 %v1784, %v1787
    %v1789 = vmul.f32 %v1788, 1.442695
    %v1790 = vpow.pop %v1789
    %v1791 = vsel %vm1399, %v1790, 0.0
    %1792 = vadd.xlane.f32.xlu0 %v1791
    %v1793 = vpop.xlane.xlu0 %1792
    %v1794 = vrcp.pop %v1793
    %v1795 = vmul.f32 %v1790, %v1794
    %v1796 = vpack.c.bf16 %v1795, %v1795
    %1797 = vrot.lane.b32.xlu0 %v1412, 64
    %v1798 = vpop.permute.xlu0 %1797
    %1799 = vrot.lane.b32.xlu0 %v1413, 64
    %v1800 = vpop.permute.xlu0 %1799
    %1801 = vrot.lane.b32.xlu0 %v1414, 64
    %v1802 = vpop.permute.xlu0 %1801
    %v1806 = vsel %vm1399, %v1796, 0
    %v1809 = vsel %vm1418, %v1802, 0
    %1811 = vmatprep.subr.bf16.mxu0 0
    %1812 = vmatpush1.bf16.msra.mxu0 %v1798
    %1813 = vmatprep.subr.bf16.mxu0 0
    %1814 = vmatpush1.bf16.msra.mxu0 %v1800
    %1815 = vmatprep.subr.bf16.mxu0 0
    %1816 = vmatpush1.bf16.msra.mxu0 %v1809
    %1817 = vmatprep.subr.bf16.mxu0 0
    %1818 = vmatpush1.bf16.msra.mxu0 0
    %1819 = vmatprep.subr.bf16.mxu0 0
    %1820 = vmatpush1.bf16.msra.mxu0 0
    %1821 = vmatprep.subr.bf16.mxu0 0
    %1822 = vmatpush1.bf16.msra.mxu0 0
    %1823 = vmatprep.subr.bf16.mxu0 0
    %1824 = vmatpush1.bf16.msra.mxu0 0
    %1825 = vmatprep.subr.bf16.mxu0 0
    %1826 = vmatpush1.bf16.msra.mxu0 0
    %1827 = vmatprep.subr.bf16.mxu0 0
    %1828 = vmatpush1.bf16.msra.mxu0 0
    %1829 = vmatprep.subr.bf16.mxu0 0
    %1830 = vmatpush1.bf16.msra.mxu0 0
    %1831 = vmatprep.subr.bf16.mxu0 0
    %1832 = vmatpush1.bf16.msra.mxu0 0
    %1833 = vmatprep.subr.bf16.mxu0 0
    %1834 = vmatpush1.bf16.msra.mxu0 0
    %1835 = vmatprep.subr.bf16.mxu0 0
    %1836 = vmatpush1.bf16.msra.mxu0 0
    %1837 = vmatprep.subr.bf16.mxu0 0
    %1838 = vmatpush1.bf16.msra.mxu0 0
    %1839 = vmatprep.subr.bf16.mxu0 0
    %1840 = vmatpush1.bf16.msra.mxu0 0
    %1841 = vmatprep.subr.bf16.mxu0 0
    %1842 = vmatpush1.bf16.msra.mxu0 0
    %1843 = vmatprep.mubr.bf16.mxu0 0
    %1844 = vmatmul.mubr.bf16.gmra.mrb[0].mxu0 %v1806
    %v1845 = vpop.f32.mrb[0].mxu0
    %v1846 = vadd.f32 0.0, %v1845
    %v1847 = vpop.f32.mrb[0].mxu0
    %v1848 = vpop.f32.mrb[0].mxu0
    %v1849 = vpop.f32.mrb[0].mxu0
    %1850 = vdwg.mxu0
    %v1851 = vpack.c.bf16 %v1846, %v1846
    %v1852 = vld [vmem:[#allocation13 + $0x20] sm:$0xf]
    %v1853 = vld [vmem:[#allocation13 + $0x24] sm:$0xf]
    %v1854 = vld [vmem:[#allocation13 + $0x28] sm:$0xf]
    %v1855 = vld [vmem:[#allocation13 + $0x2c] sm:$0xf]
    %v1860 = vunpack.c.l.b16 %v1852
    %v1861 = vunpack.c.l.b16 %v1853
    %v1862 = vunpack.c.l.b16 %v1854
    %v1863 = vunpack.c.l.b16 %v1855
    %v1864 = vpack.c.b16 %v1861, %v1860
    %v1865 = vpack.c.b16 %v1863, %v1862
    %v1869 = vsel %vm1341, %v1851, 0
    %1871 = vmatprep.subr.bf16.mxu0 0
    %1872 = vmatpush1.bf16.msra.mxu0 %v1864
    %1873 = vmatprep.subr.bf16.mxu0 0
    %1874 = vmatpush1.bf16.msra.mxu0 %v1865
    %1875 = vmatprep.subr.bf16.mxu0 0
    %1876 = vmatpush1.bf16.msra.mxu0 0
    %1877 = vmatprep.subr.bf16.mxu0 0
    %1878 = vmatpush1.bf16.msra.mxu0 0
    %1879 = vmatprep.subr.bf16.mxu0 0
    %1880 = vmatpush1.bf16.msra.mxu0 0
    %1881 = vmatprep.subr.bf16.mxu0 0
    %1882 = vmatpush1.bf16.msra.mxu0 0
    %1883 = vmatprep.subr.bf16.mxu0 0
    %1884 = vmatpush1.bf16.msra.mxu0 0
    %1885 = vmatprep.subr.bf16.mxu0 0
    %1886 = vmatpush1.bf16.msra.mxu0 0
    %1887 = vmatprep.subr.bf16.mxu0 0
    %1888 = vmatpush1.bf16.msra.mxu0 0
    %1889 = vmatprep.subr.bf16.mxu0 0
    %1890 = vmatpush1.bf16.msra.mxu0 0
    %1891 = vmatprep.subr.bf16.mxu0 0
    %1892 = vmatpush1.bf16.msra.mxu0 0
    %1893 = vmatprep.subr.bf16.mxu0 0
    %1894 = vmatpush1.bf16.msra.mxu0 0
    %1895 = vmatprep.subr.bf16.mxu0 0
    %1896 = vmatpush1.bf16.msra.mxu0 0
    %1897 = vmatprep.subr.bf16.mxu0 0
    %1898 = vmatpush1.bf16.msra.mxu0 0
    %1899 = vmatprep.subr.bf16.mxu0 0
    %1900 = vmatpush1.bf16.msra.mxu0 0
    %1901 = vmatprep.subr.bf16.mxu0 0
    %1902 = vmatpush1.bf16.msra.mxu0 0
    %1903 = vmatprep.mubr.bf16.mxu0 0
    %1904 = vmatmul.mubr.bf16.gmra.mrb[0].mxu0 %v1869
    %v1905 = vpop.f32.mrb[0].mxu0
    %v1906 = vadd.f32 0.0, %v1905
    %v1907 = vpop.f32.mrb[0].mxu0
    %v1908 = vpop.f32.mrb[0].mxu0
    %v1909 = vpop.f32.mrb[0].mxu0
    %1910 = vdwg.mxu0
    %v1911 = vadd.f32 %v1715, %v1906
    %1912 = vrot.lane.b32.xlu0 %v1337, 32
    %v1913 = vpop.permute.xlu0 %1912
    %1914 = vrot.lane.b32.xlu0 %v1338, 32
    %v1915 = vpop.permute.xlu0 %1914
    %1916 = vrot.lane.b32.xlu0 %v1339, 32
    %v1917 = vpop.permute.xlu0 %1916
    %1918 = vrot.lane.b32.xlu0 %v1340, 32
    %v1919 = vpop.permute.xlu0 %1918
    %v1921 = vsel %vm1341, %v1913, 0
    %v1924 = vsel %vm1341, %v1915, 0
    %v1927 = vsel %vm1341, %v1917, 0
    %v1930 = vsel %vm1341, %v1919, 0
    %1932 = vmatprep.subr.bf16.mxu0 0
    %1933 = vmatpush1.bf16.xpose.msra.mxu0 %v1924
    %1934 = vmatprep.subr.bf16.mxu0 0
    %1935 = vmatpush1.bf16.xpose.msra.mxu0 %v1927
    %1936 = vmatprep.subr.bf16.mxu0 0
    %1937 = vmatpush1.bf16.xpose.msra.mxu0 %v1930
    %1938 = vmatprep.subr.bf16.mxu0 0
    %1939 = vmatpush1.bf16.xpose.msra.mxu0 0
    %1940 = vmatprep.subr.bf16.mxu0 0
    %1941 = vmatpush1.bf16.xpose.msra.mxu0 0
    %1942 = vmatprep.subr.bf16.mxu0 0
    %1943 = vmatpush1.bf16.xpose.msra.mxu0 0
    %1944 = vmatprep.subr.bf16.mxu0 0
    %1945 = vmatpush1.bf16.xpose.msra.mxu0 0
    %1946 = vmatprep.subr.bf16.mxu0 0
    %1947 = vmatpush1.bf16.xpose.msra.mxu0 0
    %1948 = vmatprep.subr.bf16.mxu0 0
    %1949 = vmatpush1.bf16.xpose.msra.mxu0 0
    %1950 = vmatprep.subr.bf16.mxu0 0
    %1951 = vmatpush1.bf16.xpose.msra.mxu0 0
    %1952 = vmatprep.subr.bf16.mxu0 0
    %1953 = vmatpush1.bf16.xpose.msra.mxu0 0
    %1954 = vmatprep.subr.bf16.mxu0 0
    %1955 = vmatpush1.bf16.xpose.msra.mxu0 0
    %1956 = vmatprep.subr.bf16.mxu0 0
    %1957 = vmatpush1.bf16.xpose.msra.mxu0 0
    %1958 = vmatprep.subr.bf16.mxu0 0
    %1959 = vmatpush1.bf16.xpose.msra.mxu0 0
    %1960 = vmatprep.subr.bf16.mxu0 0
    %1961 = vmatpush1.bf16.xpose.msra.mxu0 0
    %1962 = vmatprep.subr.bf16.mxu0 0
    %1963 = vmatpush1.bf16.xpose.msra.mxu0 0
    %1964 = vmatprep.mubr.bf16.mxu0 0
    %1965 = vmatmul.mubr.bf16.gmra.mrb[0].mxu0 %v1921
    %v1966 = vpop.f32.mrb[0].mxu0
    %v1967 = vadd.f32 0.0, %v1966
    %v1968 = vpop.f32.mrb[0].mxu0
    %v1969 = vpop.f32.mrb[0].mxu0
    %v1970 = vpop.f32.mrb[0].mxu0
    %1971 = vdwg.mxu0
    %v1972 = vlaneseq
    %v1973 = vshrl.u32 %v1972, 7
    %v1974 = vsub.s32 0, %v1973
    %v1975 = vrot.slane %v1967, %v1974
    %v1976 = vadd.f32 %v1975, %v1336
    %v1977 = vsel %vm1399, %v1976, -inf
    %1978 = vmax.xlane.f32.xlu0 %v1977
    %v1979 = vpop.xlane.xlu0 %1978
    %v1980 = vsub.f32 %v1976, %v1979
    %v1981 = vmul.f32 %v1980, 1.442695
    %v1982 = vpow.pop %v1981
    %v1983 = vsel %vm1399, %v1982, 0.0
    %1984 = vadd.xlane.f32.xlu0 %v1983
    %v1985 = vpop.xlane.xlu0 %1984
    %v1986 = vrcp.pop %v1985
    %v1987 = vmul.f32 %v1982, %v1986
    %v1988 = vpack.c.bf16 %v1987, %v1987
    %1989 = vrot.lane.b32.xlu0 %v1412, 32
    %v1990 = vpop.permute.xlu0 %1989
    %1991 = vrot.lane.b32.xlu0 %v1413, 32
    %v1992 = vpop.permute.xlu0 %1991
    %1993 = vrot.lane.b32.xlu0 %v1414, 32
    %v1994 = vpop.permute.xlu0 %1993
    %v1998 = vsel %vm1399, %v1988, 0
    %v2001 = vsel %vm1418, %v1994, 0
    %2003 = vmatprep.subr.bf16.mxu0 0
    %2004 = vmatpush1.bf16.msra.mxu0 %v1990
    %2005 = vmatprep.subr.bf16.mxu0 0
    %2006 = vmatpush1.bf16.msra.mxu0 %v1992
    %2007 = vmatprep.subr.bf16.mxu0 0
    %2008 = vmatpush1.bf16.msra.mxu0 %v2001
    %2009 = vmatprep.subr.bf16.mxu0 0
    %2010 = vmatpush1.bf16.msra.mxu0 0
    %2011 = vmatprep.subr.bf16.mxu0 0
    %2012 = vmatpush1.bf16.msra.mxu0 0
    %2013 = vmatprep.subr.bf16.mxu0 0
    %2014 = vmatpush1.bf16.msra.mxu0 0
    %2015 = vmatprep.subr.bf16.mxu0 0
    %2016 = vmatpush1.bf16.msra.mxu0 0
    %2017 = vmatprep.subr.bf16.mxu0 0
    %2018 = vmatpush1.bf16.msra.mxu0 0
    %2019 = vmatprep.subr.bf16.mxu0 0
    %2020 = vmatpush1.bf16.msra.mxu0 0
    %2021 = vmatprep.subr.bf16.mxu0 0
    %2022 = vmatpush1.bf16.msra.mxu0 0
    %2023 = vmatprep.subr.bf16.mxu0 0
    %2024 = vmatpush1.bf16.msra.mxu0 0
    %2025 = vmatprep.subr.bf16.mxu0 0
    %2026 = vmatpush1.bf16.msra.mxu0 0
    %2027 = vmatprep.subr.bf16.mxu0 0
    %2028 = vmatpush1.bf16.msra.mxu0 0
    %2029 = vmatprep.subr.bf16.mxu0 0
    %2030 = vmatpush1.bf16.msra.mxu0 0
    %2031 = vmatprep.subr.bf16.mxu0 0
    %2032 = vmatpush1.bf16.msra.mxu0 0
    %2033 = vmatprep.subr.bf16.mxu0 0
    %2034 = vmatpush1.bf16.msra.mxu0 0
    %2035 = vmatprep.mubr.bf16.mxu0 0
    %2036 = vmatmul.mubr.bf16.gmra.mrb[0].mxu0 %v1998
    %v2037 = vpop.f32.mrb[0].mxu0
    %v2038 = vadd.f32 0.0, %v2037
    %v2039 = vpop.f32.mrb[0].mxu0
    %v2040 = vpop.f32.mrb[0].mxu0
    %v2041 = vpop.f32.mrb[0].mxu0
    %2042 = vdwg.mxu0
    %v2043 = vpack.c.bf16 %v2038, %v2038
    %v2044 = vld [vmem:[#allocation13 + $0x30] sm:$0xf]
    %v2045 = vld [vmem:[#allocation13 + $0x34] sm:$0xf]
    %v2046 = vld [vmem:[#allocation13 + $0x38] sm:$0xf]
    %v2047 = vld [vmem:[#allocation13 + $0x3c] sm:$0xf]
    %v2052 = vunpack.c.l.b16 %v2044
    %v2053 = vunpack.c.l.b16 %v2045
    %v2054 = vunpack.c.l.b16 %v2046
    %v2055 = vunpack.c.l.b16 %v2047
    %v2056 = vpack.c.b16 %v2053, %v2052
    %v2057 = vpack.c.b16 %v2055, %v2054
    %v2061 = vsel %vm1341, %v2043, 0
    %2063 = vmatprep.subr.bf16.mxu0 0
    %2064 = vmatpush1.bf16.msra.mxu0 %v2056
    %2065 = vmatprep.subr.bf16.mxu0 0
    %2066 = vmatpush1.bf16.msra.mxu0 %v2057
    %2067 = vmatprep.subr.bf16.mxu0 0
    %2068 = vmatpush1.bf16.msra.mxu0 0
    %2069 = vmatprep.subr.bf16.mxu0 0
    %2070 = vmatpush1.bf16.msra.mxu0 0
    %2071 = vmatprep.subr.bf16.mxu0 0
    %2072 = vmatpush1.bf16.msra.mxu0 0
    %2073 = vmatprep.subr.bf16.mxu0 0
    %2074 = vmatpush1.bf16.msra.mxu0 0
    %2075 = vmatprep.subr.bf16.mxu0 0
    %2076 = vmatpush1.bf16.msra.mxu0 0
    %2077 = vmatprep.subr.bf16.mxu0 0
    %2078 = vmatpush1.bf16.msra.mxu0 0
    %2079 = vmatprep.subr.bf16.mxu0 0
    %2080 = vmatpush1.bf16.msra.mxu0 0
    %2081 = vmatprep.subr.bf16.mxu0 0
    %2082 = vmatpush1.bf16.msra.mxu0 0
    %2083 = vmatprep.subr.bf16.mxu0 0
    %2084 = vmatpush1.bf16.msra.mxu0 0
    %2085 = vmatprep.subr.bf16.mxu0 0
    %2086 = vmatpush1.bf16.msra.mxu0 0
    %2087 = vmatprep.subr.bf16.mxu0 0
    %2088 = vmatpush1.bf16.msra.mxu0 0
    %2089 = vmatprep.subr.bf16.mxu0 0
    %2090 = vmatpush1.bf16.msra.mxu0 0
    %2091 = vmatprep.subr.bf16.mxu0 0
    %2092 = vmatpush1.bf16.msra.mxu0 0
    %2093 = vmatprep.subr.bf16.mxu0 0
    %2094 = vmatpush1.bf16.msra.mxu0 0
    %2095 = vmatprep.mubr.bf16.mxu0 0
    %2096 = vmatmul.mubr.bf16.gmra.mrb[0].mxu0 %v2061
    %v2097 = vpop.f32.mrb[0].mxu0
    %v2098 = vadd.f32 0.0, %v2097
    %v2099 = vpop.f32.mrb[0].mxu0
    %v2100 = vpop.f32.mrb[0].mxu0
    %v2101 = vpop.f32.mrb[0].mxu0
    %2102 = vdwg.mxu0
    %v2103 = vadd.f32 %v1911, %v2098
    %v2104 = vlaneseq
    %v2105 = vshrl.u32 %v2104, 7
    %v2106 = vsub.s32 0, %v2105
    %v2107 = vrot.slane %v1213, %v2106
    %v2108 = vadd.f32 %v2107, %v2103
    %v2109 = vld [vmem:[%s13] sm:$0x1]
    %v2111 = vlaneseq
    %v2112 = vshrl.u32 %v2111, 7
    %v2113 = vsub.s32 0, %v2112
    %v2114 = vrot.slane %v2109, %v2113
    %v2116 = vadd.f32 %v2108, %v2114
    %2117 = vadd.xlane.f32.xlu0 %v2116
    %v2118 = vpop.xlane.xlu0 %2117
    %v2119 = vmul.f32 %v2118, %v876
    %v2120 = vsub.f32 %v2116, %v2119
    %v2121 = vmul.f32 %v2120, %v2120
    %2122 = vadd.xlane.f32.xlu0 %v2121
    %v2123 = vpop.xlane.xlu0 %2122
    %v2124 = vmul.f32 %v2123, %v876
    %v2125 = vadd.f32 %v2124, 1e-05
    %v2126 = vrsqrt.pop %v2125
    %v2127 = vmul.f32 %v2120, %v2126
    %v2128 = vld [vmem:[%s14] sm:$0x1]
    %v2130 = vlaneseq
    %v2131 = vshrl.u32 %v2130, 7
    %v2132 = vsub.s32 0, %v2131
    %v2133 = vrot.slane %v2128, %v2132
    %v2135 = vmul.f32 %v2127, %v2133
    %v2136 = vld [vmem:[%s15] sm:$0x1]
    %v2138 = vlaneseq
    %v2139 = vshrl.u32 %v2138, 7
    %v2140 = vsub.s32 0, %v2139
    %v2141 = vrot.slane %v2136, %v2140
    %v2143 = vadd.f32 %v2135, %v2141
    %v2144 = vpack.c.bf16 %v2143, %v2143
    %v2145 = vld [vmem:[#allocation14] sm:$0xff]
    %v2146 = vld [vmem:[#allocation14 + $0x8] sm:$0xff]
    %v2147 = vld [vmem:[#allocation14 + $0x10] sm:$0xff]
    %v2148 = vld [vmem:[#allocation14 + $0x18] sm:$0xff]
    %v2149 = vld [vmem:[#allocation14 + $0x20] sm:$0xff]
    %v2150 = vld [vmem:[#allocation14 + $0x28] sm:$0xff]
    %v2151 = vld [vmem:[#allocation14 + $0x30] sm:$0xff]
    %v2152 = vld [vmem:[#allocation14 + $0x38] sm:$0xff]
    %v2153 = vld [vmem:[#allocation14 + $0x40] sm:$0xff]
    %v2154 = vld [vmem:[#allocation14 + $0x48] sm:$0xff]
    %v2155 = vld [vmem:[#allocation14 + $0x50] sm:$0xff]
    %v2156 = vld [vmem:[#allocation14 + $0x58] sm:$0xff]
    %v2157 = vld [vmem:[#allocation14 + $0x60] sm:$0xff]
    %v2158 = vld [vmem:[#allocation14 + $0x68] sm:$0xff]
    %v2159 = vld [vmem:[#allocation14 + $0x70] sm:$0xff]
    %v2160 = vld [vmem:[#allocation14 + $0x78] sm:$0xff]
    %v2161 = vld [vmem:[#allocation14 + $0x80] sm:$0xff]
    %v2162 = vld [vmem:[#allocation14 + $0x88] sm:$0xff]
    %v2163 = vld [vmem:[#allocation14 + $0x90] sm:$0xff]
    %v2164 = vld [vmem:[#allocation14 + $0x98] sm:$0xff]
    %v2165 = vld [vmem:[#allocation14 + $0xa0] sm:$0xff]
    %v2166 = vld [vmem:[#allocation14 + $0xa8] sm:$0xff]
    %v2167 = vld [vmem:[#allocation14 + $0xb0] sm:$0xff]
    %v2168 = vld [vmem:[#allocation14 + $0xb8] sm:$0xff]
    %v2169 = vld [vmem:[#allocation14 + $0xc0] sm:$0xff]
    %v2170 = vld [vmem:[#allocation14 + $0xc8] sm:$0xff]
    %v2171 = vld [vmem:[#allocation14 + $0xd0] sm:$0xff]
    %v2172 = vld [vmem:[#allocation14 + $0xd8] sm:$0xff]
    %v2173 = vld [vmem:[#allocation14 + $0xe0] sm:$0xff]
    %v2174 = vld [vmem:[#allocation14 + $0xe8] sm:$0xff]
    %v2175 = vld [vmem:[#allocation14 + $0xf0] sm:$0xff]
    %v2176 = vld [vmem:[#allocation14 + $0xf8] sm:$0xff]
    %v2177 = vld [vmem:[%s17] sm:$0xf]
    %v2179 = vlaneseq
    %v2180 = vshrl.u32 %v2179, 7
    %v2181 = vsub.s32 0, %v2180
    %v2182 = vrot.slane %v2177, %v2181
    %v2183 = vlaneseq
    %v2184 = vshrl.u32 %v2183, 7
    %v2185 = vsub.s32 1, %v2184
    %v2186 = vrot.slane %v2177, %v2185
    %v2187 = vlaneseq
    %v2188 = vshrl.u32 %v2187, 7
    %v2189 = vsub.s32 2, %v2188
    %v2190 = vrot.slane %v2177, %v2189
    %v2191 = vlaneseq
    %v2192 = vshrl.u32 %v2191, 7
    %v2193 = vsub.s32 3, %v2192
    %v2194 = vrot.slane %v2177, %v2193
    %v2231 = vunpack.c.l.b16 %v2145
    %v2232 = vunpack.c.h.b16 %v2145
    %v2233 = vunpack.c.l.b16 %v2146
    %v2234 = vunpack.c.h.b16 %v2146
    %v2235 = vunpack.c.l.b16 %v2147
    %v2236 = vunpack.c.h.b16 %v2147
    %v2237 = vunpack.c.l.b16 %v2148
    %v2238 = vunpack.c.h.b16 %v2148
    %v2239 = vunpack.c.l.b16 %v2149
    %v2240 = vunpack.c.h.b16 %v2149
    %v2241 = vunpack.c.l.b16 %v2150
    %v2242 = vunpack.c.h.b16 %v2150
    %v2243 = vunpack.c.l.b16 %v2151
    %v2244 = vunpack.c.h.b16 %v2151
    %v2245 = vunpack.c.l.b16 %v2152
    %v2246 = vunpack.c.h.b16 %v2152
    %v2247 = vunpack.c.l.b16 %v2153
    %v2248 = vunpack.c.h.b16 %v2153
    %v2249 = vunpack.c.l.b16 %v2154
    %v2250 = vunpack.c.h.b16 %v2154
    %v2251 = vunpack.c.l.b16 %v2155
    %v2252 = vunpack.c.h.b16 %v2155
    %v2253 = vunpack.c.l.b16 %v2156
    %v2254 = vunpack.c.h.b16 %v2156
    %v2255 = vunpack.c.l.b16 %v2157
    %v2256 = vunpack.c.h.b16 %v2157
    %v2257 = vunpack.c.l.b16 %v2158
    %v2258 = vunpack.c.h.b16 %v2158
    %v2259 = vunpack.c.l.b16 %v2159
    %v2260 = vunpack.c.h.b16 %v2159
    %v2261 = vunpack.c.l.b16 %v2160
    %v2262 = vunpack.c.h.b16 %v2160
    %v2263 = vunpack.c.l.b16 %v2161
    %v2264 = vunpack.c.h.b16 %v2161
    %v2265 = vunpack.c.l.b16 %v2162
    %v2266 = vunpack.c.h.b16 %v2162
    %v2267 = vunpack.c.l.b16 %v2163
    %v2268 = vunpack.c.h.b16 %v2163
    %v2269 = vunpack.c.l.b16 %v2164
    %v2270 = vunpack.c.h.b16 %v2164
    %v2271 = vunpack.c.l.b16 %v2165
    %v2272 = vunpack.c.h.b16 %v2165
    %v2273 = vunpack.c.l.b16 %v2166
    %v2274 = vunpack.c.h.b16 %v2166
    %v2275 = vunpack.c.l.b16 %v2167
    %v2276 = vunpack.c.h.b16 %v2167
    %v2277 = vunpack.c.l.b16 %v2168
    %v2278 = vunpack.c.h.b16 %v2168
    %v2279 = vunpack.c.l.b16 %v2169
    %v2280 = vunpack.c.h.b16 %v2169
    %v2281 = vunpack.c.l.b16 %v2170
    %v2282 = vunpack.c.h.b16 %v2170
    %v2283 = vunpack.c.l.b16 %v2171
    %v2284 = vunpack.c.h.b16 %v2171
    %v2285 = vunpack.c.l.b16 %v2172
    %v2286 = vunpack.c.h.b16 %v2172
    %v2287 = vunpack.c.l.b16 %v2173
    %v2288 = vunpack.c.h.b16 %v2173
    %v2289 = vunpack.c.l.b16 %v2174
    %v2290 = vunpack.c.h.b16 %v2174
    %v2291 = vunpack.c.l.b16 %v2175
    %v2292 = vunpack.c.h.b16 %v2175
    %v2293 = vunpack.c.l.b16 %v2176
    %v2294 = vunpack.c.h.b16 %v2176
    %v2295 = vpack.c.b16 %v2235, %v2231
    %v2296 = vpack.c.b16 %v2236, %v2232
    %v2297 = vpack.c.b16 %v2237, %v2233
    %v2298 = vpack.c.b16 %v2238, %v2234
    %v2299 = vpack.c.b16 %v2243, %v2239
    %v2300 = vpack.c.b16 %v2244, %v2240
    %v2301 = vpack.c.b16 %v2245, %v2241
    %v2302 = vpack.c.b16 %v2246, %v2242
    %v2303 = vpack.c.b16 %v2251, %v2247
    %v2304 = vpack.c.b16 %v2252, %v2248
    %v2305 = vpack.c.b16 %v2253, %v2249
    %v2306 = vpack.c.b16 %v2254, %v2250
    %v2307 = vpack.c.b16 %v2259, %v2255
    %v2308 = vpack.c.b16 %v2260, %v2256
    %v2309 = vpack.c.b16 %v2261, %v2257
    %v2310 = vpack.c.b16 %v2262, %v2258
    %v2311 = vpack.c.b16 %v2267, %v2263
    %v2312 = vpack.c.b16 %v2268, %v2264
    %v2313 = vpack.c.b16 %v2269, %v2265
    %v2314 = vpack.c.b16 %v2270, %v2266
    %v2315 = vpack.c.b16 %v2275, %v2271
    %v2316 = vpack.c.b16 %v2276, %v2272
    %v2317 = vpack.c.b16 %v2277, %v2273
    %v2318 = vpack.c.b16 %v2278, %v2274
    %v2319 = vpack.c.b16 %v2283, %v2279
    %v2320 = vpack.c.b16 %v2284, %v2280
    %v2321 = vpack.c.b16 %v2285, %v2281
    %v2322 = vpack.c.b16 %v2286, %v2282
    %v2323 = vpack.c.b16 %v2291, %v2287
    %v2324 = vpack.c.b16 %v2292, %v2288
    %v2325 = vpack.c.b16 %v2293, %v2289
    %v2326 = vpack.c.b16 %v2294, %v2290
    %2359 = vmatprep.subr.bf16.mxu0 %v2296
    %2360 = vmatpush1.bf16.msra.mxu0 %v2295
    %2361 = vmatprep.subr.bf16.mxu0 %v2300
    %2362 = vmatpush1.bf16.msra.mxu0 %v2299
    %2363 = vmatprep.subr.bf16.mxu0 %v2304
    %2364 = vmatpush1.bf16.msra.mxu0 %v2303
    %2365 = vmatprep.subr.bf16.mxu0 %v2308
    %2366 = vmatpush1.bf16.msra.mxu0 %v2307
    %2367 = vmatprep.subr.bf16.mxu0 %v2312
    %2368 = vmatpush1.bf16.msra.mxu0 %v2311
    %2369 = vmatprep.subr.bf16.mxu0 %v2316
    %2370 = vmatpush1.bf16.msra.mxu0 %v2315
    %2371 = vmatprep.subr.bf16.mxu0 %v2320
    %2372 = vmatpush1.bf16.msra.mxu0 %v2319
    %2373 = vmatprep.subr.bf16.mxu0 %v2324
    %2374 = vmatpush1.bf16.msra.mxu0 %v2323
    %2375 = vmatprep.subr.bf16.mxu0 0
    %2376 = vmatpush1.bf16.msra.mxu0 0
    %2377 = vmatprep.subr.bf16.mxu0 0
    %2378 = vmatpush1.bf16.msra.mxu0 0
    %2379 = vmatprep.subr.bf16.mxu0 0
    %2380 = vmatpush1.bf16.msra.mxu0 0
    %2381 = vmatprep.subr.bf16.mxu0 0
    %2382 = vmatpush1.bf16.msra.mxu0 0
    %2383 = vmatprep.subr.bf16.mxu0 0
    %2384 = vmatpush1.bf16.msra.mxu0 0
    %2385 = vmatprep.subr.bf16.mxu0 0
    %2386 = vmatpush1.bf16.msra.mxu0 0
    %2387 = vmatprep.subr.bf16.mxu0 0
    %2388 = vmatpush1.bf16.msra.mxu0 0
    %2389 = vmatprep.subr.bf16.mxu0 0
    %2390 = vmatpush1.bf16.msra.mxu0 0
    %2391 = vmatprep.mubr.bf16.mxu0 0
    %2392 = vmatmul.mubr.bf16.gmra.mrb[0].mxu0 %v2144
    %v2393 = vpop.f32.mrb[0].mxu0
    %v2394 = vadd.f32 %v2182, %v2393
    %v2395 = vpop.f32.mrb[0].mxu0
    %v2396 = vadd.f32 %v2186, %v2395
    %v2397 = vpop.f32.mrb[0].mxu0
    %v2398 = vpop.f32.mrb[0].mxu0
    %2399 = vdwg.mxu0
    %2400 = vmatprep.subr.bf16.mxu0 %v2298
    %2401 = vmatpush1.bf16.msra.mxu0 %v2297
    %2402 = vmatprep.subr.bf16.mxu0 %v2302
    %2403 = vmatpush1.bf16.msra.mxu0 %v2301
    %2404 = vmatprep.subr.bf16.mxu0 %v2306
    %2405 = vmatpush1.bf16.msra.mxu0 %v2305
    %2406 = vmatprep.subr.bf16.mxu0 %v2310
    %2407 = vmatpush1.bf16.msra.mxu0 %v2309
    %2408 = vmatprep.subr.bf16.mxu0 %v2314
    %2409 = vmatpush1.bf16.msra.mxu0 %v2313
    %2410 = vmatprep.subr.bf16.mxu0 %v2318
    %2411 = vmatpush1.bf16.msra.mxu0 %v2317
    %2412 = vmatprep.subr.bf16.mxu0 %v2322
    %2413 = vmatpush1.bf16.msra.mxu0 %v2321
    %2414 = vmatprep.subr.bf16.mxu0 %v2326
    %2415 = vmatpush1.bf16.msra.mxu0 %v2325
    %2416 = vmatprep.subr.bf16.mxu0 0
    %2417 = vmatpush1.bf16.msra.mxu0 0
    %2418 = vmatprep.subr.bf16.mxu0 0
    %2419 = vmatpush1.bf16.msra.mxu0 0
    %2420 = vmatprep.subr.bf16.mxu0 0
    %2421 = vmatpush1.bf16.msra.mxu0 0
    %2422 = vmatprep.subr.bf16.mxu0 0
    %2423 = vmatpush1.bf16.msra.mxu0 0
    %2424 = vmatprep.subr.bf16.mxu0 0
    %2425 = vmatpush1.bf16.msra.mxu0 0
    %2426 = vmatprep.subr.bf16.mxu0 0
    %2427 = vmatpush1.bf16.msra.mxu0 0
    %2428 = vmatprep.subr.bf16.mxu0 0
    %2429 = vmatpush1.bf16.msra.mxu0 0
    %2430 = vmatprep.subr.bf16.mxu0 0
    %2431 = vmatpush1.bf16.msra.mxu0 0
    %2432 = vmatprep.mubr.bf16.mxu0 0
    %2433 = vmatmul.mubr.bf16.gmra.mrb[0].mxu0 %v2144
    %v2434 = vpop.f32.mrb[0].mxu0
    %v2435 = vadd.f32 %v2190, %v2434
    %v2436 = vpop.f32.mrb[0].mxu0
    %v2437 = vadd.f32 %v2194, %v2436
    %v2438 = vpop.f32.mrb[0].mxu0
    %v2439 = vpop.f32.mrb[0].mxu0
    %2440 = vdwg.mxu0
    %v2441 = vmul.f32 %v2394, 1.702
    %v2442 = vmul.f32 %v2396, 1.702
    %v2443 = vmul.f32 %v2435, 1.702
    %v2444 = vmul.f32 %v2437, 1.702
    %v2445 = vxor.u32 %v2441, 2147483648
    %v2446 = vxor.u32 %v2442, 2147483648
    %v2447 = vxor.u32 %v2443, 2147483648
    %v2448 = vxor.u32 %v2444, 2147483648
    %v2449 = vmul.f32 %v2445, 1.442695
    %v2450 = vpow.pop %v2449
    %v2451 = vmul.f32 %v2446, 1.442695
    %v2452 = vpow.pop %v2451
    %v2453 = vmul.f32 %v2447, 1.442695
    %v2454 = vpow.pop %v2453
    %v2455 = vmul.f32 %v2448, 1.442695
    %v2456 = vpow.pop %v2455
    %v2457 = vadd.f32 %v2450, 1.0
    %v2458 = vadd.f32 %v2452, 1.0
    %v2459 = vadd.f32 %v2454, 1.0
    %v2460 = vadd.f32 %v2456, 1.0
    %v2461 = vrcp.pop %v2457
    %v2462 = vmul.f32 1.0, %v2461
    %v2463 = vrcp.pop %v2458
    %v2464 = vmul.f32 1.0, %v2463
    %v2465 = vrcp.pop %v2459
    %v2466 = vmul.f32 1.0, %v2465
    %v2467 = vrcp.pop %v2460
    %v2468 = vmul.f32 1.0, %v2467
    %v2469 = vmul.f32 %v2394, %v2462
    %v2470 = vmul.f32 %v2396, %v2464
    %v2471 = vmul.f32 %v2435, %v2466
    %v2472 = vmul.f32 %v2437, %v2468
    %v2473 = vpack.c.bf16 %v2469, %v2469
    %v2474 = vpack.c.bf16 %v2470, %v2470
    %v2475 = vpack.c.bf16 %v2471, %v2471
    %v2476 = vpack.c.bf16 %v2472, %v2472
    %v2477 = vld [vmem:[#allocation16] sm:$0xf]
    %v2478 = vld [vmem:[#allocation16 + $0x4] sm:$0xf]
    %v2479 = vld [vmem:[#allocation16 + $0x8] sm:$0xf]
    %v2480 = vld [vmem:[#allocation16 + $0xc] sm:$0xf]
    %v2481 = vld [vmem:[#allocation16 + $0x10] sm:$0xf]
    %v2482 = vld [vmem:[#allocation16 + $0x14] sm:$0xf]
    %v2483 = vld [vmem:[#allocation16 + $0x18] sm:$0xf]
    %v2484 = vld [vmem:[#allocation16 + $0x1c] sm:$0xf]
    %v2485 = vld [vmem:[#allocation16 + $0x20] sm:$0xf]
    %v2486 = vld [vmem:[#allocation16 + $0x24] sm:$0xf]
    %v2487 = vld [vmem:[#allocation16 + $0x28] sm:$0xf]
    %v2488 = vld [vmem:[#allocation16 + $0x2c] sm:$0xf]
    %v2489 = vld [vmem:[#allocation16 + $0x30] sm:$0xf]
    %v2490 = vld [vmem:[#allocation16 + $0x34] sm:$0xf]
    %v2491 = vld [vmem:[#allocation16 + $0x38] sm:$0xf]
    %v2492 = vld [vmem:[#allocation16 + $0x3c] sm:$0xf]
    %v2493 = vld [vmem:[#allocation16 + $0x40] sm:$0xf]
    %v2494 = vld [vmem:[#allocation16 + $0x44] sm:$0xf]
    %v2495 = vld [vmem:[#allocation16 + $0x48] sm:$0xf]
    %v2496 = vld [vmem:[#allocation16 + $0x4c] sm:$0xf]
    %v2497 = vld [vmem:[#allocation16 + $0x50] sm:$0xf]
    %v2498 = vld [vmem:[#allocation16 + $0x54] sm:$0xf]
    %v2499 = vld [vmem:[#allocation16 + $0x58] sm:$0xf]
    %v2500 = vld [vmem:[#allocation16 + $0x5c] sm:$0xf]
    %v2501 = vld [vmem:[#allocation16 + $0x60] sm:$0xf]
    %v2502 = vld [vmem:[#allocation16 + $0x64] sm:$0xf]
    %v2503 = vld [vmem:[#allocation16 + $0x68] sm:$0xf]
    %v2504 = vld [vmem:[#allocation16 + $0x6c] sm:$0xf]
    %v2505 = vld [vmem:[#allocation16 + $0x70] sm:$0xf]
    %v2506 = vld [vmem:[#allocation16 + $0x74] sm:$0xf]
    %v2507 = vld [vmem:[#allocation16 + $0x78] sm:$0xf]
    %v2508 = vld [vmem:[#allocation16 + $0x7c] sm:$0xf]
    %v2509 = vld [vmem:[#allocation16 + $0x80] sm:$0xf]
    %v2510 = vld [vmem:[#allocation16 + $0x84] sm:$0xf]
    %v2511 = vld [vmem:[#allocation16 + $0x88] sm:$0xf]
    %v2512 = vld [vmem:[#allocation16 + $0x8c] sm:$0xf]
    %v2513 = vld [vmem:[#allocation16 + $0x90] sm:$0xf]
    %v2514 = vld [vmem:[#allocation16 + $0x94] sm:$0xf]
    %v2515 = vld [vmem:[#allocation16 + $0x98] sm:$0xf]
    %v2516 = vld [vmem:[#allocation16 + $0x9c] sm:$0xf]
    %v2517 = vld [vmem:[#allocation16 + $0xa0] sm:$0xf]
    %v2518 = vld [vmem:[#allocation16 + $0xa4] sm:$0xf]
    %v2519 = vld [vmem:[#allocation16 + $0xa8] sm:$0xf]
    %v2520 = vld [vmem:[#allocation16 + $0xac] sm:$0xf]
    %v2521 = vld [vmem:[#allocation16 + $0xb0] sm:$0xf]
    %v2522 = vld [vmem:[#allocation16 + $0xb4] sm:$0xf]
    %v2523 = vld [vmem:[#allocation16 + $0xb8] sm:$0xf]
    %v2524 = vld [vmem:[#allocation16 + $0xbc] sm:$0xf]
    %v2525 = vld [vmem:[#allocation16 + $0xc0] sm:$0xf]
    %v2526 = vld [vmem:[#allocation16 + $0xc4] sm:$0xf]
    %v2527 = vld [vmem:[#allocation16 + $0xc8] sm:$0xf]
    %v2528 = vld [vmem:[#allocation16 + $0xcc] sm:$0xf]
    %v2529 = vld [vmem:[#allocation16 + $0xd0] sm:$0xf]
    %v2530 = vld [vmem:[#allocation16 + $0xd4] sm:$0xf]
    %v2531 = vld [vmem:[#allocation16 + $0xd8] sm:$0xf]
    %v2532 = vld [vmem:[#allocation16 + $0xdc] sm:$0xf]
    %v2533 = vld [vmem:[#allocation16 + $0xe0] sm:$0xf]
    %v2534 = vld [vmem:[#allocation16 + $0xe4] sm:$0xf]
    %v2535 = vld [vmem:[#allocation16 + $0xe8] sm:$0xf]
    %v2536 = vld [vmem:[#allocation16 + $0xec] sm:$0xf]
    %v2537 = vld [vmem:[#allocation16 + $0xf0] sm:$0xf]
    %v2538 = vld [vmem:[#allocation16 + $0xf4] sm:$0xf]
    %v2539 = vld [vmem:[#allocation16 + $0xf8] sm:$0xf]
    %v2540 = vld [vmem:[#allocation16 + $0xfc] sm:$0xf]
    %v2541 = vld [vmem:[%s19] sm:$0x1]
    %v2543 = vlaneseq
    %v2544 = vshrl.u32 %v2543, 7
    %v2545 = vsub.s32 0, %v2544
    %v2546 = vrot.slane %v2541, %v2545
    %v2612 = vunpack.c.l.b16 %v2477
    %v2613 = vunpack.c.l.b16 %v2478
    %v2614 = vunpack.c.l.b16 %v2479
    %v2615 = vunpack.c.l.b16 %v2480
    %v2616 = vunpack.c.l.b16 %v2481
    %v2617 = vunpack.c.l.b16 %v2482
    %v2618 = vunpack.c.l.b16 %v2483
    %v2619 = vunpack.c.l.b16 %v2484
    %v2620 = vunpack.c.l.b16 %v2485
    %v2621 = vunpack.c.l.b16 %v2486
    %v2622 = vunpack.c.l.b16 %v2487
    %v2623 = vunpack.c.l.b16 %v2488
    %v2624 = vunpack.c.l.b16 %v2489
    %v2625 = vunpack.c.l.b16 %v2490
    %v2626 = vunpack.c.l.b16 %v2491
    %v2627 = vunpack.c.l.b16 %v2492
    %v2628 = vunpack.c.l.b16 %v2493
    %v2629 = vunpack.c.l.b16 %v2494
    %v2630 = vunpack.c.l.b16 %v2495
    %v2631 = vunpack.c.l.b16 %v2496
    %v2632 = vunpack.c.l.b16 %v2497
    %v2633 = vunpack.c.l.b16 %v2498
    %v2634 = vunpack.c.l.b16 %v2499
    %v2635 = vunpack.c.l.b16 %v2500
    %v2636 = vunpack.c.l.b16 %v2501
    %v2637 = vunpack.c.l.b16 %v2502
    %v2638 = vunpack.c.l.b16 %v2503
    %v2639 = vunpack.c.l.b16 %v2504
    %v2640 = vunpack.c.l.b16 %v2505
    %v2641 = vunpack.c.l.b16 %v2506
    %v2642 = vunpack.c.l.b16 %v2507
    %v2643 = vunpack.c.l.b16 %v2508
    %v2644 = vunpack.c.l.b16 %v2509
    %v2645 = vunpack.c.l.b16 %v2510
    %v2646 = vunpack.c.l.b16 %v2511
    %v2647 = vunpack.c.l.b16 %v2512
    %v2648 = vunpack.c.l.b16 %v2513
    %v2649 = vunpack.c.l.b16 %v2514
    %v2650 = vunpack.c.l.b16 %v2515
    %v2651 = vunpack.c.l.b16 %v2516
    %v2652 = vunpack.c.l.b16 %v2517
    %v2653 = vunpack.c.l.b16 %v2518
    %v2654 = vunpack.c.l.b16 %v2519
    %v2655 = vunpack.c.l.b16 %v2520
    %v2656 = vunpack.c.l.b16 %v2521
    %v2657 = vunpack.c.l.b16 %v2522
    %v2658 = vunpack.c.l.b16 %v2523
    %v2659 = vunpack.c.l.b16 %v2524
    %v2660 = vunpack.c.l.b16 %v2525
    %v2661 = vunpack.c.l.b16 %v2526
    %v2662 = vunpack.c.l.b16 %v2527
    %v2663 = vunpack.c.l.b16 %v2528
    %v2664 = vunpack.c.l.b16 %v2529
    %v2665 = vunpack.c.l.b16 %v2530
    %v2666 = vunpack.c.l.b16 %v2531
    %v2667 = vunpack.c.l.b16 %v2532
    %v2668 = vunpack.c.l.b16 %v2533
    %v2669 = vunpack.c.l.b16 %v2534
    %v2670 = vunpack.c.l.b16 %v2535
    %v2671 = vunpack.c.l.b16 %v2536
    %v2672 = vunpack.c.l.b16 %v2537
    %v2673 = vunpack.c.l.b16 %v2538
    %v2674 = vunpack.c.l.b16 %v2539
    %v2675 = vunpack.c.l.b16 %v2540
    %v2676 = vpack.c.b16 %v2613, %v2612
    %v2677 = vpack.c.b16 %v2615, %v2614
    %v2678 = vpack.c.b16 %v2617, %v2616
    %v2679 = vpack.c.b16 %v2619, %v2618
    %v2680 = vpack.c.b16 %v2621, %v2620
    %v2681 = vpack.c.b16 %v2623, %v2622
    %v2682 = vpack.c.b16 %v2625, %v2624
    %v2683 = vpack.c.b16 %v2627, %v2626
    %v2684 = vpack.c.b16 %v2629, %v2628
    %v2685 = vpack.c.b16 %v2631, %v2630
    %v2686 = vpack.c.b16 %v2633, %v2632
    %v2687 = vpack.c.b16 %v2635, %v2634
    %v2688 = vpack.c.b16 %v2637, %v2636
    %v2689 = vpack.c.b16 %v2639, %v2638
    %v2690 = vpack.c.b16 %v2641, %v2640
    %v2691 = vpack.c.b16 %v2643, %v2642
    %v2692 = vpack.c.b16 %v2645, %v2644
    %v2693 = vpack.c.b16 %v2647, %v2646
    %v2694 = vpack.c.b16 %v2649, %v2648
    %v2695 = vpack.c.b16 %v2651, %v2650
    %v2696 = vpack.c.b16 %v2653, %v2652
    %v2697 = vpack.c.b16 %v2655, %v2654
    %v2698 = vpack.c.b16 %v2657, %v2656
    %v2699 = vpack.c.b16 %v2659, %v2658
    %v2700 = vpack.c.b16 %v2661, %v2660
    %v2701 = vpack.c.b16 %v2663, %v2662
    %v2702 = vpack.c.b16 %v2665, %v2664
    %v2703 = vpack.c.b16 %v2667, %v2666
    %v2704 = vpack.c.b16 %v2669, %v2668
    %v2705 = vpack.c.b16 %v2671, %v2670
    %v2706 = vpack.c.b16 %v2673, %v2672
    %v2707 = vpack.c.b16 %v2675, %v2674
    %2740 = vmatprep.subr.bf16.mxu0 0
    %2741 = vmatpush1.bf16.msra.mxu0 %v2676
    %2742 = vmatprep.subr.bf16.mxu0 0
    %2743 = vmatpush1.bf16.msra.mxu0 %v2677
    %2744 = vmatprep.subr.bf16.mxu0 0
    %2745 = vmatpush1.bf16.msra.mxu0 %v2678
    %2746 = vmatprep.subr.bf16.mxu0 0
    %2747 = vmatpush1.bf16.msra.mxu0 %v2679
    %2748 = vmatprep.subr.bf16.mxu0 0
    %2749 = vmatpush1.bf16.msra.mxu0 %v2680
    %2750 = vmatprep.subr.bf16.mxu0 0
    %2751 = vmatpush1.bf16.msra.mxu0 %v2681
    %2752 = vmatprep.subr.bf16.mxu0 0
    %2753 = vmatpush1.bf16.msra.mxu0 %v2682
    %2754 = vmatprep.subr.bf16.mxu0 0
    %2755 = vmatpush1.bf16.msra.mxu0 %v2683
    %2756 = vmatprep.subr.bf16.mxu0 0
    %2757 = vmatpush1.bf16.msra.mxu0 %v2684
    %2758 = vmatprep.subr.bf16.mxu0 0
    %2759 = vmatpush1.bf16.msra.mxu0 %v2685
    %2760 = vmatprep.subr.bf16.mxu0 0
    %2761 = vmatpush1.bf16.msra.mxu0 %v2686
    %2762 = vmatprep.subr.bf16.mxu0 0
    %2763 = vmatpush1.bf16.msra.mxu0 %v2687
    %2764 = vmatprep.subr.bf16.mxu0 0
    %2765 = vmatpush1.bf16.msra.mxu0 %v2688
    %2766 = vmatprep.subr.bf16.mxu0 0
    %2767 = vmatpush1.bf16.msra.mxu0 %v2689
    %2768 = vmatprep.subr.bf16.mxu0 0
    %2769 = vmatpush1.bf16.msra.mxu0 %v2690
    %2770 = vmatprep.subr.bf16.mxu0 0
    %2771 = vmatpush1.bf16.msra.mxu0 %v2691
    %2772 = vmatprep.mubr.bf16.mxu0 %v2474
    %2773 = vmatmul.mubr.bf16.gmra.mrb[0].mxu0 %v2473
    %v2774 = vpop.f32.mrb[0].mxu0
    %v2775 = vadd.f32 %v2546, %v2774
    %v2776 = vpop.f32.mrb[0].mxu0
    %v2777 = vpop.f32.mrb[0].mxu0
    %v2778 = vpop.f32.mrb[0].mxu0
    %2779 = vdwg.mxu0
    %2780 = vmatprep.subr.bf16.mxu0 0
    %2781 = vmatpush1.bf16.msra.mxu0 %v2692
    %2782 = vmatprep.subr.bf16.mxu0 0
    %2783 = vmatpush1.bf16.msra.mxu0 %v2693
    %2784 = vmatprep.subr.bf16.mxu0 0
    %2785 = vmatpush1.bf16.msra.mxu0 %v2694
    %2786 = vmatprep.subr.bf16.mxu0 0
    %2787 = vmatpush1.bf16.msra.mxu0 %v2695
    %2788 = vmatprep.subr.bf16.mxu0 0
    %2789 = vmatpush1.bf16.msra.mxu0 %v2696
    %2790 = vmatprep.subr.bf16.mxu0 0
    %2791 = vmatpush1.bf16.msra.mxu0 %v2697
    %2792 = vmatprep.subr.bf16.mxu0 0
    %2793 = vmatpush1.bf16.msra.mxu0 %v2698
    %2794 = vmatprep.subr.bf16.mxu0 0
    %2795 = vmatpush1.bf16.msra.mxu0 %v2699
    %2796 = vmatprep.subr.bf16.mxu0 0
    %2797 = vmatpush1.bf16.msra.mxu0 %v2700
    %2798 = vmatprep.subr.bf16.mxu0 0
    %2799 = vmatpush1.bf16.msra.mxu0 %v2701
    %2800 = vmatprep.subr.bf16.mxu0 0
    %2801 = vmatpush1.bf16.msra.mxu0 %v2702
    %2802 = vmatprep.subr.bf16.mxu0 0
    %2803 = vmatpush1.bf16.msra.mxu0 %v2703
    %2804 = vmatprep.subr.bf16.mxu0 0
    %2805 = vmatpush1.bf16.msra.mxu0 %v2704
    %2806 = vmatprep.subr.bf16.mxu0 0
    %2807 = vmatpush1.bf16.msra.mxu0 %v2705
    %2808 = vmatprep.subr.bf16.mxu0 0
    %2809 = vmatpush1.bf16.msra.mxu0 %v2706
    %2810 = vmatprep.subr.bf16.mxu0 0
    %2811 = vmatpush1.bf16.msra.mxu0 %v2707
    %2812 = vmatprep.mubr.bf16.mxu0 %v2476
    %2813 = vmatmul.mubr.bf16.gmra.mrb[0].mxu0 %v2475
    %v2814 = vpop.f32.mrb[0].mxu0
    %v2815 = vadd.f32 %v2775, %v2814
    %v2816 = vpop.f32.mrb[0].mxu0
    %v2817 = vpop.f32.mrb[0].mxu0
    %v2818 = vpop.f32.mrb[0].mxu0
    %2819 = vdwg.mxu0
    %v2820 = vadd.f32 %v2116, %v2815
    %2821 = vadd.xlane.f32.xlu0 %v2820
    %v2822 = vpop.xlane.xlu0 %2821
    %v2823 = vmul.f32 %v2822, %v876
    %v2824 = vsub.f32 %v2820, %v2823
    %v2825 = vmul.f32 %v2824, %v2824
    %2826 = vadd.xlane.f32.xlu0 %v2825
    %v2827 = vpop.xlane.xlu0 %2826
    %v2828 = vmul.f32 %v2827, %v876
    %v2829 = vadd.f32 %v2828, 1e-05
    %v2830 = vrsqrt.pop %v2829
    %v2831 = vmul.f32 %v2824, %v2830
    %v2832 = vld [vmem:[%s20] sm:$0x1]
    %v2834 = vlaneseq
    %v2835 = vshrl.u32 %v2834, 7
    %v2836 = vsub.s32 0, %v2835
    %v2837 = vrot.slane %v2832, %v2836
    %v2839 = vmul.f32 %v2831, %v2837
    %v2840 = vld [vmem:[%s21] sm:$0x1]
    %v2842 = vlaneseq
    %v2843 = vshrl.u32 %v2842, 7
    %v2844 = vsub.s32 0, %v2843
    %v2845 = vrot.slane %v2840, %v2844
    %v2847 = vadd.f32 %v2839, %v2845
    %v2848 = vpack.c.bf16 %v2847, %v2847
    %v2849 = vld [vmem:[%s22] sm:$0xf]
    %v2850 = vld [vmem:[%s22 + $0x4] sm:$0xf]
    %v2851 = vld [vmem:[%s22 + $0x8] sm:$0xf]
    %v2852 = vld [vmem:[%s22 + $0xc] sm:$0xf]
    %v2853 = vld [vmem:[%s22 + $0x10] sm:$0xf]
    %v2854 = vld [vmem:[%s22 + $0x14] sm:$0xf]
    %v2855 = vld [vmem:[%s22 + $0x18] sm:$0xf]
    %v2856 = vld [vmem:[%s22 + $0x1c] sm:$0xf]
    %v2857 = vld [vmem:[%s22 + $0x20] sm:$0xf]
    %v2858 = vld [vmem:[%s22 + $0x24] sm:$0xf]
    %v2859 = vld [vmem:[%s22 + $0x28] sm:$0xf]
    %v2860 = vld [vmem:[%s22 + $0x2c] sm:$0xf]
    %v2861 = vld [vmem:[%s22 + $0x30] sm:$0xf]
    %v2862 = vld [vmem:[%s22 + $0x34] sm:$0xf]
    %v2863 = vld [vmem:[%s22 + $0x38] sm:$0xf]
    %v2864 = vld [vmem:[%s22 + $0x3c] sm:$0xf]
    %v2881 = vunpack.c.l.b16 %v2849
    %v2882 = vunpack.c.l.b16 %v2850
    %v2883 = vunpack.c.l.b16 %v2851
    %v2884 = vunpack.c.l.b16 %v2852
    %v2885 = vunpack.c.l.b16 %v2853
    %v2886 = vunpack.c.l.b16 %v2854
    %v2887 = vunpack.c.l.b16 %v2855
    %v2888 = vunpack.c.l.b16 %v2856
    %v2889 = vunpack.c.l.b16 %v2857
    %v2890 = vunpack.c.l.b16 %v2858
    %v2891 = vunpack.c.l.b16 %v2859
    %v2892 = vunpack.c.l.b16 %v2860
    %v2893 = vunpack.c.l.b16 %v2861
    %v2894 = vunpack.c.l.b16 %v2862
    %v2895 = vunpack.c.l.b16 %v2863
    %v2896 = vunpack.c.l.b16 %v2864
    %v2897 = vpack.c.b16 %v2882, %v2881
    %v2898 = vpack.c.b16 %v2884, %v2883
    %v2899 = vpack.c.b16 %v2886, %v2885
    %v2900 = vpack.c.b16 %v2888, %v2887
    %v2901 = vpack.c.b16 %v2890, %v2889
    %v2902 = vpack.c.b16 %v2892, %v2891
    %v2903 = vpack.c.b16 %v2894, %v2893
    %v2904 = vpack.c.b16 %v2896, %v2895
    %2913 = vmatprep.subr.bf16.mxu0 0
    %2914 = vmatpush1.bf16.msra.mxu0 %v2897
    %2915 = vmatprep.subr.bf16.mxu0 0
    %2916 = vmatpush1.bf16.msra.mxu0 %v2898
    %2917 = vmatprep.subr.bf16.mxu0 0
    %2918 = vmatpush1.bf16.msra.mxu0 %v2899
    %2919 = vmatprep.subr.bf16.mxu0 0
    %2920 = vmatpush1.bf16.msra.mxu0 %v2900
    %2921 = vmatprep.subr.bf16.mxu0 0
    %2922 = vmatpush1.bf16.msra.mxu0 %v2901
    %2923 = vmatprep.subr.bf16.mxu0 0
    %2924 = vmatpush1.bf16.msra.mxu0 %v2902
    %2925 = vmatprep.subr.bf16.mxu0 0
    %2926 = vmatpush1.bf16.msra.mxu0 %v2903
    %2927 = vmatprep.subr.bf16.mxu0 0
    %2928 = vmatpush1.bf16.msra.mxu0 %v2904
    %2929 = vmatprep.subr.bf16.mxu0 0
    %2930 = vmatpush1.bf16.msra.mxu0 0
    %2931 = vmatprep.subr.bf16.mxu0 0
    %2932 = vmatpush1.bf16.msra.mxu0 0
    %2933 = vmatprep.subr.bf16.mxu0 0
    %2934 = vmatpush1.bf16.msra.mxu0 0
    %2935 = vmatprep.subr.bf16.mxu0 0
    %2936 = vmatpush1.bf16.msra.mxu0 0
    %2937 = vmatprep.subr.bf16.mxu0 0
    %2938 = vmatpush1.bf16.msra.mxu0 0
    %2939 = vmatprep.subr.bf16.mxu0 0
    %2940 = vmatpush1.bf16.msra.mxu0 0
    %2941 = vmatprep.subr.bf16.mxu0 0
    %2942 = vmatpush1.bf16.msra.mxu0 0
    %2943 = vmatprep.subr.bf16.mxu0 0
    %2944 = vmatpush1.bf16.msra.mxu0 0
    %2945 = vmatprep.mubr.bf16.mxu0 0
    %2946 = vmatmul.mubr.bf16.gmra.mrb[0].mxu0 %v2848
    %v2947 = vpop.f32.mrb[0].mxu0
    %v2948 = vadd.f32 0.0, %v2947
    %v2949 = vpop.f32.mrb[0].mxu0
    %v2950 = vpop.f32.mrb[0].mxu0
    %v2951 = vpop.f32.mrb[0].mxu0
    %2952 = vdwg.mxu0
    %v2953 = vmul.f32 %v2948, %v2948
    %2954 = vadd.xlane.f32.xlu0 %v2953
    %v2955 = vpop.xlane.xlu0 %2954
    %v2956 = vadd.f32 %v2955, 1e-12
    %v2957 = vrsqrt.pop %v2956
    %v2958 = vmul.f32 %v2948, %v2957
    %v2959 = vpack.c.bf16 %v2958, %v2958
    %v2960 = vld [vmem:[#allocation17] sm:$0xf]
    %v2961 = vld [vmem:[#allocation17 + $0x4] sm:$0xf]
    %v2962 = vld [vmem:[#allocation17 + $0x8] sm:$0xf]
    %v2963 = vld [vmem:[#allocation17 + $0xc] sm:$0xf]
    %v2964 = vld [vmem:[#allocation17 + $0x10] sm:$0xf]
    %v2965 = vld [vmem:[#allocation17 + $0x14] sm:$0xf]
    %v2966 = vld [vmem:[#allocation17 + $0x18] sm:$0xf]
    %v2967 = vld [vmem:[#allocation17 + $0x1c] sm:$0xf]
    %v2968 = vld [vmem:[#allocation17 + $0x20] sm:$0xf]
    %v2969 = vld [vmem:[#allocation17 + $0x24] sm:$0xf]
    %v2970 = vld [vmem:[#allocation17 + $0x28] sm:$0xf]
    %v2971 = vld [vmem:[#allocation17 + $0x2c] sm:$0xf]
    %v2972 = vld [vmem:[#allocation17 + $0x30] sm:$0xf]
    %v2973 = vld [vmem:[#allocation17 + $0x34] sm:$0xf]
    %v2974 = vld [vmem:[#allocation17 + $0x38] sm:$0xf]
    %v2975 = vld [vmem:[#allocation17 + $0x3c] sm:$0xf]
    %v2992 = vunpack.c.l.b16 %v2960
    %v2993 = vunpack.c.l.b16 %v2961
    %v2994 = vunpack.c.l.b16 %v2962
    %v2995 = vunpack.c.l.b16 %v2963
    %v2996 = vunpack.c.l.b16 %v2964
    %v2997 = vunpack.c.l.b16 %v2965
    %v2998 = vunpack.c.l.b16 %v2966
    %v2999 = vunpack.c.l.b16 %v2967
    %v3000 = vunpack.c.l.b16 %v2968
    %v3001 = vunpack.c.l.b16 %v2969
    %v3002 = vunpack.c.l.b16 %v2970
    %v3003 = vunpack.c.l.b16 %v2971
    %v3004 = vunpack.c.l.b16 %v2972
    %v3005 = vunpack.c.l.b16 %v2973
    %v3006 = vunpack.c.l.b16 %v2974
    %v3007 = vunpack.c.l.b16 %v2975
    %v3008 = vpack.c.b16 %v2993, %v2992
    %v3009 = vpack.c.b16 %v2995, %v2994
    %v3010 = vpack.c.b16 %v2997, %v2996
    %v3011 = vpack.c.b16 %v2999, %v2998
    %v3012 = vpack.c.b16 %v3001, %v3000
    %v3013 = vpack.c.b16 %v3003, %v3002
    %v3014 = vpack.c.b16 %v3005, %v3004
    %v3015 = vpack.c.b16 %v3007, %v3006
    %3024 = vmatprep.subr.bf16.mxu0 0
    %3025 = vmatpush1.bf16.xpose.msra.mxu0 %v3008
    %3026 = vmatprep.subr.bf16.mxu0 0
    %3027 = vmatpush1.bf16.xpose.msra.mxu0 %v3009
    %3028 = vmatprep.subr.bf16.mxu0 0
    %3029 = vmatpush1.bf16.xpose.msra.mxu0 %v3010
    %3030 = vmatprep.subr.bf16.mxu0 0
    %3031 = vmatpush1.bf16.xpose.msra.mxu0 %v3011
    %3032 = vmatprep.subr.bf16.mxu0 0
    %3033 = vmatpush1.bf16.xpose.msra.mxu0 %v3012
    %3034 = vmatprep.subr.bf16.mxu0 0
    %3035 = vmatpush1.bf16.xpose.msra.mxu0 %v3013
    %3036 = vmatprep.subr.bf16.mxu0 0
    %3037 = vmatpush1.bf16.xpose.msra.mxu0 %v3014
    %3038 = vmatprep.subr.bf16.mxu0 0
    %3039 = vmatpush1.bf16.xpose.msra.mxu0 %v3015
    %3040 = vmatprep.subr.bf16.mxu0 0
    %3041 = vmatpush1.bf16.xpose.msra.mxu0 0
    %3042 = vmatprep.subr.bf16.mxu0 0
    %3043 = vmatpush1.bf16.xpose.msra.mxu0 0
    %3044 = vmatprep.subr.bf16.mxu0 0
    %3045 = vmatpush1.bf16.xpose.msra.mxu0 0
    %3046 = vmatprep.subr.bf16.mxu0 0
    %3047 = vmatpush1.bf16.xpose.msra.mxu0 0
    %3048 = vmatprep.subr.bf16.mxu0 0
    %3049 = vmatpush1.bf16.xpose.msra.mxu0 0
    %3050 = vmatprep.subr.bf16.mxu0 0
    %3051 = vmatpush1.bf16.xpose.msra.mxu0 0
    %3052 = vmatprep.subr.bf16.mxu0 0
    %3053 = vmatpush1.bf16.xpose.msra.mxu0 0
    %3054 = vmatprep.subr.bf16.mxu0 0
    %3055 = vmatpush1.bf16.xpose.msra.mxu0 0
    %3056 = vmatprep.mubr.bf16.mxu0 0
    %3057 = vmatmul.mubr.bf16.gmra.mrb[0].mxu0 %v2959
    %v3058 = vpop.f32.mrb[0].mxu0
    %v3059 = vadd.f32 0.0, %v3058
    %v3060 = vpop.f32.mrb[0].mxu0
    %v3061 = vpop.f32.mrb[0].mxu0
    %v3062 = vpop.f32.mrb[0].mxu0
    %3063 = vdwg.mxu0
    %3064 = vst [vmem:[#allocation19] sm:$0xff] %v3059
    // Predicated region
    $region138: #{tpu_custom_call.1} parent=1 // pred_check
      _
    $region139: #{tpu_custom_call.1} parent=1 // pred_check_branch
      %3066 = sbr.rel (0) target = $region141
    $region140: #{tpu_custom_call.1} parent=1 // pred_region
      %s3068 = ssub.s32 128, 128
      %3069 = vsyncadd [#allocation4], %s3068
      %s3071 = sshll.u32 [#allocation19], 4
      %s3072 = int_to_ptr.vmem [resolvable:$true] %s3071
      %3074 = dma.vmem_to_hbm [thread:$0]  %s3072, 128, %s24, [#allocation4]
    $region141: #{tpu_custom_call.1} parent=1 // pred_fallthru
      _
    // Predicated region
    $region142: #{tpu_custom_call.1} parent=1 // pred_check
      _
    $region143: #{tpu_custom_call.1} parent=1 // pred_check_branch
      %3076 = sbr.rel (0) target = $region145
    $region144: #{tpu_custom_call.1} parent=1 // pred_region
      %3077 = dma.done [#allocation4], 128
    $region145: #{tpu_custom_call.1} parent=1 // pred_fallthru
      _
    %3078 = vsyncpa [#allocation3], 1
    %3079 = vsyncpa [#allocation6], 1
    %3080 = vsyncpa [#allocation9], 1
    %3081 = vsyncpa [#allocation12], 1
    %3082 = vsyncpa [#allocation15], 1
    %3083 = vsyncpa [#allocation18], 1
    %3084 = vsyncpa [#allocation4], 1

</llo_original>
